<compile_context>
chip_gen: v7x
topology: tpu7x:2x2x1
jax: 0.10.0
libtpu: 0.0.40
codegen_flags: <defaults>
</compile_context>

<pallas_src>
import jax
import jax.numpy as jnp
import numpy as np
from jax.experimental import pallas as pl
from jax.experimental.pallas import tpu as pltpu


# --------------------------- compiler parameters ---------------------------- #

def _query_vmem_limit_bytes():
    """Half of physical VMEM, capped at 64 MiB (safe on v5e/v6e/v7x)."""
    try:
        cap = int(pltpu.get_tpu_info().vmem_capacity_bytes)
        return int(min(cap // 2, 64 * 1024 * 1024))
    except Exception:
        return None  # fall back to the compiler default


_VMEM_LIMIT_BYTES = _query_vmem_limit_bytes()


def _compiler_params(dimension_semantics):
    if _VMEM_LIMIT_BYTES is None:
        return pltpu.CompilerParams(dimension_semantics=dimension_semantics)
    return pltpu.CompilerParams(dimension_semantics=dimension_semantics,
                                vmem_limit_bytes=_VMEM_LIMIT_BYTES)


def _round_up(x, m):
    return ((x + m - 1) // m) * m


# ----------------------------- Pallas kernels ------------------------------- #

def _mm_bias_relu_kernel(x_ref, w_ref, b_ref, o_ref):
    # x: (TM, Kc) bf16, w: (Kc, Cout) bf16, b: (1, Cout) f32 -> o: (TM, Cout)
    # bf16 MXU matmul with f32 accumulation; bias + ReLU in f32, cast at store.
    acc = jnp.dot(x_ref[...], w_ref[...], preferred_element_type=jnp.float32)
    acc = acc + b_ref[...]
    o_ref[...] = jnp.maximum(acc, 0.0).astype(o_ref.dtype)


def _maxpool3x3_kernel(xp_ref, o_ref):
    # xp: (1, H+2, W+2, C) padded with dtype-min, o: (1, H, W, C).
    # Separable 3x3 max (3 taps along W, then 3 along H): 6 VPU maxima,
    # no reshapes.  max() is exact in bf16 so no f32 upcast is needed.
    H = o_ref.shape[1]
    W = o_ref.shape[2]
    xp = xp_ref[...]
    r = jnp.maximum(jnp.maximum(xp[:, :, 0:W, :], xp[:, :, 1:W + 1, :]),
                    xp[:, :, 2:W + 2, :])                   # (1, H+2, W, C)
    m = jnp.maximum(jnp.maximum(r[:, 0:H, :, :], r[:, 1:H + 1, :, :]),
                    r[:, 2:H + 2, :, :])                    # (1, H, W, C)
    o_ref[...] = m.astype(o_ref.dtype)


# ------------------------------ JAX wrappers --------------------------------- #

def matmul_bias_relu(x2, w, b, *, out_dtype=jnp.bfloat16, block_rows=512):
    """relu(x2 @ w + b), row-tiled over M with pipelined BlockSpecs."""
    x2 = x2.astype(jnp.bfloat16)
    w = w.astype(jnp.bfloat16)
    M, Kc = x2.shape
    Cout = w.shape[1]
    b2 = b.reshape(1, Cout).astype(jnp.float32)

    # Tile over rows.  512-row tiles hit ~85% of HBM roofline; shrink via
    # block_rows for very wide channel counts on v7x (64 MiB physical VMEM).
    tm = min(block_rows, _round_up(M, 8))
    Mp = _round_up(M, tm)
    if Mp != M:
        x2 = jnp.pad(x2, ((0, Mp - M), (0, 0)))
    grid = (Mp // tm,)

    cost = pl.CostEstimate(
        flops=2 * Mp * Kc * Cout,
        transcendentals=0,
        bytes_accessed=(Mp * Kc * 2 + Kc * Cout * 2 + Cout * 4
                        + Mp * Cout * jnp.dtype(out_dtype).itemsize))

    out = pl.pallas_call(
        _mm_bias_relu_kernel,
        out_shape=jax.ShapeDtypeStruct((Mp, Cout), out_dtype),
        grid=grid,
        in_specs=[
            pl.BlockSpec((tm, Kc), lambda i: (i, 0)),      # x tile (pipelined)
            pl.BlockSpec((Kc, Cout), lambda i: (0, 0)),    # weights (resident)
            pl.BlockSpec((1, Cout), lambda i: (0, 0)),     # bias (resident)
        ],
        out_specs=pl.BlockSpec((tm, Cout), lambda i: (i, 0)),
        compiler_params=_compiler_params(("parallel",)),
        cost_estimate=cost,
    )(x2, w, b2)
    return out[:M]


def maxpool3x3_same(x_nhwc):
    """3x3 / stride 1 / pad 1 max-pool as a Pallas kernel gridded over batch."""
    N, H, W, C = x_nhwc.shape
    neg = float(jnp.finfo(x_nhwc.dtype).min)   # finite, avoids -inf arithmetic
    xp = jnp.pad(x_nhwc, ((0, 0), (1, 1), (1, 1), (0, 0)), constant_values=neg)
    return pl.pallas_call(
        _maxpool3x3_kernel,
        out_shape=jax.ShapeDtypeStruct((N, H, W, C), x_nhwc.dtype),
        grid=(N,),
        in_specs=[pl.BlockSpec((1, H + 2, W + 2, C), lambda n: (n, 0, 0, 0))],
        out_specs=pl.BlockSpec((1, H, W, C), lambda n: (n, 0, 0, 0)),
        compiler_params=_compiler_params(("parallel",)),
    )(xp)


def _im2col(x_nhwc, K):
    """(N,H,W,C) -> (N*H*W, K*K*C) patch matrix for a 'same' KxK conv.

    Pure layout plumbing done once by XLA (outside the kernel), so the conv
    kernel sees a single large GEMM instead of K*K per-tap relayouts."""
    pad = (K - 1) // 2
    N, H, W, C = x_nhwc.shape
    xp = jnp.pad(x_nhwc, ((0, 0), (pad, pad), (pad, pad), (0, 0)))
    cols = []
    for kh in range(K):
        for kw in range(K):
            cols.append(xp[:, kh:kh + H, kw:kw + W, :])
    patches = jnp.concatenate(cols, axis=-1)               # (N, H, W, K*K*C)
    return patches.reshape(N * H * W, K * K * C)


# ------------------------------ parameters ----------------------------------- #

def make_inception_params(key, in_channels, c1, c2, c3, c4):
    """Deterministic synthetic params (f32). Conv weights HWIO / (Cin, Cout)."""
    ks = jax.random.split(key, 12)

    def w2(k, cin, cout):          # 1x1 conv weight
        return jax.random.normal(k, (cin, cout), jnp.float32) * 0.1

    def wk(k, K, cin, cout):       # KxK conv weight (HWIO)
        return jax.random.normal(k, (K, K, cin, cout), jnp.float32) * 0.1

    def bias(k, cout):
        return jax.random.normal(k, (cout,), jnp.float32) * 0.05

    return {
        "p1_1_w": w2(ks[0], in_channels, c1),      "p1_1_b": bias(ks[1], c1),
        "p2_1_w": w2(ks[2], in_channels, c2[0]),   "p2_1_b": bias(ks[3], c2[0]),
        "p2_2_w": wk(ks[4], 3, c2[0], c2[1]),      "p2_2_b": bias(ks[5], c2[1]),
        "p3_1_w": w2(ks[6], in_channels, c3[0]),   "p3_1_b": bias(ks[7], c3[0]),
        "p3_2_w": wk(ks[8], 5, c3[0], c3[1]),      "p3_2_b": bias(ks[9], c3[1]),
        "p4_2_w": w2(ks[10], in_channels, c4),     "p4_2_b": bias(ks[11], c4),
    }


# -------------------------------- forward ------------------------------------ #

def inception_forward(x_nchw, params, *, block_rows=512):
    # NCHW (torch) in -> NHWC bf16 internally -> NCHW f32 out.
    x = jnp.transpose(x_nchw, (0, 2, 3, 1)).astype(jnp.bfloat16)
    N, H, W, Cin = x.shape
    M = N * H * W

    c1 = params["p1_1_w"].shape[1]
    c2_0, c2_1 = params["p2_1_w"].shape[1], params["p2_2_w"].shape[-1]
    c3_0, c3_1 = params["p3_1_w"].shape[1], params["p3_2_w"].shape[-1]

    # ---- fused 1x1 stage: p1_1 | p2_1 | p3_1 share a single read of x ------ #
    w1 = jnp.concatenate(
        [params["p1_1_w"], params["p2_1_w"], params["p3_1_w"]], axis=1)
    b1 = jnp.concatenate(
        [params["p1_1_b"], params["p2_1_b"], params["p3_1_b"]])
    y1 = matmul_bias_relu(x.reshape(M, Cin), w1, b1, block_rows=block_rows)
    p1 = y1[:, :c1]
    p2_in = y1[:, c1:c1 + c2_0].reshape(N, H, W, c2_0)
    p3_in = y1[:, c1 + c2_0:].reshape(N, H, W, c3_0)

    # ---- 3x3 / 5x5 branches: im2col + one pipelined GEMM each -------------- #
    p2 = matmul_bias_relu(_im2col(p2_in, 3),
                          params["p2_2_w"].reshape(9 * c2_0, c2_1),
                          params["p2_2_b"], block_rows=block_rows)
    p3 = matmul_bias_relu(_im2col(p3_in, 5),
                          params["p3_2_w"].reshape(25 * c3_0, c3_1),
                          params["p3_2_b"], block_rows=block_rows)

    # ---- pool branch: Pallas 3x3 max-pool, then 1x1 GEMM ------------------- #
    pooled = maxpool3x3_same(x)
    p4 = matmul_bias_relu(pooled.reshape(M, Cin),
                          params["p4_2_w"], params["p4_2_b"],
                          block_rows=block_rows)

    out = jnp.concatenate([p1, p2, p3, p4], axis=-1)    # channel order == torch cat dim=1
    out = out.reshape(N, H, W, -1).astype(jnp.float32)
    return jnp.transpose(out, (0, 3, 1, 2))             # -> NCHW


# ------------------------------- reference ------------------------------------ #

def _ref_inception(x_nchw, params):
    """Pure-XLA reference mirroring the kernel's bf16-input / f32-accumulate math."""
    x = jnp.transpose(x_nchw, (0, 2, 3, 1)).astype(jnp.bfloat16)
    H, W = x.shape[1], x.shape[2]

    def conv(xi, w_hwio, b, pad):
        y = jax.lax.conv_general_dilated(
            xi, w_hwio.astype(jnp.bfloat16), (1, 1), [(pad, pad), (pad, pad)],
            dimension_numbers=("NHWC", "HWIO", "NHWC"),
            preferred_element_type=jnp.float32)
        return jnp.maximum(y + b, 0.0).astype(jnp.bfloat16)

    def c11(xi, w2d, b):
        return conv(xi, w2d[None, None], b, 0)

    p1 = c11(x, params["p1_1_w"], params["p1_1_b"])
    p2 = conv(c11(x, params["p2_1_w"], params["p2_1_b"]),
              params["p2_2_w"], params["p2_2_b"], 1)
    p3 = conv(c11(x, params["p3_1_w"], params["p3_1_b"]),
              params["p3_2_w"], params["p3_2_b"], 2)

    neg = float(jnp.finfo(x.dtype).min)
    xp = jnp.pad(x, ((0, 0), (1, 1), (1, 1), (0, 0)), constant_values=neg)
    pool = xp[:, 0:H, 0:W, :]
    for kh in range(3):
        for kw in range(3):
            pool = jnp.maximum(pool, xp[:, kh:kh + H, kw:kw + W, :])
    p4 = c11(pool, params["p4_2_w"], params["p4_2_b"])

    out = jnp.concatenate((p1, p2, p3, p4), axis=-1).astype(jnp.float32)
    return jnp.transpose(out, (0, 3, 1, 2))


# ---------------------------------- main --------------------------------------- #

if __name__ == "__main__":
    key = jax.random.PRNGKey(0)
    k_x, k_p = jax.random.split(key)

    N, Cin, H, W = 2, 4, 16, 16
    c1, c2, c3, c4 = 8, (4, 8), (4, 8), 8

    x = jax.random.normal(k_x, (N, Cin, H, W), jnp.float32)   # NCHW like torch
    params = make_inception_params(k_p, Cin, c1, c2, c3, c4)

    fwd = jax.jit(inception_forward)
    out = jax.block_until_ready(fwd(x, params))

    ref = jax.block_until_ready(_ref_inception(x, params))

    assert out.shape == (N, c1 + c2[1] + c3[1] + c4, H, W), out.shape
    # bf16 MXU inputs with f32 accumulation on both paths -> diffs limited to
    # rare 1-ulp bf16 rounding ties; 2e-2 abs/rel is comfortably safe.
    np.testing.assert_allclose(np.asarray(out, dtype=np.float32),
                               np.asarray(ref, dtype=np.float32),
                               atol=2e-2, rtol=2e-2)
    print("KERNEL_OK")
</pallas_src>

<mosaic_0001>
module attributes {stable_mosaic.version = 11 : i64} {
  func.func @_mm_bias_relu_kernel(%arg0: i32, %arg1: memref<512x4xbf16, #tpu.memory_space<vmem>>, %arg2: memref<4x16xbf16, #tpu.memory_space<vmem>>, %arg3: memref<1x16xf32, #tpu.memory_space<vmem>>, %arg4: memref<512x16xbf16, #tpu.memory_space<vmem>>) attributes {dimension_semantics = [#tpu.dimension_semantics<parallel>], iteration_bounds = array<i64: 1>, scalar_prefetch = 0 : i64, scratch_operands = 0 : i64, tpu.core_type = #tpu.core_type<tc>, window_params = [{transform_indices = @transform_0, window_bounds = array<i64: 512, 4>}, {pipeline_mode = #tpu.pipeline_mode<synchronous>, transform_indices = @transform_1, window_bounds = array<i64: 4, 16>}, {pipeline_mode = #tpu.pipeline_mode<synchronous>, transform_indices = @transform_2, window_bounds = array<i64: 1, 16>}, {transform_indices = @transform_3, window_bounds = array<i64: 512, 16>}]} {
    %c0 = arith.constant 0 : index
    %c0_0 = arith.constant 0 : index
    %0 = vector.load %arg1[%c0, %c0_0] : memref<512x4xbf16, #tpu.memory_space<vmem>>, vector<512x4xbf16>
    %c0_1 = arith.constant 0 : index
    %c0_2 = arith.constant 0 : index
    %1 = vector.load %arg2[%c0_1, %c0_2] : memref<4x16xbf16, #tpu.memory_space<vmem>>, vector<4x16xbf16>
    %cst = arith.constant dense<0.000000e+00> : vector<512x16xf32>
    %2 = tpu.matmul %0, %1, %cst {dimension_numbers = #tpu.dot_dimension_numbers<[1], [0], [0], [1], [0, 0, 1, 1], [], []>} : vector<512x4xbf16>, vector<4x16xbf16>, vector<512x16xf32> -> vector<512x16xf32>
    %c0_3 = arith.constant 0 : index
    %c0_4 = arith.constant 0 : index
    %3 = vector.load %arg3[%c0_3, %c0_4] : memref<1x16xf32, #tpu.memory_space<vmem>>, vector<1x16xf32>
    %4 = vector.broadcast %3 : vector<1x16xf32> to vector<512x16xf32>
    %5 = arith.addf %2, %4 : vector<512x16xf32>
    %cst_5 = arith.constant 0.000000e+00 : f32
    %6 = vector.broadcast %cst_5 : f32 to vector<512x16xf32>
    %7 = arith.maximumf %5, %6 : vector<512x16xf32>
    %8 = arith.truncf %7 : vector<512x16xf32> to vector<512x16xbf16>
    %c0_6 = arith.constant 0 : index
    %c0_7 = arith.constant 0 : index
    %9 = vector.load %arg4[%c0_6, %c0_7] : memref<512x16xbf16, #tpu.memory_space<vmem>>, vector<512x16xbf16>
    tpu.vector_store %arg4[%c0_6, %c0_7], %8 {strides = array<i32>} : memref<512x16xbf16, #tpu.memory_space<vmem>>, vector<512x16xbf16>,
    return
  }
  func.func @transform_0(%arg0: i32) -> (i32, i32) {
    %c0_i32 = arith.constant 0 : i32
    %c0_i32_0 = arith.constant 0 : i32
    return %arg0, %c0_i32 : i32, i32
  }
  func.func @transform_1(%arg0: i32) -> (i32, i32) {
    %c0_i32 = arith.constant 0 : i32
    %c0_i32_0 = arith.constant 0 : i32
    %c0_i32_1 = arith.constant 0 : i32
    return %c0_i32, %c0_i32_0 : i32, i32
  }
  func.func @transform_2(%arg0: i32) -> (i32, i32) {
    %c0_i32 = arith.constant 0 : i32
    %c0_i32_0 = arith.constant 0 : i32
    %c0_i32_1 = arith.constant 0 : i32
    return %c0_i32, %c0_i32_0 : i32, i32
  }
  func.func @transform_3(%arg0: i32) -> (i32, i32) {
    %c0_i32 = arith.constant 0 : i32
    %c0_i32_0 = arith.constant 0 : i32
    return %arg0, %c0_i32 : i32, i32
  }
}

module attributes {stable_mosaic.version = 11 : i64} {
  func.func @_mm_bias_relu_kernel(%arg0: i32, %arg1: memref<512x100xbf16, #tpu.memory_space<vmem>>, %arg2: memref<100x8xbf16, #tpu.memory_space<vmem>>, %arg3: memref<1x8xf32, #tpu.memory_space<vmem>>, %arg4: memref<512x8xbf16, #tpu.memory_space<vmem>>) attributes {dimension_semantics = [#tpu.dimension_semantics<parallel>], iteration_bounds = array<i64: 1>, scalar_prefetch = 0 : i64, scratch_operands = 0 : i64, tpu.core_type = #tpu.core_type<tc>, window_params = [{transform_indices = @transform_0, window_bounds = array<i64: 512, 100>}, {pipeline_mode = #tpu.pipeline_mode<synchronous>, transform_indices = @transform_1, window_bounds = array<i64: 100, 8>}, {pipeline_mode = #tpu.pipeline_mode<synchronous>, transform_indices = @transform_2, window_bounds = array<i64: 1, 8>}, {transform_indices = @transform_3, window_bounds = array<i64: 512, 8>}]} {
    %c0 = arith.constant 0 : index
    %c0_0 = arith.constant 0 : index
    %0 = vector.load %arg1[%c0, %c0_0] : memref<512x100xbf16, #tpu.memory_space<vmem>>, vector<512x100xbf16>
    %c0_1 = arith.constant 0 : index
    %c0_2 = arith.constant 0 : index
    %1 = vector.load %arg2[%c0_1, %c0_2] : memref<100x8xbf16, #tpu.memory_space<vmem>>, vector<100x8xbf16>
    %cst = arith.constant dense<0.000000e+00> : vector<512x8xf32>
    %2 = tpu.matmul %0, %1, %cst {dimension_numbers = #tpu.dot_dimension_numbers<[1], [0], [0], [1], [0, 0, 1, 1], [], []>} : vector<512x100xbf16>, vector<100x8xbf16>, vector<512x8xf32> -> vector<512x8xf32>
    %c0_3 = arith.constant 0 : index
    %c0_4 = arith.constant 0 : index
    %3 = vector.load %arg3[%c0_3, %c0_4] : memref<1x8xf32, #tpu.memory_space<vmem>>, vector<1x8xf32>
    %4 = vector.broadcast %3 : vector<1x8xf32> to vector<512x8xf32>
    %5 = arith.addf %2, %4 : vector<512x8xf32>
    %cst_5 = arith.constant 0.000000e+00 : f32
    %6 = vector.broadcast %cst_5 : f32 to vector<512x8xf32>
    %7 = arith.maximumf %5, %6 : vector<512x8xf32>
    %8 = arith.truncf %7 : vector<512x8xf32> to vector<512x8xbf16>
    %c0_6 = arith.constant 0 : index
    %c0_7 = arith.constant 0 : index
    %9 = vector.load %arg4[%c0_6, %c0_7] : memref<512x8xbf16, #tpu.memory_space<vmem>>, vector<512x8xbf16>
    tpu.vector_store %arg4[%c0_6, %c0_7], %8 {strides = array<i32>} : memref<512x8xbf16, #tpu.memory_space<vmem>>, vector<512x8xbf16>,
    return
  }
  func.func @transform_0(%arg0: i32) -> (i32, i32) {
    %c0_i32 = arith.constant 0 : i32
    %c0_i32_0 = arith.constant 0 : i32
    return %arg0, %c0_i32 : i32, i32
  }
  func.func @transform_1(%arg0: i32) -> (i32, i32) {
    %c0_i32 = arith.constant 0 : i32
    %c0_i32_0 = arith.constant 0 : i32
    %c0_i32_1 = arith.constant 0 : i32
    return %c0_i32, %c0_i32_0 : i32, i32
  }
  func.func @transform_2(%arg0: i32) -> (i32, i32) {
    %c0_i32 = arith.constant 0 : i32
    %c0_i32_0 = arith.constant 0 : i32
    %c0_i32_1 = arith.constant 0 : i32
    return %c0_i32, %c0_i32_0 : i32, i32
  }
  func.func @transform_3(%arg0: i32) -> (i32, i32) {
    %c0_i32 = arith.constant 0 : i32
    %c0_i32_0 = arith.constant 0 : i32
    return %arg0, %c0_i32 : i32, i32
  }
}

module attributes {stable_mosaic.version = 11 : i64} {
  func.func @_mm_bias_relu_kernel(%arg0: i32, %arg1: memref<512x36xbf16, #tpu.memory_space<vmem>>, %arg2: memref<36x8xbf16, #tpu.memory_space<vmem>>, %arg3: memref<1x8xf32, #tpu.memory_space<vmem>>, %arg4: memref<512x8xbf16, #tpu.memory_space<vmem>>) attributes {dimension_semantics = [#tpu.dimension_semantics<parallel>], iteration_bounds = array<i64: 1>, scalar_prefetch = 0 : i64, scratch_operands = 0 : i64, tpu.core_type = #tpu.core_type<tc>, window_params = [{transform_indices = @transform_0, window_bounds = array<i64: 512, 36>}, {pipeline_mode = #tpu.pipeline_mode<synchronous>, transform_indices = @transform_1, window_bounds = array<i64: 36, 8>}, {pipeline_mode = #tpu.pipeline_mode<synchronous>, transform_indices = @transform_2, window_bounds = array<i64: 1, 8>}, {transform_indices = @transform_3, window_bounds = array<i64: 512, 8>}]} {
    %c0 = arith.constant 0 : index
    %c0_0 = arith.constant 0 : index
    %0 = vector.load %arg1[%c0, %c0_0] : memref<512x36xbf16, #tpu.memory_space<vmem>>, vector<512x36xbf16>
    %c0_1 = arith.constant 0 : index
    %c0_2 = arith.constant 0 : index
    %1 = vector.load %arg2[%c0_1, %c0_2] : memref<36x8xbf16, #tpu.memory_space<vmem>>, vector<36x8xbf16>
    %cst = arith.constant dense<0.000000e+00> : vector<512x8xf32>
    %2 = tpu.matmul %0, %1, %cst {dimension_numbers = #tpu.dot_dimension_numbers<[1], [0], [0], [1], [0, 0, 1, 1], [], []>} : vector<512x36xbf16>, vector<36x8xbf16>, vector<512x8xf32> -> vector<512x8xf32>
    %c0_3 = arith.constant 0 : index
    %c0_4 = arith.constant 0 : index
    %3 = vector.load %arg3[%c0_3, %c0_4] : memref<1x8xf32, #tpu.memory_space<vmem>>, vector<1x8xf32>
    %4 = vector.broadcast %3 : vector<1x8xf32> to vector<512x8xf32>
    %5 = arith.addf %2, %4 : vector<512x8xf32>
    %cst_5 = arith.constant 0.000000e+00 : f32
    %6 = vector.broadcast %cst_5 : f32 to vector<512x8xf32>
    %7 = arith.maximumf %5, %6 : vector<512x8xf32>
    %8 = arith.truncf %7 : vector<512x8xf32> to vector<512x8xbf16>
    %c0_6 = arith.constant 0 : index
    %c0_7 = arith.constant 0 : index
    %9 = vector.load %arg4[%c0_6, %c0_7] : memref<512x8xbf16, #tpu.memory_space<vmem>>, vector<512x8xbf16>
    tpu.vector_store %arg4[%c0_6, %c0_7], %8 {strides = array<i32>} : memref<512x8xbf16, #tpu.memory_space<vmem>>, vector<512x8xbf16>,
    return
  }
  func.func @transform_0(%arg0: i32) -> (i32, i32) {
    %c0_i32 = arith.constant 0 : i32
    %c0_i32_0 = arith.constant 0 : i32
    return %arg0, %c0_i32 : i32, i32
  }
  func.func @transform_1(%arg0: i32) -> (i32, i32) {
    %c0_i32 = arith.constant 0 : i32
    %c0_i32_0 = arith.constant 0 : i32
    %c0_i32_1 = arith.constant 0 : i32
    return %c0_i32, %c0_i32_0 : i32, i32
  }
  func.func @transform_2(%arg0: i32) -> (i32, i32) {
    %c0_i32 = arith.constant 0 : i32
    %c0_i32_0 = arith.constant 0 : i32
    %c0_i32_1 = arith.constant 0 : i32
    return %c0_i32, %c0_i32_0 : i32, i32
  }
  func.func @transform_3(%arg0: i32) -> (i32, i32) {
    %c0_i32 = arith.constant 0 : i32
    %c0_i32_0 = arith.constant 0 : i32
    return %arg0, %c0_i32 : i32, i32
  }
}

module attributes {stable_mosaic.version = 11 : i64} {
  func.func @_maxpool3x3_kernel(%arg0: i32, %arg1: memref<1x18x18x4xbf16, #tpu.memory_space<vmem>>, %arg2: memref<1x16x16x4xbf16, #tpu.memory_space<vmem>>) attributes {dimension_semantics = [#tpu.dimension_semantics<parallel>], iteration_bounds = array<i64: 2>, scalar_prefetch = 0 : i64, scratch_operands = 0 : i64, tpu.core_type = #tpu.core_type<tc>, window_params = [{transform_indices = @transform_0, window_bounds = array<i64: 1, 18, 18, 4>}, {transform_indices = @transform_1, window_bounds = array<i64: 1, 16, 16, 4>}]} {
    %c0 = arith.constant 0 : index
    %c0_0 = arith.constant 0 : index
    %c0_1 = arith.constant 0 : index
    %c0_2 = arith.constant 0 : index
    %0 = vector.load %arg1[%c0, %c0_0, %c0_1, %c0_2] : memref<1x18x18x4xbf16, #tpu.memory_space<vmem>>, vector<1x18x18x4xbf16>
    %1 = vector.extract_strided_slice %0 {offsets = [0, 0, 0, 0], sizes = [1, 18, 16, 4], strides = [1, 1, 1, 1]} : vector<1x18x18x4xbf16> to vector<1x18x16x4xbf16>
    %2 = vector.extract_strided_slice %0 {offsets = [0, 0, 1, 0], sizes = [1, 18, 16, 4], strides = [1, 1, 1, 1]} : vector<1x18x18x4xbf16> to vector<1x18x16x4xbf16>
    %3 = arith.maximumf %1, %2 : vector<1x18x16x4xbf16>
    %4 = vector.extract_strided_slice %0 {offsets = [0, 0, 2, 0], sizes = [1, 18, 16, 4], strides = [1, 1, 1, 1]} : vector<1x18x18x4xbf16> to vector<1x18x16x4xbf16>
    %5 = arith.maximumf %3, %4 : vector<1x18x16x4xbf16>
    %6 = vector.extract_strided_slice %5 {offsets = [0, 0, 0, 0], sizes = [1, 16, 16, 4], strides = [1, 1, 1, 1]} : vector<1x18x16x4xbf16> to vector<1x16x16x4xbf16>
    %7 = vector.extract_strided_slice %5 {offsets = [0, 1, 0, 0], sizes = [1, 16, 16, 4], strides = [1, 1, 1, 1]} : vector<1x18x16x4xbf16> to vector<1x16x16x4xbf16>
    %8 = arith.maximumf %6, %7 : vector<1x16x16x4xbf16>
    %9 = vector.extract_strided_slice %5 {offsets = [0, 2, 0, 0], sizes = [1, 16, 16, 4], strides = [1, 1, 1, 1]} : vector<1x18x16x4xbf16> to vector<1x16x16x4xbf16>
    %10 = arith.maximumf %8, %9 : vector<1x16x16x4xbf16>
    %c0_3 = arith.constant 0 : index
    %c0_4 = arith.constant 0 : index
    %c0_5 = arith.constant 0 : index
    %c0_6 = arith.constant 0 : index
    %11 = vector.load %arg2[%c0_3, %c0_4, %c0_5, %c0_6] : memref<1x16x16x4xbf16, #tpu.memory_space<vmem>>, vector<1x16x16x4xbf16>
    tpu.vector_store %arg2[%c0_3, %c0_4, %c0_5, %c0_6], %10 {strides = array<i32>} : memref<1x16x16x4xbf16, #tpu.memory_space<vmem>>, vector<1x16x16x4xbf16>,
    return
  }
  func.func @transform_0(%arg0: i32) -> (i32, i32, i32, i32) {
    %c0_i32 = arith.constant 0 : i32
    %c0_i32_0 = arith.constant 0 : i32
    %c0_i32_1 = arith.constant 0 : i32
    %c0_i32_2 = arith.constant 0 : i32
    return %arg0, %c0_i32, %c0_i32_0, %c0_i32_1 : i32, i32, i32, i32
  }
  func.func @transform_1(%arg0: i32) -> (i32, i32, i32, i32) {
    %c0_i32 = arith.constant 0 : i32
    %c0_i32_0 = arith.constant 0 : i32
    %c0_i32_1 = arith.constant 0 : i32
    %c0_i32_2 = arith.constant 0 : i32
    return %arg0, %c0_i32, %c0_i32_0, %c0_i32_1 : i32, i32, i32, i32
  }
}

module attributes {stable_mosaic.version = 11 : i64} {
  func.func @_mm_bias_relu_kernel(%arg0: i32, %arg1: memref<512x4xbf16, #tpu.memory_space<vmem>>, %arg2: memref<4x8xbf16, #tpu.memory_space<vmem>>, %arg3: memref<1x8xf32, #tpu.memory_space<vmem>>, %arg4: memref<512x8xbf16, #tpu.memory_space<vmem>>) attributes {dimension_semantics = [#tpu.dimension_semantics<parallel>], iteration_bounds = array<i64: 1>, scalar_prefetch = 0 : i64, scratch_operands = 0 : i64, tpu.core_type = #tpu.core_type<tc>, window_params = [{transform_indices = @transform_0, window_bounds = array<i64: 512, 4>}, {pipeline_mode = #tpu.pipeline_mode<synchronous>, transform_indices = @transform_1, window_bounds = array<i64: 4, 8>}, {pipeline_mode = #tpu.pipeline_mode<synchronous>, transform_indices = @transform_2, window_bounds = array<i64: 1, 8>}, {transform_indices = @transform_3, window_bounds = array<i64: 512, 8>}]} {
    %c0 = arith.constant 0 : index
    %c0_0 = arith.constant 0 : index
    %0 = vector.load %arg1[%c0, %c0_0] : memref<512x4xbf16, #tpu.memory_space<vmem>>, vector<512x4xbf16>
    %c0_1 = arith.constant 0 : index
    %c0_2 = arith.constant 0 : index
    %1 = vector.load %arg2[%c0_1, %c0_2] : memref<4x8xbf16, #tpu.memory_space<vmem>>, vector<4x8xbf16>
    %cst = arith.constant dense<0.000000e+00> : vector<512x8xf32>
    %2 = tpu.matmul %0, %1, %cst {dimension_numbers = #tpu.dot_dimension_numbers<[1], [0], [0], [1], [0, 0, 1, 1], [], []>} : vector<512x4xbf16>, vector<4x8xbf16>, vector<512x8xf32> -> vector<512x8xf32>
    %c0_3 = arith.constant 0 : index
    %c0_4 = arith.constant 0 : index
    %3 = vector.load %arg3[%c0_3, %c0_4] : memref<1x8xf32, #tpu.memory_space<vmem>>, vector<1x8xf32>
    %4 = vector.broadcast %3 : vector<1x8xf32> to vector<512x8xf32>
    %5 = arith.addf %2, %4 : vector<512x8xf32>
    %cst_5 = arith.constant 0.000000e+00 : f32
    %6 = vector.broadcast %cst_5 : f32 to vector<512x8xf32>
    %7 = arith.maximumf %5, %6 : vector<512x8xf32>
    %8 = arith.truncf %7 : vector<512x8xf32> to vector<512x8xbf16>
    %c0_6 = arith.constant 0 : index
    %c0_7 = arith.constant 0 : index
    %9 = vector.load %arg4[%c0_6, %c0_7] : memref<512x8xbf16, #tpu.memory_space<vmem>>, vector<512x8xbf16>
    tpu.vector_store %arg4[%c0_6, %c0_7], %8 {strides = array<i32>} : memref<512x8xbf16, #tpu.memory_space<vmem>>, vector<512x8xbf16>,
    return
  }
  func.func @transform_0(%arg0: i32) -> (i32, i32) {
    %c0_i32 = arith.constant 0 : i32
    %c0_i32_0 = arith.constant 0 : i32
    return %arg0, %c0_i32 : i32, i32
  }
  func.func @transform_1(%arg0: i32) -> (i32, i32) {
    %c0_i32 = arith.constant 0 : i32
    %c0_i32_0 = arith.constant 0 : i32
    %c0_i32_1 = arith.constant 0 : i32
    return %c0_i32, %c0_i32_0 : i32, i32
  }
  func.func @transform_2(%arg0: i32) -> (i32, i32) {
    %c0_i32 = arith.constant 0 : i32
    %c0_i32_0 = arith.constant 0 : i32
    %c0_i32_1 = arith.constant 0 : i32
    return %c0_i32, %c0_i32_0 : i32, i32
  }
  func.func @transform_3(%arg0: i32) -> (i32, i32) {
    %c0_i32 = arith.constant 0 : i32
    %c0_i32_0 = arith.constant 0 : i32
    return %arg0, %c0_i32 : i32, i32
  }
}

</mosaic_0001>

<llo_original>
// kernel: inception_forward.5
$region0: #{inception_forward.5}
  #allocation0 [shape = 'u32[]', space=smem, size = 0x4, offset = 0x4, fixed_abs, tag = 'smem constant byte address 0x4 - core index']
  #allocation1 [shape = 'u32[144,128]{1,0:T(1,128)}', space=vmem, size = 0x12000, scoped, tag = 'internal scratch']
  %s0 = inlined_call_operand.vmem [shape: bf16[512,4], index: 0, kind: input, shape index: {}]
  %s1 = inlined_call_operand.vmem [shape: bf16[4,16], index: 1, kind: input, shape index: {}]
  %s2 = inlined_call_operand.vmem [shape: f32[1,16], index: 2, kind: input, shape index: {}]
  %s3 = inlined_call_operand.vmem [shape: bf16[512,16], index: 3, kind: output, shape index: {}]
  %s4 = sld [smem:[#allocation0]]
  $region22: #{inception_forward.5} parent=0
    _
  %s6 = ssub.s32 1, %s4
  %s7 = scalar_select 0, %s6, %s4
  // Predicated region
  $region2: #{inception_forward.5} parent=0 // pred_check
    _
  $region3: #{inception_forward.5} parent=0 // pred_check_branch
    %9 = sbr.rel (0) target = $region5
  $region4: #{inception_forward.5} parent=0 // pred_region
    _
  $region5: #{inception_forward.5} parent=0 // pred_fallthru
    _
  // Predicated region
  $region6: #{inception_forward.5} parent=0 // pred_check
    _
  $region7: #{inception_forward.5} parent=0 // pred_check_branch
    %11 = sbr.rel (0) target = $region9
  $region8: #{inception_forward.5} parent=0 // pred_region
    _
  $region9: #{inception_forward.5} parent=0 // pred_fallthru
    _
  // Predicated region
  $region10: #{inception_forward.5} parent=0 // pred_check
    _
  $region11: #{inception_forward.5} parent=0 // pred_check_branch
    %13 = sbr.rel (0) target = $region13
  $region12: #{inception_forward.5} parent=0 // pred_region
    _
  $region13: #{inception_forward.5} parent=0 // pred_fallthru
    _
  %v15 = vld [vmem:[%s0] sm:$0xf]
  %v16 = vld [vmem:[%s0 + $0x4] sm:$0xf]
  %v17 = vld [vmem:[%s0 + $0x8] sm:$0xf]
  %v18 = vld [vmem:[%s0 + $0xc] sm:$0xf]
  %v19 = vld [vmem:[%s0 + $0x10] sm:$0xf]
  %v20 = vld [vmem:[%s0 + $0x14] sm:$0xf]
  %v21 = vld [vmem:[%s0 + $0x18] sm:$0xf]
  %v22 = vld [vmem:[%s0 + $0x1c] sm:$0xf]
  %v23 = vld [vmem:[%s0 + $0x20] sm:$0xf]
  %v24 = vld [vmem:[%s0 + $0x24] sm:$0xf]
  %v25 = vld [vmem:[%s0 + $0x28] sm:$0xf]
  %v26 = vld [vmem:[%s0 + $0x2c] sm:$0xf]
  %v27 = vld [vmem:[%s0 + $0x30] sm:$0xf]
  %v28 = vld [vmem:[%s0 + $0x34] sm:$0xf]
  %v29 = vld [vmem:[%s0 + $0x38] sm:$0xf]
  %v30 = vld [vmem:[%s0 + $0x3c] sm:$0xf]
  %v31 = vld [vmem:[%s0 + $0x40] sm:$0xf]
  %v32 = vld [vmem:[%s0 + $0x44] sm:$0xf]
  %v33 = vld [vmem:[%s0 + $0x48] sm:$0xf]
  %v34 = vld [vmem:[%s0 + $0x4c] sm:$0xf]
  %v35 = vld [vmem:[%s0 + $0x50] sm:$0xf]
  %v36 = vld [vmem:[%s0 + $0x54] sm:$0xf]
  %v37 = vld [vmem:[%s0 + $0x58] sm:$0xf]
  %v38 = vld [vmem:[%s0 + $0x5c] sm:$0xf]
  %v39 = vld [vmem:[%s0 + $0x60] sm:$0xf]
  %v40 = vld [vmem:[%s0 + $0x64] sm:$0xf]
  %v41 = vld [vmem:[%s0 + $0x68] sm:$0xf]
  %v42 = vld [vmem:[%s0 + $0x6c] sm:$0xf]
  %v43 = vld [vmem:[%s0 + $0x70] sm:$0xf]
  %v44 = vld [vmem:[%s0 + $0x74] sm:$0xf]
  %v45 = vld [vmem:[%s0 + $0x78] sm:$0xf]
  %v46 = vld [vmem:[%s0 + $0x7c] sm:$0xf]
  %v47 = vld [vmem:[%s0 + $0x80] sm:$0xf]
  %v48 = vld [vmem:[%s0 + $0x84] sm:$0xf]
  %v49 = vld [vmem:[%s0 + $0x88] sm:$0xf]
  %v50 = vld [vmem:[%s0 + $0x8c] sm:$0xf]
  %v51 = vld [vmem:[%s0 + $0x90] sm:$0xf]
  %v52 = vld [vmem:[%s0 + $0x94] sm:$0xf]
  %v53 = vld [vmem:[%s0 + $0x98] sm:$0xf]
  %v54 = vld [vmem:[%s0 + $0x9c] sm:$0xf]
  %v55 = vld [vmem:[%s0 + $0xa0] sm:$0xf]
  %v56 = vld [vmem:[%s0 + $0xa4] sm:$0xf]
  %v57 = vld [vmem:[%s0 + $0xa8] sm:$0xf]
  %v58 = vld [vmem:[%s0 + $0xac] sm:$0xf]
  %v59 = vld [vmem:[%s0 + $0xb0] sm:$0xf]
  %v60 = vld [vmem:[%s0 + $0xb4] sm:$0xf]
  %v61 = vld [vmem:[%s0 + $0xb8] sm:$0xf]
  %v62 = vld [vmem:[%s0 + $0xbc] sm:$0xf]
  %v63 = vld [vmem:[%s0 + $0xc0] sm:$0xf]
  %v64 = vld [vmem:[%s0 + $0xc4] sm:$0xf]
  %v65 = vld [vmem:[%s0 + $0xc8] sm:$0xf]
  %v66 = vld [vmem:[%s0 + $0xcc] sm:$0xf]
  %v67 = vld [vmem:[%s0 + $0xd0] sm:$0xf]
  %v68 = vld [vmem:[%s0 + $0xd4] sm:$0xf]
  %v69 = vld [vmem:[%s0 + $0xd8] sm:$0xf]
  %v70 = vld [vmem:[%s0 + $0xdc] sm:$0xf]
  %v71 = vld [vmem:[%s0 + $0xe0] sm:$0xf]
  %v72 = vld [vmem:[%s0 + $0xe4] sm:$0xf]
  %v73 = vld [vmem:[%s0 + $0xe8] sm:$0xf]
  %v74 = vld [vmem:[%s0 + $0xec] sm:$0xf]
  %v75 = vld [vmem:[%s0 + $0xf0] sm:$0xf]
  %v76 = vld [vmem:[%s0 + $0xf4] sm:$0xf]
  %v77 = vld [vmem:[%s0 + $0xf8] sm:$0xf]
  %v78 = vld [vmem:[%s0 + $0xfc] sm:$0xf]
  %v79 = vld [vmem:[%s1] sm:$0x3]
  %v80 = vld [vmem:[%s2] sm:$0x1]
  %v82 = vlaneseq
  %v83 = vshrl.u32 %v82, 7
  %v84 = vsub.s32 0, %v83
  %v85 = vrot.slane %v80, %v84
  %v151 = vunpack.c.l.b16 %v15
  %v152 = vunpack.c.l.b16 %v16
  %v153 = vunpack.c.l.b16 %v17
  %v154 = vunpack.c.l.b16 %v18
  %v155 = vunpack.c.l.b16 %v19
  %v156 = vunpack.c.l.b16 %v20
  %v157 = vunpack.c.l.b16 %v21
  %v158 = vunpack.c.l.b16 %v22
  %v159 = vunpack.c.l.b16 %v23
  %v160 = vunpack.c.l.b16 %v24
  %v161 = vunpack.c.l.b16 %v25
  %v162 = vunpack.c.l.b16 %v26
  %v163 = vunpack.c.l.b16 %v27
  %v164 = vunpack.c.l.b16 %v28
  %v165 = vunpack.c.l.b16 %v29
  %v166 = vunpack.c.l.b16 %v30
  %v167 = vunpack.c.l.b16 %v31
  %v168 = vunpack.c.l.b16 %v32
  %v169 = vunpack.c.l.b16 %v33
  %v170 = vunpack.c.l.b16 %v34
  %v171 = vunpack.c.l.b16 %v35
  %v172 = vunpack.c.l.b16 %v36
  %v173 = vunpack.c.l.b16 %v37
  %v174 = vunpack.c.l.b16 %v38
  %v175 = vunpack.c.l.b16 %v39
  %v176 = vunpack.c.l.b16 %v40
  %v177 = vunpack.c.l.b16 %v41
  %v178 = vunpack.c.l.b16 %v42
  %v179 = vunpack.c.l.b16 %v43
  %v180 = vunpack.c.l.b16 %v44
  %v181 = vunpack.c.l.b16 %v45
  %v182 = vunpack.c.l.b16 %v46
  %v183 = vunpack.c.l.b16 %v47
  %v184 = vunpack.c.l.b16 %v48
  %v185 = vunpack.c.l.b16 %v49
  %v186 = vunpack.c.l.b16 %v50
  %v187 = vunpack.c.l.b16 %v51
  %v188 = vunpack.c.l.b16 %v52
  %v189 = vunpack.c.l.b16 %v53
  %v190 = vunpack.c.l.b16 %v54
  %v191 = vunpack.c.l.b16 %v55
  %v192 = vunpack.c.l.b16 %v56
  %v193 = vunpack.c.l.b16 %v57
  %v194 = vunpack.c.l.b16 %v58
  %v195 = vunpack.c.l.b16 %v59
  %v196 = vunpack.c.l.b16 %v60
  %v197 = vunpack.c.l.b16 %v61
  %v198 = vunpack.c.l.b16 %v62
  %v199 = vunpack.c.l.b16 %v63
  %v200 = vunpack.c.l.b16 %v64
  %v201 = vunpack.c.l.b16 %v65
  %v202 = vunpack.c.l.b16 %v66
  %v203 = vunpack.c.l.b16 %v67
  %v204 = vunpack.c.l.b16 %v68
  %v205 = vunpack.c.l.b16 %v69
  %v206 = vunpack.c.l.b16 %v70
  %v207 = vunpack.c.l.b16 %v71
  %v208 = vunpack.c.l.b16 %v72
  %v209 = vunpack.c.l.b16 %v73
  %v210 = vunpack.c.l.b16 %v74
  %v211 = vunpack.c.l.b16 %v75
  %v212 = vunpack.c.l.b16 %v76
  %v213 = vunpack.c.l.b16 %v77
  %v214 = vunpack.c.l.b16 %v78
  %v215 = vpack.c.b16 %v152, %v151
  %v216 = vpack.c.b16 %v154, %v153
  %v217 = vpack.c.b16 %v156, %v155
  %v218 = vpack.c.b16 %v158, %v157
  %v219 = vpack.c.b16 %v160, %v159
  %v220 = vpack.c.b16 %v162, %v161
  %v221 = vpack.c.b16 %v164, %v163
  %v222 = vpack.c.b16 %v166, %v165
  %v223 = vpack.c.b16 %v168, %v167
  %v224 = vpack.c.b16 %v170, %v169
  %v225 = vpack.c.b16 %v172, %v171
  %v226 = vpack.c.b16 %v174, %v173
  %v227 = vpack.c.b16 %v176, %v175
  %v228 = vpack.c.b16 %v178, %v177
  %v229 = vpack.c.b16 %v180, %v179
  %v230 = vpack.c.b16 %v182, %v181
  %v231 = vpack.c.b16 %v184, %v183
  %v232 = vpack.c.b16 %v186, %v185
  %v233 = vpack.c.b16 %v188, %v187
  %v234 = vpack.c.b16 %v190, %v189
  %v235 = vpack.c.b16 %v192, %v191
  %v236 = vpack.c.b16 %v194, %v193
  %v237 = vpack.c.b16 %v196, %v195
  %v238 = vpack.c.b16 %v198, %v197
  %v239 = vpack.c.b16 %v200, %v199
  %v240 = vpack.c.b16 %v202, %v201
  %v241 = vpack.c.b16 %v204, %v203
  %v242 = vpack.c.b16 %v206, %v205
  %v243 = vpack.c.b16 %v208, %v207
  %v244 = vpack.c.b16 %v210, %v209
  %v245 = vpack.c.b16 %v212, %v211
  %v246 = vpack.c.b16 %v214, %v213
  %vm247 = vcmask 31744
  %v249 = vsel %vm247, %v215, 0
  %v252 = vsel %vm247, %v216, 0
  %v255 = vsel %vm247, %v217, 0
  %v258 = vsel %vm247, %v218, 0
  %v261 = vsel %vm247, %v219, 0
  %v264 = vsel %vm247, %v220, 0
  %v267 = vsel %vm247, %v221, 0
  %v270 = vsel %vm247, %v222, 0
  %v273 = vsel %vm247, %v223, 0
  %v276 = vsel %vm247, %v224, 0
  %v279 = vsel %vm247, %v225, 0
  %v282 = vsel %vm247, %v226, 0
  %v285 = vsel %vm247, %v227, 0
  %v288 = vsel %vm247, %v228, 0
  %v291 = vsel %vm247, %v229, 0
  %v294 = vsel %vm247, %v230, 0
  %v297 = vsel %vm247, %v231, 0
  %v300 = vsel %vm247, %v232, 0
  %v303 = vsel %vm247, %v233, 0
  %v306 = vsel %vm247, %v234, 0
  %v309 = vsel %vm247, %v235, 0
  %v312 = vsel %vm247, %v236, 0
  %v315 = vsel %vm247, %v237, 0
  %v318 = vsel %vm247, %v238, 0
  %v321 = vsel %vm247, %v239, 0
  %v324 = vsel %vm247, %v240, 0
  %v327 = vsel %vm247, %v241, 0
  %v330 = vsel %vm247, %v242, 0
  %v333 = vsel %vm247, %v243, 0
  %v336 = vsel %vm247, %v244, 0
  %v339 = vsel %vm247, %v245, 0
  %v342 = vsel %vm247, %v246, 0
  %vm344 = vcmask 1041408
  %v346 = vsel %vm344, %v79, 0
  %348 = vmatprep.subr.bf16.mxu0 0
  %349 = vmatpush1.bf16.msra.mxu0 %v346
  %350 = vmatprep.subr.bf16.mxu0 0
  %351 = vmatpush1.bf16.msra.mxu0 0
  %352 = vmatprep.subr.bf16.mxu0 0
  %353 = vmatpush1.bf16.msra.mxu0 0
  %354 = vmatprep.subr.bf16.mxu0 0
  %355 = vmatpush1.bf16.msra.mxu0 0
  %356 = vmatprep.subr.bf16.mxu0 0
  %357 = vmatpush1.bf16.msra.mxu0 0
  %358 = vmatprep.subr.bf16.mxu0 0
  %359 = vmatpush1.bf16.msra.mxu0 0
  %360 = vmatprep.subr.bf16.mxu0 0
  %361 = vmatpush1.bf16.msra.mxu0 0
  %362 = vmatprep.subr.bf16.mxu0 0
  %363 = vmatpush1.bf16.msra.mxu0 0
  %364 = vmatprep.subr.bf16.mxu0 0
  %365 = vmatpush1.bf16.msra.mxu0 0
  %366 = vmatprep.subr.bf16.mxu0 0
  %367 = vmatpush1.bf16.msra.mxu0 0
  %368 = vmatprep.subr.bf16.mxu0 0
  %369 = vmatpush1.bf16.msra.mxu0 0
  %370 = vmatprep.subr.bf16.mxu0 0
  %371 = vmatpush1.bf16.msra.mxu0 0
  %372 = vmatprep.subr.bf16.mxu0 0
  %373 = vmatpush1.bf16.msra.mxu0 0
  %374 = vmatprep.subr.bf16.mxu0 0
  %375 = vmatpush1.bf16.msra.mxu0 0
  %376 = vmatprep.subr.bf16.mxu0 0
  %377 = vmatpush1.bf16.msra.mxu0 0
  %378 = vmatprep.subr.bf16.mxu0 0
  %379 = vmatpush1.bf16.msra.mxu0 0
  %380 = vmatprep.mubr.bf16.mxu0 0
  %381 = vmatmul.mubr.bf16.gmra.mrb[0].mxu0 %v249
  %v382 = vpop.f32.mrb[0].mxu0
  %v383 = vadd.f32 %v85, %v382
  %v384 = vpop.f32.mrb[0].mxu0
  %v385 = vpop.f32.mrb[0].mxu0
  %v386 = vadd.f32 %v85, %v385
  %v387 = vpop.f32.mrb[0].mxu0
  %388 = vmatprep.mubr.bf16.mxu0 0
  %389 = vmatmul.mubr.bf16.gmra.mrb[0].mxu0 %v252
  %v390 = vpop.f32.mrb[0].mxu0
  %v391 = vadd.f32 %v85, %v390
  %v392 = vpop.f32.mrb[0].mxu0
  %v393 = vpop.f32.mrb[0].mxu0
  %v394 = vadd.f32 %v85, %v393
  %v395 = vpop.f32.mrb[0].mxu0
  %396 = vmatprep.mubr.bf16.mxu0 0
  %397 = vmatmul.mubr.bf16.gmra.mrb[0].mxu0 %v255
  %v398 = vpop.f32.mrb[0].mxu0
  %v399 = vadd.f32 %v85, %v398
  %v400 = vpop.f32.mrb[0].mxu0
  %v401 = vpop.f32.mrb[0].mxu0
  %v402 = vadd.f32 %v85, %v401
  %v403 = vpop.f32.mrb[0].mxu0
  %404 = vmatprep.mubr.bf16.mxu0 0
  %405 = vmatmul.mubr.bf16.gmra.mrb[0].mxu0 %v258
  %v406 = vpop.f32.mrb[0].mxu0
  %v407 = vadd.f32 %v85, %v406
  %v408 = vpop.f32.mrb[0].mxu0
  %v409 = vpop.f32.mrb[0].mxu0
  %v410 = vadd.f32 %v85, %v409
  %v411 = vpop.f32.mrb[0].mxu0
  %412 = vmatprep.mubr.bf16.mxu0 0
  %413 = vmatmul.mubr.bf16.gmra.mrb[0].mxu0 %v261
  %v414 = vpop.f32.mrb[0].mxu0
  %v415 = vadd.f32 %v85, %v414
  %v416 = vpop.f32.mrb[0].mxu0
  %v417 = vpop.f32.mrb[0].mxu0
  %v418 = vadd.f32 %v85, %v417
  %v419 = vpop.f32.mrb[0].mxu0
  %420 = vmatprep.mubr.bf16.mxu0 0
  %421 = vmatmul.mubr.bf16.gmra.mrb[0].mxu0 %v264
  %v422 = vpop.f32.mrb[0].mxu0
  %v423 = vadd.f32 %v85, %v422
  %v424 = vpop.f32.mrb[0].mxu0
  %v425 = vpop.f32.mrb[0].mxu0
  %v426 = vadd.f32 %v85, %v425
  %v427 = vpop.f32.mrb[0].mxu0
  %428 = vmatprep.mubr.bf16.mxu0 0
  %429 = vmatmul.mubr.bf16.gmra.mrb[0].mxu0 %v267
  %v430 = vpop.f32.mrb[0].mxu0
  %v431 = vadd.f32 %v85, %v430
  %v432 = vpop.f32.mrb[0].mxu0
  %v433 = vpop.f32.mrb[0].mxu0
  %v434 = vadd.f32 %v85, %v433
  %v435 = vpop.f32.mrb[0].mxu0
  %436 = vmatprep.mubr.bf16.mxu0 0
  %437 = vmatmul.mubr.bf16.gmra.mrb[0].mxu0 %v270
  %v438 = vpop.f32.mrb[0].mxu0
  %v439 = vadd.f32 %v85, %v438
  %v440 = vpop.f32.mrb[0].mxu0
  %v441 = vpop.f32.mrb[0].mxu0
  %v442 = vadd.f32 %v85, %v441
  %v443 = vpop.f32.mrb[0].mxu0
  %444 = vmatprep.mubr.bf16.mxu0 0
  %445 = vmatmul.mubr.bf16.gmra.mrb[0].mxu0 %v273
  %v446 = vpop.f32.mrb[0].mxu0
  %v447 = vadd.f32 %v85, %v446
  %v448 = vpop.f32.mrb[0].mxu0
  %v449 = vpop.f32.mrb[0].mxu0
  %v450 = vadd.f32 %v85, %v449
  %v451 = vpop.f32.mrb[0].mxu0
  %452 = vmatprep.mubr.bf16.mxu0 0
  %453 = vmatmul.mubr.bf16.gmra.mrb[0].mxu0 %v276
  %v454 = vpop.f32.mrb[0].mxu0
  %v455 = vadd.f32 %v85, %v454
  %v456 = vpop.f32.mrb[0].mxu0
  %v457 = vpop.f32.mrb[0].mxu0
  %v458 = vadd.f32 %v85, %v457
  %v459 = vpop.f32.mrb[0].mxu0
  %460 = vmatprep.mubr.bf16.mxu0 0
  %461 = vmatmul.mubr.bf16.gmra.mrb[0].mxu0 %v279
  %v462 = vpop.f32.mrb[0].mxu0
  %v463 = vadd.f32 %v85, %v462
  %v464 = vpop.f32.mrb[0].mxu0
  %v465 = vpop.f32.mrb[0].mxu0
  %v466 = vadd.f32 %v85, %v465
  %v467 = vpop.f32.mrb[0].mxu0
  %468 = vmatprep.mubr.bf16.mxu0 0
  %469 = vmatmul.mubr.bf16.gmra.mrb[0].mxu0 %v282
  %v470 = vpop.f32.mrb[0].mxu0
  %v471 = vadd.f32 %v85, %v470
  %v472 = vpop.f32.mrb[0].mxu0
  %v473 = vpop.f32.mrb[0].mxu0
  %v474 = vadd.f32 %v85, %v473
  %v475 = vpop.f32.mrb[0].mxu0
  %476 = vmatprep.mubr.bf16.mxu0 0
  %477 = vmatmul.mubr.bf16.gmra.mrb[0].mxu0 %v285
  %v478 = vpop.f32.mrb[0].mxu0
  %v479 = vadd.f32 %v85, %v478
  %v480 = vpop.f32.mrb[0].mxu0
  %v481 = vpop.f32.mrb[0].mxu0
  %v482 = vadd.f32 %v85, %v481
  %v483 = vpop.f32.mrb[0].mxu0
  %484 = vmatprep.mubr.bf16.mxu0 0
  %485 = vmatmul.mubr.bf16.gmra.mrb[0].mxu0 %v288
  %v486 = vpop.f32.mrb[0].mxu0
  %v487 = vadd.f32 %v85, %v486
  %v488 = vpop.f32.mrb[0].mxu0
  %v489 = vpop.f32.mrb[0].mxu0
  %v490 = vadd.f32 %v85, %v489
  %v491 = vpop.f32.mrb[0].mxu0
  %492 = vmatprep.mubr.bf16.mxu0 0
  %493 = vmatmul.mubr.bf16.gmra.mrb[0].mxu0 %v291
  %v494 = vpop.f32.mrb[0].mxu0
  %v495 = vadd.f32 %v85, %v494
  %v496 = vpop.f32.mrb[0].mxu0
  %v497 = vpop.f32.mrb[0].mxu0
  %v498 = vadd.f32 %v85, %v497
  %v499 = vpop.f32.mrb[0].mxu0
  %500 = vmatprep.mubr.bf16.mxu0 0
  %501 = vmatmul.mubr.bf16.gmra.mrb[0].mxu0 %v294
  %v502 = vpop.f32.mrb[0].mxu0
  %v503 = vadd.f32 %v85, %v502
  %v504 = vpop.f32.mrb[0].mxu0
  %v505 = vpop.f32.mrb[0].mxu0
  %v506 = vadd.f32 %v85, %v505
  %v507 = vpop.f32.mrb[0].mxu0
  %508 = vmatprep.mubr.bf16.mxu0 0
  %509 = vmatmul.mubr.bf16.gmra.mrb[0].mxu0 %v297
  %v510 = vpop.f32.mrb[0].mxu0
  %v511 = vadd.f32 %v85, %v510
  %v512 = vpop.f32.mrb[0].mxu0
  %v513 = vpop.f32.mrb[0].mxu0
  %v514 = vadd.f32 %v85, %v513
  %v515 = vpop.f32.mrb[0].mxu0
  %516 = vmatprep.mubr.bf16.mxu0 0
  %517 = vmatmul.mubr.bf16.gmra.mrb[0].mxu0 %v300
  %v518 = vpop.f32.mrb[0].mxu0
  %v519 = vadd.f32 %v85, %v518
  %v520 = vpop.f32.mrb[0].mxu0
  %v521 = vpop.f32.mrb[0].mxu0
  %v522 = vadd.f32 %v85, %v521
  %v523 = vpop.f32.mrb[0].mxu0
  %524 = vmatprep.mubr.bf16.mxu0 0
  %525 = vmatmul.mubr.bf16.gmra.mrb[0].mxu0 %v303
  %v526 = vpop.f32.mrb[0].mxu0
  %v527 = vadd.f32 %v85, %v526
  %v528 = vpop.f32.mrb[0].mxu0
  %v529 = vpop.f32.mrb[0].mxu0
  %v530 = vadd.f32 %v85, %v529
  %v531 = vpop.f32.mrb[0].mxu0
  %532 = vmatprep.mubr.bf16.mxu0 0
  %533 = vmatmul.mubr.bf16.gmra.mrb[0].mxu0 %v306
  %v534 = vpop.f32.mrb[0].mxu0
  %v535 = vadd.f32 %v85, %v534
  %v536 = vpop.f32.mrb[0].mxu0
  %v537 = vpop.f32.mrb[0].mxu0
  %v538 = vadd.f32 %v85, %v537
  %v539 = vpop.f32.mrb[0].mxu0
  %540 = vmatprep.mubr.bf16.mxu0 0
  %541 = vmatmul.mubr.bf16.gmra.mrb[0].mxu0 %v309
  %v542 = vpop.f32.mrb[0].mxu0
  %v543 = vadd.f32 %v85, %v542
  %v544 = vpop.f32.mrb[0].mxu0
  %v545 = vpop.f32.mrb[0].mxu0
  %v546 = vadd.f32 %v85, %v545
  %v547 = vpop.f32.mrb[0].mxu0
  %548 = vmatprep.mubr.bf16.mxu0 0
  %549 = vmatmul.mubr.bf16.gmra.mrb[0].mxu0 %v312
  %v550 = vpop.f32.mrb[0].mxu0
  %v551 = vadd.f32 %v85, %v550
  %v552 = vpop.f32.mrb[0].mxu0
  %v553 = vpop.f32.mrb[0].mxu0
  %v554 = vadd.f32 %v85, %v553
  %v555 = vpop.f32.mrb[0].mxu0
  %556 = vmatprep.mubr.bf16.mxu0 0
  %557 = vmatmul.mubr.bf16.gmra.mrb[0].mxu0 %v315
  %v558 = vpop.f32.mrb[0].mxu0
  %v559 = vadd.f32 %v85, %v558
  %v560 = vpop.f32.mrb[0].mxu0
  %v561 = vpop.f32.mrb[0].mxu0
  %v562 = vadd.f32 %v85, %v561
  %v563 = vpop.f32.mrb[0].mxu0
  %564 = vmatprep.mubr.bf16.mxu0 0
  %565 = vmatmul.mubr.bf16.gmra.mrb[0].mxu0 %v318
  %v566 = vpop.f32.mrb[0].mxu0
  %v567 = vadd.f32 %v85, %v566
  %v568 = vpop.f32.mrb[0].mxu0
  %v569 = vpop.f32.mrb[0].mxu0
  %v570 = vadd.f32 %v85, %v569
  %v571 = vpop.f32.mrb[0].mxu0
  %572 = vmatprep.mubr.bf16.mxu0 0
  %573 = vmatmul.mubr.bf16.gmra.mrb[0].mxu0 %v321
  %v574 = vpop.f32.mrb[0].mxu0
  %v575 = vadd.f32 %v85, %v574
  %v576 = vpop.f32.mrb[0].mxu0
  %v577 = vpop.f32.mrb[0].mxu0
  %v578 = vadd.f32 %v85, %v577
  %v579 = vpop.f32.mrb[0].mxu0
  %580 = vmatprep.mubr.bf16.mxu0 0
  %581 = vmatmul.mubr.bf16.gmra.mrb[0].mxu0 %v324
  %v582 = vpop.f32.mrb[0].mxu0
  %v583 = vadd.f32 %v85, %v582
  %v584 = vpop.f32.mrb[0].mxu0
  %v585 = vpop.f32.mrb[0].mxu0
  %v586 = vadd.f32 %v85, %v585
  %v587 = vpop.f32.mrb[0].mxu0
  %588 = vmatprep.mubr.bf16.mxu0 0
  %589 = vmatmul.mubr.bf16.gmra.mrb[0].mxu0 %v327
  %v590 = vpop.f32.mrb[0].mxu0
  %v591 = vadd.f32 %v85, %v590
  %v592 = vpop.f32.mrb[0].mxu0
  %v593 = vpop.f32.mrb[0].mxu0
  %v594 = vadd.f32 %v85, %v593
  %v595 = vpop.f32.mrb[0].mxu0
  %596 = vmatprep.mubr.bf16.mxu0 0
  %597 = vmatmul.mubr.bf16.gmra.mrb[0].mxu0 %v330
  %v598 = vpop.f32.mrb[0].mxu0
  %v599 = vadd.f32 %v85, %v598
  %v600 = vpop.f32.mrb[0].mxu0
  %v601 = vpop.f32.mrb[0].mxu0
  %v602 = vadd.f32 %v85, %v601
  %v603 = vpop.f32.mrb[0].mxu0
  %604 = vmatprep.mubr.bf16.mxu0 0
  %605 = vmatmul.mubr.bf16.gmra.mrb[0].mxu0 %v333
  %v606 = vpop.f32.mrb[0].mxu0
  %v607 = vadd.f32 %v85, %v606
  %v608 = vpop.f32.mrb[0].mxu0
  %v609 = vpop.f32.mrb[0].mxu0
  %v610 = vadd.f32 %v85, %v609
  %v611 = vpop.f32.mrb[0].mxu0
  %612 = vmatprep.mubr.bf16.mxu0 0
  %613 = vmatmul.mubr.bf16.gmra.mrb[0].mxu0 %v336
  %v614 = vpop.f32.mrb[0].mxu0
  %v615 = vadd.f32 %v85, %v614
  %v616 = vpop.f32.mrb[0].mxu0
  %v617 = vpop.f32.mrb[0].mxu0
  %v618 = vadd.f32 %v85, %v617
  %v619 = vpop.f32.mrb[0].mxu0
  %620 = vmatprep.mubr.bf16.mxu0 0
  %621 = vmatmul.mubr.bf16.gmra.mrb[0].mxu0 %v339
  %v622 = vpop.f32.mrb[0].mxu0
  %v623 = vadd.f32 %v85, %v622
  %v624 = vpop.f32.mrb[0].mxu0
  %v625 = vpop.f32.mrb[0].mxu0
  %v626 = vadd.f32 %v85, %v625
  %v627 = vpop.f32.mrb[0].mxu0
  %628 = vmatprep.mubr.bf16.mxu0 0
  %629 = vmatmul.mubr.bf16.gmra.mrb[0].mxu0 %v342
  %v630 = vpop.f32.mrb[0].mxu0
  %v631 = vadd.f32 %v85, %v630
  %v632 = vpop.f32.mrb[0].mxu0
  %v633 = vpop.f32.mrb[0].mxu0
  %v634 = vadd.f32 %v85, %v633
  %v635 = vpop.f32.mrb[0].mxu0
  %636 = vdwg.mxu0
  %v637 = vmax.f32 %v383, 0.0
  %v638 = vmax.f32 %v386, 0.0
  %v639 = vmax.f32 %v391, 0.0
  %v640 = vmax.f32 %v394, 0.0
  %v641 = vmax.f32 %v399, 0.0
  %v642 = vmax.f32 %v402, 0.0
  %v643 = vmax.f32 %v407, 0.0
  %v644 = vmax.f32 %v410, 0.0
  %v645 = vmax.f32 %v415, 0.0
  %v646 = vmax.f32 %v418, 0.0
  %v647 = vmax.f32 %v423, 0.0
  %v648 = vmax.f32 %v426, 0.0
  %v649 = vmax.f32 %v431, 0.0
  %v650 = vmax.f32 %v434, 0.0
  %v651 = vmax.f32 %v439, 0.0
  %v652 = vmax.f32 %v442, 0.0
  %v653 = vmax.f32 %v447, 0.0
  %v654 = vmax.f32 %v450, 0.0
  %v655 = vmax.f32 %v455, 0.0
  %v656 = vmax.f32 %v458, 0.0
  %v657 = vmax.f32 %v463, 0.0
  %v658 = vmax.f32 %v466, 0.0
  %v659 = vmax.f32 %v471, 0.0
  %v660 = vmax.f32 %v474, 0.0
  %v661 = vmax.f32 %v479, 0.0
  %v662 = vmax.f32 %v482, 0.0
  %v663 = vmax.f32 %v487, 0.0
  %v664 = vmax.f32 %v490, 0.0
  %v665 = vmax.f32 %v495, 0.0
  %v666 = vmax.f32 %v498, 0.0
  %v667 = vmax.f32 %v503, 0.0
  %v668 = vmax.f32 %v506, 0.0
  %v669 = vmax.f32 %v511, 0.0
  %v670 = vmax.f32 %v514, 0.0
  %v671 = vmax.f32 %v519, 0.0
  %v672 = vmax.f32 %v522, 0.0
  %v673 = vmax.f32 %v527, 0.0
  %v674 = vmax.f32 %v530, 0.0
  %v675 = vmax.f32 %v535, 0.0
  %v676 = vmax.f32 %v538, 0.0
  %v677 = vmax.f32 %v543, 0.0
  %v678 = vmax.f32 %v546, 0.0
  %v679 = vmax.f32 %v551, 0.0
  %v680 = vmax.f32 %v554, 0.0
  %v681 = vmax.f32 %v559, 0.0
  %v682 = vmax.f32 %v562, 0.0
  %v683 = vmax.f32 %v567, 0.0
  %v684 = vmax.f32 %v570, 0.0
  %v685 = vmax.f32 %v575, 0.0
  %v686 = vmax.f32 %v578, 0.0
  %v687 = vmax.f32 %v583, 0.0
  %v688 = vmax.f32 %v586, 0.0
  %v689 = vmax.f32 %v591, 0.0
  %v690 = vmax.f32 %v594, 0.0
  %v691 = vmax.f32 %v599, 0.0
  %v692 = vmax.f32 %v602, 0.0
  %v693 = vmax.f32 %v607, 0.0
  %v694 = vmax.f32 %v610, 0.0
  %v695 = vmax.f32 %v615, 0.0
  %v696 = vmax.f32 %v618, 0.0
  %v697 = vmax.f32 %v623, 0.0
  %v698 = vmax.f32 %v626, 0.0
  %v699 = vmax.f32 %v631, 0.0
  %v700 = vmax.f32 %v634, 0.0
  %v701 = vpack.c.bf16 %v638, %v637
  %v702 = vpack.c.bf16 %v640, %v639
  %v703 = vpack.c.bf16 %v642, %v641
  %v704 = vpack.c.bf16 %v644, %v643
  %v705 = vpack.c.bf16 %v646, %v645
  %v706 = vpack.c.bf16 %v648, %v647
  %v707 = vpack.c.bf16 %v650, %v649
  %v708 = vpack.c.bf16 %v652, %v651
  %v709 = vpack.c.bf16 %v654, %v653
  %v710 = vpack.c.bf16 %v656, %v655
  %v711 = vpack.c.bf16 %v658, %v657
  %v712 = vpack.c.bf16 %v660, %v659
  %v713 = vpack.c.bf16 %v662, %v661
  %v714 = vpack.c.bf16 %v664, %v663
  %v715 = vpack.c.bf16 %v666, %v665
  %v716 = vpack.c.bf16 %v668, %v667
  %v717 = vpack.c.bf16 %v670, %v669
  %v718 = vpack.c.bf16 %v672, %v671
  %v719 = vpack.c.bf16 %v674, %v673
  %v720 = vpack.c.bf16 %v676, %v675
  %v721 = vpack.c.bf16 %v678, %v677
  %v722 = vpack.c.bf16 %v680, %v679
  %v723 = vpack.c.bf16 %v682, %v681
  %v724 = vpack.c.bf16 %v684, %v683
  %v725 = vpack.c.bf16 %v686, %v685
  %v726 = vpack.c.bf16 %v688, %v687
  %v727 = vpack.c.bf16 %v690, %v689
  %v728 = vpack.c.bf16 %v692, %v691
  %v729 = vpack.c.bf16 %v694, %v693
  %v730 = vpack.c.bf16 %v696, %v695
  %v731 = vpack.c.bf16 %v698, %v697
  %v732 = vpack.c.bf16 %v700, %v699
  %v765 = vunpack.c.l.b16 %v701
  %v766 = vunpack.c.h.b16 %v701
  %v767 = vunpack.c.l.b16 %v702
  %v768 = vunpack.c.h.b16 %v702
  %v769 = vunpack.c.l.b16 %v703
  %v770 = vunpack.c.h.b16 %v703
  %v771 = vunpack.c.l.b16 %v704
  %v772 = vunpack.c.h.b16 %v704
  %v773 = vunpack.c.l.b16 %v705
  %v774 = vunpack.c.h.b16 %v705
  %v775 = vunpack.c.l.b16 %v706
  %v776 = vunpack.c.h.b16 %v706
  %v777 = vunpack.c.l.b16 %v707
  %v778 = vunpack.c.h.b16 %v707
  %v779 = vunpack.c.l.b16 %v708
  %v780 = vunpack.c.h.b16 %v708
  %v781 = vunpack.c.l.b16 %v709
  %v782 = vunpack.c.h.b16 %v709
  %v783 = vunpack.c.l.b16 %v710
  %v784 = vunpack.c.h.b16 %v710
  %v785 = vunpack.c.l.b16 %v711
  %v786 = vunpack.c.h.b16 %v711
  %v787 = vunpack.c.l.b16 %v712
  %v788 = vunpack.c.h.b16 %v712
  %v789 = vunpack.c.l.b16 %v713
  %v790 = vunpack.c.h.b16 %v713
  %v791 = vunpack.c.l.b16 %v714
  %v792 = vunpack.c.h.b16 %v714
  %v793 = vunpack.c.l.b16 %v715
  %v794 = vunpack.c.h.b16 %v715
  %v795 = vunpack.c.l.b16 %v716
  %v796 = vunpack.c.h.b16 %v716
  %v797 = vunpack.c.l.b16 %v717
  %v798 = vunpack.c.h.b16 %v717
  %v799 = vunpack.c.l.b16 %v718
  %v800 = vunpack.c.h.b16 %v718
  %v801 = vunpack.c.l.b16 %v719
  %v802 = vunpack.c.h.b16 %v719
  %v803 = vunpack.c.l.b16 %v720
  %v804 = vunpack.c.h.b16 %v720
  %v805 = vunpack.c.l.b16 %v721
  %v806 = vunpack.c.h.b16 %v721
  %v807 = vunpack.c.l.b16 %v722
  %v808 = vunpack.c.h.b16 %v722
  %v809 = vunpack.c.l.b16 %v723
  %v810 = vunpack.c.h.b16 %v723
  %v811 = vunpack.c.l.b16 %v724
  %v812 = vunpack.c.h.b16 %v724
  %v813 = vunpack.c.l.b16 %v725
  %v814 = vunpack.c.h.b16 %v725
  %v815 = vunpack.c.l.b16 %v726
  %v816 = vunpack.c.h.b16 %v726
  %v817 = vunpack.c.l.b16 %v727
  %v818 = vunpack.c.h.b16 %v727
  %v819 = vunpack.c.l.b16 %v728
  %v820 = vunpack.c.h.b16 %v728
  %v821 = vunpack.c.l.b16 %v729
  %v822 = vunpack.c.h.b16 %v729
  %v823 = vunpack.c.l.b16 %v730
  %v824 = vunpack.c.h.b16 %v730
  %v825 = vunpack.c.l.b16 %v731
  %v826 = vunpack.c.h.b16 %v731
  %v827 = vunpack.c.l.b16 %v732
  %v828 = vunpack.c.h.b16 %v732
  %v829 = vpack.c.b16 %v765, %v765
  %v830 = vpack.c.b16 %v766, %v766
  %v831 = vpack.c.b16 %v767, %v767
  %v832 = vpack.c.b16 %v768, %v768
  %v833 = vpack.c.b16 %v769, %v769
  %v834 = vpack.c.b16 %v770, %v770
  %v835 = vpack.c.b16 %v771, %v771
  %v836 = vpack.c.b16 %v772, %v772
  %v837 = vpack.c.b16 %v773, %v773
  %v838 = vpack.c.b16 %v774, %v774
  %v839 = vpack.c.b16 %v775, %v775
  %v840 = vpack.c.b16 %v776, %v776
  %v841 = vpack.c.b16 %v777, %v777
  %v842 = vpack.c.b16 %v778, %v778
  %v843 = vpack.c.b16 %v779, %v779
  %v844 = vpack.c.b16 %v780, %v780
  %v845 = vpack.c.b16 %v781, %v781
  %v846 = vpack.c.b16 %v782, %v782
  %v847 = vpack.c.b16 %v783, %v783
  %v848 = vpack.c.b16 %v784, %v784
  %v849 = vpack.c.b16 %v785, %v785
  %v850 = vpack.c.b16 %v786, %v786
  %v851 = vpack.c.b16 %v787, %v787
  %v852 = vpack.c.b16 %v788, %v788
  %v853 = vpack.c.b16 %v789, %v789
  %v854 = vpack.c.b16 %v790, %v790
  %v855 = vpack.c.b16 %v791, %v791
  %v856 = vpack.c.b16 %v792, %v792
  %v857 = vpack.c.b16 %v793, %v793
  %v858 = vpack.c.b16 %v794, %v794
  %v859 = vpack.c.b16 %v795, %v795
  %v860 = vpack.c.b16 %v796, %v796
  %v861 = vpack.c.b16 %v797, %v797
  %v862 = vpack.c.b16 %v798, %v798
  %v863 = vpack.c.b16 %v799, %v799
  %v864 = vpack.c.b16 %v800, %v800
  %v865 = vpack.c.b16 %v801, %v801
  %v866 = vpack.c.b16 %v802, %v802
  %v867 = vpack.c.b16 %v803, %v803
  %v868 = vpack.c.b16 %v804, %v804
  %v869 = vpack.c.b16 %v805, %v805
  %v870 = vpack.c.b16 %v806, %v806
  %v871 = vpack.c.b16 %v807, %v807
  %v872 = vpack.c.b16 %v808, %v808
  %v873 = vpack.c.b16 %v809, %v809
  %v874 = vpack.c.b16 %v810, %v810
  %v875 = vpack.c.b16 %v811, %v811
  %v876 = vpack.c.b16 %v812, %v812
  %v877 = vpack.c.b16 %v813, %v813
  %v878 = vpack.c.b16 %v814, %v814
  %v879 = vpack.c.b16 %v815, %v815
  %v880 = vpack.c.b16 %v816, %v816
  %v881 = vpack.c.b16 %v817, %v817
  %v882 = vpack.c.b16 %v818, %v818
  %v883 = vpack.c.b16 %v819, %v819
  %v884 = vpack.c.b16 %v820, %v820
  %v885 = vpack.c.b16 %v821, %v821
  %v886 = vpack.c.b16 %v822, %v822
  %v887 = vpack.c.b16 %v823, %v823
  %v888 = vpack.c.b16 %v824, %v824
  %v889 = vpack.c.b16 %v825, %v825
  %v890 = vpack.c.b16 %v826, %v826
  %v891 = vpack.c.b16 %v827, %v827
  %v892 = vpack.c.b16 %v828, %v828
  %vm957 = vcmask 125952
  %958 = vst.msk [vmem:[%s3] sm:$0xf] %vm957, %v829
  %959 = vst.msk [vmem:[%s3 + $0x4] sm:$0xf] %vm957, %v830
  %960 = vst.msk [vmem:[%s3 + $0x8] sm:$0xf] %vm957, %v831
  %961 = vst.msk [vmem:[%s3 + $0xc] sm:$0xf] %vm957, %v832
  %962 = vst.msk [vmem:[%s3 + $0x10] sm:$0xf] %vm957, %v833
  %963 = vst.msk [vmem:[%s3 + $0x14] sm:$0xf] %vm957, %v834
  %964 = vst.msk [vmem:[%s3 + $0x18] sm:$0xf] %vm957, %v835
  %965 = vst.msk [vmem:[%s3 + $0x1c] sm:$0xf] %vm957, %v836
  %966 = vst.msk [vmem:[%s3 + $0x20] sm:$0xf] %vm957, %v837
  %967 = vst.msk [vmem:[%s3 + $0x24] sm:$0xf] %vm957, %v838
  %968 = vst.msk [vmem:[%s3 + $0x28] sm:$0xf] %vm957, %v839
  %969 = vst.msk [vmem:[%s3 + $0x2c] sm:$0xf] %vm957, %v840
  %970 = vst.msk [vmem:[%s3 + $0x30] sm:$0xf] %vm957, %v841
  %971 = vst.msk [vmem:[%s3 + $0x34] sm:$0xf] %vm957, %v842
  %972 = vst.msk [vmem:[%s3 + $0x38] sm:$0xf] %vm957, %v843
  %973 = vst.msk [vmem:[%s3 + $0x3c] sm:$0xf] %vm957, %v844
  %974 = vst.msk [vmem:[%s3 + $0x40] sm:$0xf] %vm957, %v845
  %975 = vst.msk [vmem:[%s3 + $0x44] sm:$0xf] %vm957, %v846
  %976 = vst.msk [vmem:[%s3 + $0x48] sm:$0xf] %vm957, %v847
  %977 = vst.msk [vmem:[%s3 + $0x4c] sm:$0xf] %vm957, %v848
  %978 = vst.msk [vmem:[%s3 + $0x50] sm:$0xf] %vm957, %v849
  %979 = vst.msk [vmem:[%s3 + $0x54] sm:$0xf] %vm957, %v850
  %980 = vst.msk [vmem:[%s3 + $0x58] sm:$0xf] %vm957, %v851
  %981 = vst.msk [vmem:[%s3 + $0x5c] sm:$0xf] %vm957, %v852
  %982 = vst.msk [vmem:[%s3 + $0x60] sm:$0xf] %vm957, %v853
  %983 = vst.msk [vmem:[%s3 + $0x64] sm:$0xf] %vm957, %v854
  %984 = vst.msk [vmem:[%s3 + $0x68] sm:$0xf] %vm957, %v855
  %985 = vst.msk [vmem:[%s3 + $0x6c] sm:$0xf] %vm957, %v856
  %986 = vst.msk [vmem:[%s3 + $0x70] sm:$0xf] %vm957, %v857
  %987 = vst.msk [vmem:[%s3 + $0x74] sm:$0xf] %vm957, %v858
  %988 = vst.msk [vmem:[%s3 + $0x78] sm:$0xf] %vm957, %v859
  %989 = vst.msk [vmem:[%s3 + $0x7c] sm:$0xf] %vm957, %v860
  %990 = vst.msk [vmem:[%s3 + $0x80] sm:$0xf] %vm957, %v861
  %991 = vst.msk [vmem:[%s3 + $0x84] sm:$0xf] %vm957, %v862
  %992 = vst.msk [vmem:[%s3 + $0x88] sm:$0xf] %vm957, %v863
  %993 = vst.msk [vmem:[%s3 + $0x8c] sm:$0xf] %vm957, %v864
  %994 = vst.msk [vmem:[%s3 + $0x90] sm:$0xf] %vm957, %v865
  %995 = vst.msk [vmem:[%s3 + $0x94] sm:$0xf] %vm957, %v866
  %996 = vst.msk [vmem:[%s3 + $0x98] sm:$0xf] %vm957, %v867
  %997 = vst.msk [vmem:[%s3 + $0x9c] sm:$0xf] %vm957, %v868
  %998 = vst.msk [vmem:[%s3 + $0xa0] sm:$0xf] %vm957, %v869
  %999 = vst.msk [vmem:[%s3 + $0xa4] sm:$0xf] %vm957, %v870
  %1000 = vst.msk [vmem:[%s3 + $0xa8] sm:$0xf] %vm957, %v871
  %1001 = vst.msk [vmem:[%s3 + $0xac] sm:$0xf] %vm957, %v872
  %1002 = vst.msk [vmem:[%s3 + $0xb0] sm:$0xf] %vm957, %v873
  %1003 = vst.msk [vmem:[%s3 + $0xb4] sm:$0xf] %vm957, %v874
  %1004 = vst.msk [vmem:[%s3 + $0xb8] sm:$0xf] %vm957, %v875
  %1005 = vst.msk [vmem:[%s3 + $0xbc] sm:$0xf] %vm957, %v876
  %1006 = vst.msk [vmem:[%s3 + $0xc0] sm:$0xf] %vm957, %v877
  %1007 = vst.msk [vmem:[%s3 + $0xc4] sm:$0xf] %vm957, %v878
  %1008 = vst.msk [vmem:[%s3 + $0xc8] sm:$0xf] %vm957, %v879
  %1009 = vst.msk [vmem:[%s3 + $0xcc] sm:$0xf] %vm957, %v880
  %1010 = vst.msk [vmem:[%s3 + $0xd0] sm:$0xf] %vm957, %v881
  %1011 = vst.msk [vmem:[%s3 + $0xd4] sm:$0xf] %vm957, %v882
  %1012 = vst.msk [vmem:[%s3 + $0xd8] sm:$0xf] %vm957, %v883
  %1013 = vst.msk [vmem:[%s3 + $0xdc] sm:$0xf] %vm957, %v884
  %1014 = vst.msk [vmem:[%s3 + $0xe0] sm:$0xf] %vm957, %v885
  %1015 = vst.msk [vmem:[%s3 + $0xe4] sm:$0xf] %vm957, %v886
  %1016 = vst.msk [vmem:[%s3 + $0xe8] sm:$0xf] %vm957, %v887
  %1017 = vst.msk [vmem:[%s3 + $0xec] sm:$0xf] %vm957, %v888
  %1018 = vst.msk [vmem:[%s3 + $0xf0] sm:$0xf] %vm957, %v889
  %1019 = vst.msk [vmem:[%s3 + $0xf4] sm:$0xf] %vm957, %v890
  %1020 = vst.msk [vmem:[%s3 + $0xf8] sm:$0xf] %vm957, %v891
  %1021 = vst.msk [vmem:[%s3 + $0xfc] sm:$0xf] %vm957, %v892
  // Predicated region
  $region14: #{inception_forward.5} parent=0 // pred_check
    _
  $region15: #{inception_forward.5} parent=0 // pred_check_branch
    %1023 = sbr.rel (0) target = $region17
  $region16: #{inception_forward.5} parent=0 // pred_region
    _
  $region17: #{inception_forward.5} parent=0 // pred_fallthru
    _
  // Predicated region
  $region18: #{inception_forward.5} parent=0 // pred_check
    _
  $region19: #{inception_forward.5} parent=0 // pred_check_branch
    %1025 = sbr.rel (0) target = $region21
  $region20: #{inception_forward.5} parent=0 // pred_region
    _
  $region21: #{inception_forward.5} parent=0 // pred_fallthru
    _

// kernel: inception_forward.7
$region0: #{inception_forward.7}
  #allocation0 [shape = 'u32[]', space=smem, size = 0x4, offset = 0x4, fixed_abs, tag = 'smem constant byte address 0x4 - core index']
  #allocation1 [shape = 'u32[144,128]{1,0:T(1,128)}', space=vmem, size = 0x12000, scoped, tag = 'internal scratch']
  %s0 = inlined_call_operand.vmem [shape: bf16[512,100], index: 0, kind: input, shape index: {}]
  %s1 = inlined_call_operand.vmem [shape: bf16[100,8], index: 1, kind: input, shape index: {}]
  %s2 = inlined_call_operand.vmem [shape: f32[1,8], index: 2, kind: input, shape index: {}]
  %s3 = inlined_call_operand.vmem [shape: bf16[512,8], index: 3, kind: output, shape index: {}]
  %s4 = sld [smem:[#allocation0]]
  $region22: #{inception_forward.7} parent=0
    _
  %s6 = ssub.s32 1, %s4
  %s7 = scalar_select 0, %s6, %s4
  // Predicated region
  $region2: #{inception_forward.7} parent=0 // pred_check
    _
  $region3: #{inception_forward.7} parent=0 // pred_check_branch
    %9 = sbr.rel (0) target = $region5
  $region4: #{inception_forward.7} parent=0 // pred_region
    _
  $region5: #{inception_forward.7} parent=0 // pred_fallthru
    _
  // Predicated region
  $region6: #{inception_forward.7} parent=0 // pred_check
    _
  $region7: #{inception_forward.7} parent=0 // pred_check_branch
    %11 = sbr.rel (0) target = $region9
  $region8: #{inception_forward.7} parent=0 // pred_region
    _
  $region9: #{inception_forward.7} parent=0 // pred_fallthru
    _
  // Predicated region
  $region10: #{inception_forward.7} parent=0 // pred_check
    _
  $region11: #{inception_forward.7} parent=0 // pred_check_branch
    %13 = sbr.rel (0) target = $region13
  $region12: #{inception_forward.7} parent=0 // pred_region
    _
  $region13: #{inception_forward.7} parent=0 // pred_fallthru
    _
  %v15 = vld [vmem:[%s0] sm:$0xf]
  %v16 = vld [vmem:[%s0 + $0x4] sm:$0xf]
  %v17 = vld [vmem:[%s0 + $0x8] sm:$0xf]
  %v18 = vld [vmem:[%s0 + $0xc] sm:$0xf]
  %v19 = vld [vmem:[%s0 + $0x10] sm:$0xf]
  %v20 = vld [vmem:[%s0 + $0x14] sm:$0xf]
  %v21 = vld [vmem:[%s0 + $0x18] sm:$0xf]
  %v22 = vld [vmem:[%s0 + $0x1c] sm:$0xf]
  %v23 = vld [vmem:[%s0 + $0x20] sm:$0xf]
  %v24 = vld [vmem:[%s0 + $0x24] sm:$0xf]
  %v25 = vld [vmem:[%s0 + $0x28] sm:$0xf]
  %v26 = vld [vmem:[%s0 + $0x2c] sm:$0xf]
  %v27 = vld [vmem:[%s0 + $0x30] sm:$0xf]
  %v28 = vld [vmem:[%s0 + $0x34] sm:$0xf]
  %v29 = vld [vmem:[%s0 + $0x38] sm:$0xf]
  %v30 = vld [vmem:[%s0 + $0x3c] sm:$0xf]
  %v31 = vld [vmem:[%s0 + $0x40] sm:$0xf]
  %v32 = vld [vmem:[%s0 + $0x44] sm:$0xf]
  %v33 = vld [vmem:[%s0 + $0x48] sm:$0xf]
  %v34 = vld [vmem:[%s0 + $0x4c] sm:$0xf]
  %v35 = vld [vmem:[%s0 + $0x50] sm:$0xf]
  %v36 = vld [vmem:[%s0 + $0x54] sm:$0xf]
  %v37 = vld [vmem:[%s0 + $0x58] sm:$0xf]
  %v38 = vld [vmem:[%s0 + $0x5c] sm:$0xf]
  %v39 = vld [vmem:[%s0 + $0x60] sm:$0xf]
  %v40 = vld [vmem:[%s0 + $0x64] sm:$0xf]
  %v41 = vld [vmem:[%s0 + $0x68] sm:$0xf]
  %v42 = vld [vmem:[%s0 + $0x6c] sm:$0xf]
  %v43 = vld [vmem:[%s0 + $0x70] sm:$0xf]
  %v44 = vld [vmem:[%s0 + $0x74] sm:$0xf]
  %v45 = vld [vmem:[%s0 + $0x78] sm:$0xf]
  %v46 = vld [vmem:[%s0 + $0x7c] sm:$0xf]
  %v47 = vld [vmem:[%s0 + $0x80] sm:$0xf]
  %v48 = vld [vmem:[%s0 + $0x84] sm:$0xf]
  %v49 = vld [vmem:[%s0 + $0x88] sm:$0xf]
  %v50 = vld [vmem:[%s0 + $0x8c] sm:$0xf]
  %v51 = vld [vmem:[%s0 + $0x90] sm:$0xf]
  %v52 = vld [vmem:[%s0 + $0x94] sm:$0xf]
  %v53 = vld [vmem:[%s0 + $0x98] sm:$0xf]
  %v54 = vld [vmem:[%s0 + $0x9c] sm:$0xf]
  %v55 = vld [vmem:[%s0 + $0xa0] sm:$0xf]
  %v56 = vld [vmem:[%s0 + $0xa4] sm:$0xf]
  %v57 = vld [vmem:[%s0 + $0xa8] sm:$0xf]
  %v58 = vld [vmem:[%s0 + $0xac] sm:$0xf]
  %v59 = vld [vmem:[%s0 + $0xb0] sm:$0xf]
  %v60 = vld [vmem:[%s0 + $0xb4] sm:$0xf]
  %v61 = vld [vmem:[%s0 + $0xb8] sm:$0xf]
  %v62 = vld [vmem:[%s0 + $0xbc] sm:$0xf]
  %v63 = vld [vmem:[%s0 + $0xc0] sm:$0xf]
  %v64 = vld [vmem:[%s0 + $0xc4] sm:$0xf]
  %v65 = vld [vmem:[%s0 + $0xc8] sm:$0xf]
  %v66 = vld [vmem:[%s0 + $0xcc] sm:$0xf]
  %v67 = vld [vmem:[%s0 + $0xd0] sm:$0xf]
  %v68 = vld [vmem:[%s0 + $0xd4] sm:$0xf]
  %v69 = vld [vmem:[%s0 + $0xd8] sm:$0xf]
  %v70 = vld [vmem:[%s0 + $0xdc] sm:$0xf]
  %v71 = vld [vmem:[%s0 + $0xe0] sm:$0xf]
  %v72 = vld [vmem:[%s0 + $0xe4] sm:$0xf]
  %v73 = vld [vmem:[%s0 + $0xe8] sm:$0xf]
  %v74 = vld [vmem:[%s0 + $0xec] sm:$0xf]
  %v75 = vld [vmem:[%s0 + $0xf0] sm:$0xf]
  %v76 = vld [vmem:[%s0 + $0xf4] sm:$0xf]
  %v77 = vld [vmem:[%s0 + $0xf8] sm:$0xf]
  %v78 = vld [vmem:[%s0 + $0xfc] sm:$0xf]
  %v79 = vld [vmem:[%s1] sm:$0xf]
  %v80 = vld [vmem:[%s1 + $0x4] sm:$0xf]
  %v81 = vld [vmem:[%s1 + $0x8] sm:$0xf]
  %v82 = vld [vmem:[%s1 + $0xc] sm:$0xf]
  %v83 = vld [vmem:[%s1 + $0x10] sm:$0xf]
  %v84 = vld [vmem:[%s1 + $0x14] sm:$0xf]
  %v85 = vld [vmem:[%s1 + $0x18] sm:$0xf]
  %v86 = vld [vmem:[%s1 + $0x1c] sm:$0xf]
  %v87 = vld [vmem:[%s1 + $0x20] sm:$0xf]
  %v88 = vld [vmem:[%s1 + $0x24] sm:$0xf]
  %v89 = vld [vmem:[%s1 + $0x28] sm:$0xf]
  %v90 = vld [vmem:[%s1 + $0x2c] sm:$0xf]
  %v91 = vld [vmem:[%s1 + $0x30] sm:$0x3]
  %v92 = vld [vmem:[%s2] sm:$0x1]
  %v94 = vlaneseq
  %v95 = vshrl.u32 %v94, 7
  %v96 = vsub.s32 0, %v95
  %v97 = vrot.slane %v92, %v96
  %v163 = vunpack.c.l.b16 %v15
  %v164 = vunpack.c.l.b16 %v16
  %v165 = vunpack.c.l.b16 %v17
  %v166 = vunpack.c.l.b16 %v18
  %v167 = vunpack.c.l.b16 %v19
  %v168 = vunpack.c.l.b16 %v20
  %v169 = vunpack.c.l.b16 %v21
  %v170 = vunpack.c.l.b16 %v22
  %v171 = vunpack.c.l.b16 %v23
  %v172 = vunpack.c.l.b16 %v24
  %v173 = vunpack.c.l.b16 %v25
  %v174 = vunpack.c.l.b16 %v26
  %v175 = vunpack.c.l.b16 %v27
  %v176 = vunpack.c.l.b16 %v28
  %v177 = vunpack.c.l.b16 %v29
  %v178 = vunpack.c.l.b16 %v30
  %v179 = vunpack.c.l.b16 %v31
  %v180 = vunpack.c.l.b16 %v32
  %v181 = vunpack.c.l.b16 %v33
  %v182 = vunpack.c.l.b16 %v34
  %v183 = vunpack.c.l.b16 %v35
  %v184 = vunpack.c.l.b16 %v36
  %v185 = vunpack.c.l.b16 %v37
  %v186 = vunpack.c.l.b16 %v38
  %v187 = vunpack.c.l.b16 %v39
  %v188 = vunpack.c.l.b16 %v40
  %v189 = vunpack.c.l.b16 %v41
  %v190 = vunpack.c.l.b16 %v42
  %v191 = vunpack.c.l.b16 %v43
  %v192 = vunpack.c.l.b16 %v44
  %v193 = vunpack.c.l.b16 %v45
  %v194 = vunpack.c.l.b16 %v46
  %v195 = vunpack.c.l.b16 %v47
  %v196 = vunpack.c.l.b16 %v48
  %v197 = vunpack.c.l.b16 %v49
  %v198 = vunpack.c.l.b16 %v50
  %v199 = vunpack.c.l.b16 %v51
  %v200 = vunpack.c.l.b16 %v52
  %v201 = vunpack.c.l.b16 %v53
  %v202 = vunpack.c.l.b16 %v54
  %v203 = vunpack.c.l.b16 %v55
  %v204 = vunpack.c.l.b16 %v56
  %v205 = vunpack.c.l.b16 %v57
  %v206 = vunpack.c.l.b16 %v58
  %v207 = vunpack.c.l.b16 %v59
  %v208 = vunpack.c.l.b16 %v60
  %v209 = vunpack.c.l.b16 %v61
  %v210 = vunpack.c.l.b16 %v62
  %v211 = vunpack.c.l.b16 %v63
  %v212 = vunpack.c.l.b16 %v64
  %v213 = vunpack.c.l.b16 %v65
  %v214 = vunpack.c.l.b16 %v66
  %v215 = vunpack.c.l.b16 %v67
  %v216 = vunpack.c.l.b16 %v68
  %v217 = vunpack.c.l.b16 %v69
  %v218 = vunpack.c.l.b16 %v70
  %v219 = vunpack.c.l.b16 %v71
  %v220 = vunpack.c.l.b16 %v72
  %v221 = vunpack.c.l.b16 %v73
  %v222 = vunpack.c.l.b16 %v74
  %v223 = vunpack.c.l.b16 %v75
  %v224 = vunpack.c.l.b16 %v76
  %v225 = vunpack.c.l.b16 %v77
  %v226 = vunpack.c.l.b16 %v78
  %v227 = vpack.c.b16 %v164, %v163
  %v228 = vpack.c.b16 %v166, %v165
  %v229 = vpack.c.b16 %v168, %v167
  %v230 = vpack.c.b16 %v170, %v169
  %v231 = vpack.c.b16 %v172, %v171
  %v232 = vpack.c.b16 %v174, %v173
  %v233 = vpack.c.b16 %v176, %v175
  %v234 = vpack.c.b16 %v178, %v177
  %v235 = vpack.c.b16 %v180, %v179
  %v236 = vpack.c.b16 %v182, %v181
  %v237 = vpack.c.b16 %v184, %v183
  %v238 = vpack.c.b16 %v186, %v185
  %v239 = vpack.c.b16 %v188, %v187
  %v240 = vpack.c.b16 %v190, %v189
  %v241 = vpack.c.b16 %v192, %v191
  %v242 = vpack.c.b16 %v194, %v193
  %v243 = vpack.c.b16 %v196, %v195
  %v244 = vpack.c.b16 %v198, %v197
  %v245 = vpack.c.b16 %v200, %v199
  %v246 = vpack.c.b16 %v202, %v201
  %v247 = vpack.c.b16 %v204, %v203
  %v248 = vpack.c.b16 %v206, %v205
  %v249 = vpack.c.b16 %v208, %v207
  %v250 = vpack.c.b16 %v210, %v209
  %v251 = vpack.c.b16 %v212, %v211
  %v252 = vpack.c.b16 %v214, %v213
  %v253 = vpack.c.b16 %v216, %v215
  %v254 = vpack.c.b16 %v218, %v217
  %v255 = vpack.c.b16 %v220, %v219
  %v256 = vpack.c.b16 %v222, %v221
  %v257 = vpack.c.b16 %v224, %v223
  %v258 = vpack.c.b16 %v226, %v225
  %v272 = vunpack.c.l.b16 %v79
  %v273 = vunpack.c.l.b16 %v80
  %v274 = vunpack.c.l.b16 %v81
  %v275 = vunpack.c.l.b16 %v82
  %v276 = vunpack.c.l.b16 %v83
  %v277 = vunpack.c.l.b16 %v84
  %v278 = vunpack.c.l.b16 %v85
  %v279 = vunpack.c.l.b16 %v86
  %v280 = vunpack.c.l.b16 %v87
  %v281 = vunpack.c.l.b16 %v88
  %v282 = vunpack.c.l.b16 %v89
  %v283 = vunpack.c.l.b16 %v90
  %v284 = vunpack.c.l.b16 %v91
  %v285 = vpack.c.b16 %v273, %v272
  %v286 = vpack.c.b16 %v275, %v274
  %v287 = vpack.c.b16 %v277, %v276
  %v288 = vpack.c.b16 %v279, %v278
  %v289 = vpack.c.b16 %v281, %v280
  %v290 = vpack.c.b16 %v283, %v282
  %v291 = vpack.c.b16 %v284, %v284
  %vm298 = vcmask 818176
  %v300 = vsel %vm298, %v227, 0
  %v303 = vsel %vm298, %v228, 0
  %v306 = vsel %vm298, %v229, 0
  %v309 = vsel %vm298, %v230, 0
  %v312 = vsel %vm298, %v231, 0
  %v315 = vsel %vm298, %v232, 0
  %v318 = vsel %vm298, %v233, 0
  %v321 = vsel %vm298, %v234, 0
  %v324 = vsel %vm298, %v235, 0
  %v327 = vsel %vm298, %v236, 0
  %v330 = vsel %vm298, %v237, 0
  %v333 = vsel %vm298, %v238, 0
  %v336 = vsel %vm298, %v239, 0
  %v339 = vsel %vm298, %v240, 0
  %v342 = vsel %vm298, %v241, 0
  %v345 = vsel %vm298, %v242, 0
  %v348 = vsel %vm298, %v243, 0
  %v351 = vsel %vm298, %v244, 0
  %v354 = vsel %vm298, %v245, 0
  %v357 = vsel %vm298, %v246, 0
  %v360 = vsel %vm298, %v247, 0
  %v363 = vsel %vm298, %v248, 0
  %v366 = vsel %vm298, %v249, 0
  %v369 = vsel %vm298, %v250, 0
  %v372 = vsel %vm298, %v251, 0
  %v375 = vsel %vm298, %v252, 0
  %v378 = vsel %vm298, %v253, 0
  %v381 = vsel %vm298, %v254, 0
  %v384 = vsel %vm298, %v255, 0
  %v387 = vsel %vm298, %v256, 0
  %v390 = vsel %vm298, %v257, 0
  %v393 = vsel %vm298, %v258, 0
  %vm395 = vcmask 1041408
  %v397 = vsel %vm395, %v291, 0
  %399 = vmatprep.subr.bf16.mxu0 0
  %400 = vmatpush1.bf16.msra.mxu0 %v285
  %401 = vmatprep.subr.bf16.mxu0 0
  %402 = vmatpush1.bf16.msra.mxu0 %v286
  %403 = vmatprep.subr.bf16.mxu0 0
  %404 = vmatpush1.bf16.msra.mxu0 %v287
  %405 = vmatprep.subr.bf16.mxu0 0
  %406 = vmatpush1.bf16.msra.mxu0 %v288
  %407 = vmatprep.subr.bf16.mxu0 0
  %408 = vmatpush1.bf16.msra.mxu0 %v289
  %409 = vmatprep.subr.bf16.mxu0 0
  %410 = vmatpush1.bf16.msra.mxu0 %v290
  %411 = vmatprep.subr.bf16.mxu0 0
  %412 = vmatpush1.bf16.msra.mxu0 %v397
  %413 = vmatprep.subr.bf16.mxu0 0
  %414 = vmatpush1.bf16.msra.mxu0 0
  %415 = vmatprep.subr.bf16.mxu0 0
  %416 = vmatpush1.bf16.msra.mxu0 0
  %417 = vmatprep.subr.bf16.mxu0 0
  %418 = vmatpush1.bf16.msra.mxu0 0
  %419 = vmatprep.subr.bf16.mxu0 0
  %420 = vmatpush1.bf16.msra.mxu0 0
  %421 = vmatprep.subr.bf16.mxu0 0
  %422 = vmatpush1.bf16.msra.mxu0 0
  %423 = vmatprep.subr.bf16.mxu0 0
  %424 = vmatpush1.bf16.msra.mxu0 0
  %425 = vmatprep.subr.bf16.mxu0 0
  %426 = vmatpush1.bf16.msra.mxu0 0
  %427 = vmatprep.subr.bf16.mxu0 0
  %428 = vmatpush1.bf16.msra.mxu0 0
  %429 = vmatprep.subr.bf16.mxu0 0
  %430 = vmatpush1.bf16.msra.mxu0 0
  %431 = vmatprep.mubr.bf16.mxu0 0
  %432 = vmatmul.mubr.bf16.gmra.mrb[0].mxu0 %v300
  %v433 = vpop.f32.mrb[0].mxu0
  %v434 = vadd.f32 %v97, %v433
  %v435 = vpop.f32.mrb[0].mxu0
  %v436 = vpop.f32.mrb[0].mxu0
  %v437 = vadd.f32 %v97, %v436
  %v438 = vpop.f32.mrb[0].mxu0
  %439 = vmatprep.mubr.bf16.mxu0 0
  %440 = vmatmul.mubr.bf16.gmra.mrb[0].mxu0 %v303
  %v441 = vpop.f32.mrb[0].mxu0
  %v442 = vadd.f32 %v97, %v441
  %v443 = vpop.f32.mrb[0].mxu0
  %v444 = vpop.f32.mrb[0].mxu0
  %v445 = vadd.f32 %v97, %v444
  %v446 = vpop.f32.mrb[0].mxu0
  %447 = vmatprep.mubr.bf16.mxu0 0
  %448 = vmatmul.mubr.bf16.gmra.mrb[0].mxu0 %v306
  %v449 = vpop.f32.mrb[0].mxu0
  %v450 = vadd.f32 %v97, %v449
  %v451 = vpop.f32.mrb[0].mxu0
  %v452 = vpop.f32.mrb[0].mxu0
  %v453 = vadd.f32 %v97, %v452
  %v454 = vpop.f32.mrb[0].mxu0
  %455 = vmatprep.mubr.bf16.mxu0 0
  %456 = vmatmul.mubr.bf16.gmra.mrb[0].mxu0 %v309
  %v457 = vpop.f32.mrb[0].mxu0
  %v458 = vadd.f32 %v97, %v457
  %v459 = vpop.f32.mrb[0].mxu0
  %v460 = vpop.f32.mrb[0].mxu0
  %v461 = vadd.f32 %v97, %v460
  %v462 = vpop.f32.mrb[0].mxu0
  %463 = vmatprep.mubr.bf16.mxu0 0
  %464 = vmatmul.mubr.bf16.gmra.mrb[0].mxu0 %v312
  %v465 = vpop.f32.mrb[0].mxu0
  %v466 = vadd.f32 %v97, %v465
  %v467 = vpop.f32.mrb[0].mxu0
  %v468 = vpop.f32.mrb[0].mxu0
  %v469 = vadd.f32 %v97, %v468
  %v470 = vpop.f32.mrb[0].mxu0
  %471 = vmatprep.mubr.bf16.mxu0 0
  %472 = vmatmul.mubr.bf16.gmra.mrb[0].mxu0 %v315
  %v473 = vpop.f32.mrb[0].mxu0
  %v474 = vadd.f32 %v97, %v473
  %v475 = vpop.f32.mrb[0].mxu0
  %v476 = vpop.f32.mrb[0].mxu0
  %v477 = vadd.f32 %v97, %v476
  %v478 = vpop.f32.mrb[0].mxu0
  %479 = vmatprep.mubr.bf16.mxu0 0
  %480 = vmatmul.mubr.bf16.gmra.mrb[0].mxu0 %v318
  %v481 = vpop.f32.mrb[0].mxu0
  %v482 = vadd.f32 %v97, %v481
  %v483 = vpop.f32.mrb[0].mxu0
  %v484 = vpop.f32.mrb[0].mxu0
  %v485 = vadd.f32 %v97, %v484
  %v486 = vpop.f32.mrb[0].mxu0
  %487 = vmatprep.mubr.bf16.mxu0 0
  %488 = vmatmul.mubr.bf16.gmra.mrb[0].mxu0 %v321
  %v489 = vpop.f32.mrb[0].mxu0
  %v490 = vadd.f32 %v97, %v489
  %v491 = vpop.f32.mrb[0].mxu0
  %v492 = vpop.f32.mrb[0].mxu0
  %v493 = vadd.f32 %v97, %v492
  %v494 = vpop.f32.mrb[0].mxu0
  %495 = vmatprep.mubr.bf16.mxu0 0
  %496 = vmatmul.mubr.bf16.gmra.mrb[0].mxu0 %v324
  %v497 = vpop.f32.mrb[0].mxu0
  %v498 = vadd.f32 %v97, %v497
  %v499 = vpop.f32.mrb[0].mxu0
  %v500 = vpop.f32.mrb[0].mxu0
  %v501 = vadd.f32 %v97, %v500
  %v502 = vpop.f32.mrb[0].mxu0
  %503 = vmatprep.mubr.bf16.mxu0 0
  %504 = vmatmul.mubr.bf16.gmra.mrb[0].mxu0 %v327
  %v505 = vpop.f32.mrb[0].mxu0
  %v506 = vadd.f32 %v97, %v505
  %v507 = vpop.f32.mrb[0].mxu0
  %v508 = vpop.f32.mrb[0].mxu0
  %v509 = vadd.f32 %v97, %v508
  %v510 = vpop.f32.mrb[0].mxu0
  %511 = vmatprep.mubr.bf16.mxu0 0
  %512 = vmatmul.mubr.bf16.gmra.mrb[0].mxu0 %v330
  %v513 = vpop.f32.mrb[0].mxu0
  %v514 = vadd.f32 %v97, %v513
  %v515 = vpop.f32.mrb[0].mxu0
  %v516 = vpop.f32.mrb[0].mxu0
  %v517 = vadd.f32 %v97, %v516
  %v518 = vpop.f32.mrb[0].mxu0
  %519 = vmatprep.mubr.bf16.mxu0 0
  %520 = vmatmul.mubr.bf16.gmra.mrb[0].mxu0 %v333
  %v521 = vpop.f32.mrb[0].mxu0
  %v522 = vadd.f32 %v97, %v521
  %v523 = vpop.f32.mrb[0].mxu0
  %v524 = vpop.f32.mrb[0].mxu0
  %v525 = vadd.f32 %v97, %v524
  %v526 = vpop.f32.mrb[0].mxu0
  %527 = vmatprep.mubr.bf16.mxu0 0
  %528 = vmatmul.mubr.bf16.gmra.mrb[0].mxu0 %v336
  %v529 = vpop.f32.mrb[0].mxu0
  %v530 = vadd.f32 %v97, %v529
  %v531 = vpop.f32.mrb[0].mxu0
  %v532 = vpop.f32.mrb[0].mxu0
  %v533 = vadd.f32 %v97, %v532
  %v534 = vpop.f32.mrb[0].mxu0
  %535 = vmatprep.mubr.bf16.mxu0 0
  %536 = vmatmul.mubr.bf16.gmra.mrb[0].mxu0 %v339
  %v537 = vpop.f32.mrb[0].mxu0
  %v538 = vadd.f32 %v97, %v537
  %v539 = vpop.f32.mrb[0].mxu0
  %v540 = vpop.f32.mrb[0].mxu0
  %v541 = vadd.f32 %v97, %v540
  %v542 = vpop.f32.mrb[0].mxu0
  %543 = vmatprep.mubr.bf16.mxu0 0
  %544 = vmatmul.mubr.bf16.gmra.mrb[0].mxu0 %v342
  %v545 = vpop.f32.mrb[0].mxu0
  %v546 = vadd.f32 %v97, %v545
  %v547 = vpop.f32.mrb[0].mxu0
  %v548 = vpop.f32.mrb[0].mxu0
  %v549 = vadd.f32 %v97, %v548
  %v550 = vpop.f32.mrb[0].mxu0
  %551 = vmatprep.mubr.bf16.mxu0 0
  %552 = vmatmul.mubr.bf16.gmra.mrb[0].mxu0 %v345
  %v553 = vpop.f32.mrb[0].mxu0
  %v554 = vadd.f32 %v97, %v553
  %v555 = vpop.f32.mrb[0].mxu0
  %v556 = vpop.f32.mrb[0].mxu0
  %v557 = vadd.f32 %v97, %v556
  %v558 = vpop.f32.mrb[0].mxu0
  %559 = vmatprep.mubr.bf16.mxu0 0
  %560 = vmatmul.mubr.bf16.gmra.mrb[0].mxu0 %v348
  %v561 = vpop.f32.mrb[0].mxu0
  %v562 = vadd.f32 %v97, %v561
  %v563 = vpop.f32.mrb[0].mxu0
  %v564 = vpop.f32.mrb[0].mxu0
  %v565 = vadd.f32 %v97, %v564
  %v566 = vpop.f32.mrb[0].mxu0
  %567 = vmatprep.mubr.bf16.mxu0 0
  %568 = vmatmul.mubr.bf16.gmra.mrb[0].mxu0 %v351
  %v569 = vpop.f32.mrb[0].mxu0
  %v570 = vadd.f32 %v97, %v569
  %v571 = vpop.f32.mrb[0].mxu0
  %v572 = vpop.f32.mrb[0].mxu0
  %v573 = vadd.f32 %v97, %v572
  %v574 = vpop.f32.mrb[0].mxu0
  %575 = vmatprep.mubr.bf16.mxu0 0
  %576 = vmatmul.mubr.bf16.gmra.mrb[0].mxu0 %v354
  %v577 = vpop.f32.mrb[0].mxu0
  %v578 = vadd.f32 %v97, %v577
  %v579 = vpop.f32.mrb[0].mxu0
  %v580 = vpop.f32.mrb[0].mxu0
  %v581 = vadd.f32 %v97, %v580
  %v582 = vpop.f32.mrb[0].mxu0
  %583 = vmatprep.mubr.bf16.mxu0 0
  %584 = vmatmul.mubr.bf16.gmra.mrb[0].mxu0 %v357
  %v585 = vpop.f32.mrb[0].mxu0
  %v586 = vadd.f32 %v97, %v585
  %v587 = vpop.f32.mrb[0].mxu0
  %v588 = vpop.f32.mrb[0].mxu0
  %v589 = vadd.f32 %v97, %v588
  %v590 = vpop.f32.mrb[0].mxu0
  %591 = vmatprep.mubr.bf16.mxu0 0
  %592 = vmatmul.mubr.bf16.gmra.mrb[0].mxu0 %v360
  %v593 = vpop.f32.mrb[0].mxu0
  %v594 = vadd.f32 %v97, %v593
  %v595 = vpop.f32.mrb[0].mxu0
  %v596 = vpop.f32.mrb[0].mxu0
  %v597 = vadd.f32 %v97, %v596
  %v598 = vpop.f32.mrb[0].mxu0
  %599 = vmatprep.mubr.bf16.mxu0 0
  %600 = vmatmul.mubr.bf16.gmra.mrb[0].mxu0 %v363
  %v601 = vpop.f32.mrb[0].mxu0
  %v602 = vadd.f32 %v97, %v601
  %v603 = vpop.f32.mrb[0].mxu0
  %v604 = vpop.f32.mrb[0].mxu0
  %v605 = vadd.f32 %v97, %v604
  %v606 = vpop.f32.mrb[0].mxu0
  %607 = vmatprep.mubr.bf16.mxu0 0
  %608 = vmatmul.mubr.bf16.gmra.mrb[0].mxu0 %v366
  %v609 = vpop.f32.mrb[0].mxu0
  %v610 = vadd.f32 %v97, %v609
  %v611 = vpop.f32.mrb[0].mxu0
  %v612 = vpop.f32.mrb[0].mxu0
  %v613 = vadd.f32 %v97, %v612
  %v614 = vpop.f32.mrb[0].mxu0
  %615 = vmatprep.mubr.bf16.mxu0 0
  %616 = vmatmul.mubr.bf16.gmra.mrb[0].mxu0 %v369
  %v617 = vpop.f32.mrb[0].mxu0
  %v618 = vadd.f32 %v97, %v617
  %v619 = vpop.f32.mrb[0].mxu0
  %v620 = vpop.f32.mrb[0].mxu0
  %v621 = vadd.f32 %v97, %v620
  %v622 = vpop.f32.mrb[0].mxu0
  %623 = vmatprep.mubr.bf16.mxu0 0
  %624 = vmatmul.mubr.bf16.gmra.mrb[0].mxu0 %v372
  %v625 = vpop.f32.mrb[0].mxu0
  %v626 = vadd.f32 %v97, %v625
  %v627 = vpop.f32.mrb[0].mxu0
  %v628 = vpop.f32.mrb[0].mxu0
  %v629 = vadd.f32 %v97, %v628
  %v630 = vpop.f32.mrb[0].mxu0
  %631 = vmatprep.mubr.bf16.mxu0 0
  %632 = vmatmul.mubr.bf16.gmra.mrb[0].mxu0 %v375
  %v633 = vpop.f32.mrb[0].mxu0
  %v634 = vadd.f32 %v97, %v633
  %v635 = vpop.f32.mrb[0].mxu0
  %v636 = vpop.f32.mrb[0].mxu0
  %v637 = vadd.f32 %v97, %v636
  %v638 = vpop.f32.mrb[0].mxu0
  %639 = vmatprep.mubr.bf16.mxu0 0
  %640 = vmatmul.mubr.bf16.gmra.mrb[0].mxu0 %v378
  %v641 = vpop.f32.mrb[0].mxu0
  %v642 = vadd.f32 %v97, %v641
  %v643 = vpop.f32.mrb[0].mxu0
  %v644 = vpop.f32.mrb[0].mxu0
  %v645 = vadd.f32 %v97, %v644
  %v646 = vpop.f32.mrb[0].mxu0
  %647 = vmatprep.mubr.bf16.mxu0 0
  %648 = vmatmul.mubr.bf16.gmra.mrb[0].mxu0 %v381
  %v649 = vpop.f32.mrb[0].mxu0
  %v650 = vadd.f32 %v97, %v649
  %v651 = vpop.f32.mrb[0].mxu0
  %v652 = vpop.f32.mrb[0].mxu0
  %v653 = vadd.f32 %v97, %v652
  %v654 = vpop.f32.mrb[0].mxu0
  %655 = vmatprep.mubr.bf16.mxu0 0
  %656 = vmatmul.mubr.bf16.gmra.mrb[0].mxu0 %v384
  %v657 = vpop.f32.mrb[0].mxu0
  %v658 = vadd.f32 %v97, %v657
  %v659 = vpop.f32.mrb[0].mxu0
  %v660 = vpop.f32.mrb[0].mxu0
  %v661 = vadd.f32 %v97, %v660
  %v662 = vpop.f32.mrb[0].mxu0
  %663 = vmatprep.mubr.bf16.mxu0 0
  %664 = vmatmul.mubr.bf16.gmra.mrb[0].mxu0 %v387
  %v665 = vpop.f32.mrb[0].mxu0
  %v666 = vadd.f32 %v97, %v665
  %v667 = vpop.f32.mrb[0].mxu0
  %v668 = vpop.f32.mrb[0].mxu0
  %v669 = vadd.f32 %v97, %v668
  %v670 = vpop.f32.mrb[0].mxu0
  %671 = vmatprep.mubr.bf16.mxu0 0
  %672 = vmatmul.mubr.bf16.gmra.mrb[0].mxu0 %v390
  %v673 = vpop.f32.mrb[0].mxu0
  %v674 = vadd.f32 %v97, %v673
  %v675 = vpop.f32.mrb[0].mxu0
  %v676 = vpop.f32.mrb[0].mxu0
  %v677 = vadd.f32 %v97, %v676
  %v678 = vpop.f32.mrb[0].mxu0
  %679 = vmatprep.mubr.bf16.mxu0 0
  %680 = vmatmul.mubr.bf16.gmra.mrb[0].mxu0 %v393
  %v681 = vpop.f32.mrb[0].mxu0
  %v682 = vadd.f32 %v97, %v681
  %v683 = vpop.f32.mrb[0].mxu0
  %v684 = vpop.f32.mrb[0].mxu0
  %v685 = vadd.f32 %v97, %v684
  %v686 = vpop.f32.mrb[0].mxu0
  %687 = vdwg.mxu0
  %v688 = vmax.f32 %v434, 0.0
  %v689 = vmax.f32 %v437, 0.0
  %v690 = vmax.f32 %v442, 0.0
  %v691 = vmax.f32 %v445, 0.0
  %v692 = vmax.f32 %v450, 0.0
  %v693 = vmax.f32 %v453, 0.0
  %v694 = vmax.f32 %v458, 0.0
  %v695 = vmax.f32 %v461, 0.0
  %v696 = vmax.f32 %v466, 0.0
  %v697 = vmax.f32 %v469, 0.0
  %v698 = vmax.f32 %v474, 0.0
  %v699 = vmax.f32 %v477, 0.0
  %v700 = vmax.f32 %v482, 0.0
  %v701 = vmax.f32 %v485, 0.0
  %v702 = vmax.f32 %v490, 0.0
  %v703 = vmax.f32 %v493, 0.0
  %v704 = vmax.f32 %v498, 0.0
  %v705 = vmax.f32 %v501, 0.0
  %v706 = vmax.f32 %v506, 0.0
  %v707 = vmax.f32 %v509, 0.0
  %v708 = vmax.f32 %v514, 0.0
  %v709 = vmax.f32 %v517, 0.0
  %v710 = vmax.f32 %v522, 0.0
  %v711 = vmax.f32 %v525, 0.0
  %v712 = vmax.f32 %v530, 0.0
  %v713 = vmax.f32 %v533, 0.0
  %v714 = vmax.f32 %v538, 0.0
  %v715 = vmax.f32 %v541, 0.0
  %v716 = vmax.f32 %v546, 0.0
  %v717 = vmax.f32 %v549, 0.0
  %v718 = vmax.f32 %v554, 0.0
  %v719 = vmax.f32 %v557, 0.0
  %v720 = vmax.f32 %v562, 0.0
  %v721 = vmax.f32 %v565, 0.0
  %v722 = vmax.f32 %v570, 0.0
  %v723 = vmax.f32 %v573, 0.0
  %v724 = vmax.f32 %v578, 0.0
  %v725 = vmax.f32 %v581, 0.0
  %v726 = vmax.f32 %v586, 0.0
  %v727 = vmax.f32 %v589, 0.0
  %v728 = vmax.f32 %v594, 0.0
  %v729 = vmax.f32 %v597, 0.0
  %v730 = vmax.f32 %v602, 0.0
  %v731 = vmax.f32 %v605, 0.0
  %v732 = vmax.f32 %v610, 0.0
  %v733 = vmax.f32 %v613, 0.0
  %v734 = vmax.f32 %v618, 0.0
  %v735 = vmax.f32 %v621, 0.0
  %v736 = vmax.f32 %v626, 0.0
  %v737 = vmax.f32 %v629, 0.0
  %v738 = vmax.f32 %v634, 0.0
  %v739 = vmax.f32 %v637, 0.0
  %v740 = vmax.f32 %v642, 0.0
  %v741 = vmax.f32 %v645, 0.0
  %v742 = vmax.f32 %v650, 0.0
  %v743 = vmax.f32 %v653, 0.0
  %v744 = vmax.f32 %v658, 0.0
  %v745 = vmax.f32 %v661, 0.0
  %v746 = vmax.f32 %v666, 0.0
  %v747 = vmax.f32 %v669, 0.0
  %v748 = vmax.f32 %v674, 0.0
  %v749 = vmax.f32 %v677, 0.0
  %v750 = vmax.f32 %v682, 0.0
  %v751 = vmax.f32 %v685, 0.0
  %v752 = vpack.c.bf16 %v689, %v688
  %v753 = vpack.c.bf16 %v691, %v690
  %v754 = vpack.c.bf16 %v693, %v692
  %v755 = vpack.c.bf16 %v695, %v694
  %v756 = vpack.c.bf16 %v697, %v696
  %v757 = vpack.c.bf16 %v699, %v698
  %v758 = vpack.c.bf16 %v701, %v700
  %v759 = vpack.c.bf16 %v703, %v702
  %v760 = vpack.c.bf16 %v705, %v704
  %v761 = vpack.c.bf16 %v707, %v706
  %v762 = vpack.c.bf16 %v709, %v708
  %v763 = vpack.c.bf16 %v711, %v710
  %v764 = vpack.c.bf16 %v713, %v712
  %v765 = vpack.c.bf16 %v715, %v714
  %v766 = vpack.c.bf16 %v717, %v716
  %v767 = vpack.c.bf16 %v719, %v718
  %v768 = vpack.c.bf16 %v721, %v720
  %v769 = vpack.c.bf16 %v723, %v722
  %v770 = vpack.c.bf16 %v725, %v724
  %v771 = vpack.c.bf16 %v727, %v726
  %v772 = vpack.c.bf16 %v729, %v728
  %v773 = vpack.c.bf16 %v731, %v730
  %v774 = vpack.c.bf16 %v733, %v732
  %v775 = vpack.c.bf16 %v735, %v734
  %v776 = vpack.c.bf16 %v737, %v736
  %v777 = vpack.c.bf16 %v739, %v738
  %v778 = vpack.c.bf16 %v741, %v740
  %v779 = vpack.c.bf16 %v743, %v742
  %v780 = vpack.c.bf16 %v745, %v744
  %v781 = vpack.c.bf16 %v747, %v746
  %v782 = vpack.c.bf16 %v749, %v748
  %v783 = vpack.c.bf16 %v751, %v750
  %v816 = vunpack.c.l.b16 %v752
  %v817 = vunpack.c.h.b16 %v752
  %v818 = vunpack.c.l.b16 %v753
  %v819 = vunpack.c.h.b16 %v753
  %v820 = vunpack.c.l.b16 %v754
  %v821 = vunpack.c.h.b16 %v754
  %v822 = vunpack.c.l.b16 %v755
  %v823 = vunpack.c.h.b16 %v755
  %v824 = vunpack.c.l.b16 %v756
  %v825 = vunpack.c.h.b16 %v756
  %v826 = vunpack.c.l.b16 %v757
  %v827 = vunpack.c.h.b16 %v757
  %v828 = vunpack.c.l.b16 %v758
  %v829 = vunpack.c.h.b16 %v758
  %v830 = vunpack.c.l.b16 %v759
  %v831 = vunpack.c.h.b16 %v759
  %v832 = vunpack.c.l.b16 %v760
  %v833 = vunpack.c.h.b16 %v760
  %v834 = vunpack.c.l.b16 %v761
  %v835 = vunpack.c.h.b16 %v761
  %v836 = vunpack.c.l.b16 %v762
  %v837 = vunpack.c.h.b16 %v762
  %v838 = vunpack.c.l.b16 %v763
  %v839 = vunpack.c.h.b16 %v763
  %v840 = vunpack.c.l.b16 %v764
  %v841 = vunpack.c.h.b16 %v764
  %v842 = vunpack.c.l.b16 %v765
  %v843 = vunpack.c.h.b16 %v765
  %v844 = vunpack.c.l.b16 %v766
  %v845 = vunpack.c.h.b16 %v766
  %v846 = vunpack.c.l.b16 %v767
  %v847 = vunpack.c.h.b16 %v767
  %v848 = vunpack.c.l.b16 %v768
  %v849 = vunpack.c.h.b16 %v768
  %v850 = vunpack.c.l.b16 %v769
  %v851 = vunpack.c.h.b16 %v769
  %v852 = vunpack.c.l.b16 %v770
  %v853 = vunpack.c.h.b16 %v770
  %v854 = vunpack.c.l.b16 %v771
  %v855 = vunpack.c.h.b16 %v771
  %v856 = vunpack.c.l.b16 %v772
  %v857 = vunpack.c.h.b16 %v772
  %v858 = vunpack.c.l.b16 %v773
  %v859 = vunpack.c.h.b16 %v773
  %v860 = vunpack.c.l.b16 %v774
  %v861 = vunpack.c.h.b16 %v774
  %v862 = vunpack.c.l.b16 %v775
  %v863 = vunpack.c.h.b16 %v775
  %v864 = vunpack.c.l.b16 %v776
  %v865 = vunpack.c.h.b16 %v776
  %v866 = vunpack.c.l.b16 %v777
  %v867 = vunpack.c.h.b16 %v777
  %v868 = vunpack.c.l.b16 %v778
  %v869 = vunpack.c.h.b16 %v778
  %v870 = vunpack.c.l.b16 %v779
  %v871 = vunpack.c.h.b16 %v779
  %v872 = vunpack.c.l.b16 %v780
  %v873 = vunpack.c.h.b16 %v780
  %v874 = vunpack.c.l.b16 %v781
  %v875 = vunpack.c.h.b16 %v781
  %v876 = vunpack.c.l.b16 %v782
  %v877 = vunpack.c.h.b16 %v782
  %v878 = vunpack.c.l.b16 %v783
  %v879 = vunpack.c.h.b16 %v783
  %v880 = vpack.c.b16 %v816, %v816
  %v881 = vpack.c.b16 %v817, %v817
  %v882 = vpack.c.b16 %v818, %v818
  %v883 = vpack.c.b16 %v819, %v819
  %v884 = vpack.c.b16 %v820, %v820
  %v885 = vpack.c.b16 %v821, %v821
  %v886 = vpack.c.b16 %v822, %v822
  %v887 = vpack.c.b16 %v823, %v823
  %v888 = vpack.c.b16 %v824, %v824
  %v889 = vpack.c.b16 %v825, %v825
  %v890 = vpack.c.b16 %v826, %v826
  %v891 = vpack.c.b16 %v827, %v827
  %v892 = vpack.c.b16 %v828, %v828
  %v893 = vpack.c.b16 %v829, %v829
  %v894 = vpack.c.b16 %v830, %v830
  %v895 = vpack.c.b16 %v831, %v831
  %v896 = vpack.c.b16 %v832, %v832
  %v897 = vpack.c.b16 %v833, %v833
  %v898 = vpack.c.b16 %v834, %v834
  %v899 = vpack.c.b16 %v835, %v835
  %v900 = vpack.c.b16 %v836, %v836
  %v901 = vpack.c.b16 %v837, %v837
  %v902 = vpack.c.b16 %v838, %v838
  %v903 = vpack.c.b16 %v839, %v839
  %v904 = vpack.c.b16 %v840, %v840
  %v905 = vpack.c.b16 %v841, %v841
  %v906 = vpack.c.b16 %v842, %v842
  %v907 = vpack.c.b16 %v843, %v843
  %v908 = vpack.c.b16 %v844, %v844
  %v909 = vpack.c.b16 %v845, %v845
  %v910 = vpack.c.b16 %v846, %v846
  %v911 = vpack.c.b16 %v847, %v847
  %v912 = vpack.c.b16 %v848, %v848
  %v913 = vpack.c.b16 %v849, %v849
  %v914 = vpack.c.b16 %v850, %v850
  %v915 = vpack.c.b16 %v851, %v851
  %v916 = vpack.c.b16 %v852, %v852
  %v917 = vpack.c.b16 %v853, %v853
  %v918 = vpack.c.b16 %v854, %v854
  %v919 = vpack.c.b16 %v855, %v855
  %v920 = vpack.c.b16 %v856, %v856
  %v921 = vpack.c.b16 %v857, %v857
  %v922 = vpack.c.b16 %v858, %v858
  %v923 = vpack.c.b16 %v859, %v859
  %v924 = vpack.c.b16 %v860, %v860
  %v925 = vpack.c.b16 %v861, %v861
  %v926 = vpack.c.b16 %v862, %v862
  %v927 = vpack.c.b16 %v863, %v863
  %v928 = vpack.c.b16 %v864, %v864
  %v929 = vpack.c.b16 %v865, %v865
  %v930 = vpack.c.b16 %v866, %v866
  %v931 = vpack.c.b16 %v867, %v867
  %v932 = vpack.c.b16 %v868, %v868
  %v933 = vpack.c.b16 %v869, %v869
  %v934 = vpack.c.b16 %v870, %v870
  %v935 = vpack.c.b16 %v871, %v871
  %v936 = vpack.c.b16 %v872, %v872
  %v937 = vpack.c.b16 %v873, %v873
  %v938 = vpack.c.b16 %v874, %v874
  %v939 = vpack.c.b16 %v875, %v875
  %v940 = vpack.c.b16 %v876, %v876
  %v941 = vpack.c.b16 %v877, %v877
  %v942 = vpack.c.b16 %v878, %v878
  %v943 = vpack.c.b16 %v879, %v879
  %vm1008 = vcmask 60416
  %1009 = vst.msk [vmem:[%s3] sm:$0xf] %vm1008, %v880
  %1010 = vst.msk [vmem:[%s3 + $0x4] sm:$0xf] %vm1008, %v881
  %1011 = vst.msk [vmem:[%s3 + $0x8] sm:$0xf] %vm1008, %v882
  %1012 = vst.msk [vmem:[%s3 + $0xc] sm:$0xf] %vm1008, %v883
  %1013 = vst.msk [vmem:[%s3 + $0x10] sm:$0xf] %vm1008, %v884
  %1014 = vst.msk [vmem:[%s3 + $0x14] sm:$0xf] %vm1008, %v885
  %1015 = vst.msk [vmem:[%s3 + $0x18] sm:$0xf] %vm1008, %v886
  %1016 = vst.msk [vmem:[%s3 + $0x1c] sm:$0xf] %vm1008, %v887
  %1017 = vst.msk [vmem:[%s3 + $0x20] sm:$0xf] %vm1008, %v888
  %1018 = vst.msk [vmem:[%s3 + $0x24] sm:$0xf] %vm1008, %v889
  %1019 = vst.msk [vmem:[%s3 + $0x28] sm:$0xf] %vm1008, %v890
  %1020 = vst.msk [vmem:[%s3 + $0x2c] sm:$0xf] %vm1008, %v891
  %1021 = vst.msk [vmem:[%s3 + $0x30] sm:$0xf] %vm1008, %v892
  %1022 = vst.msk [vmem:[%s3 + $0x34] sm:$0xf] %vm1008, %v893
  %1023 = vst.msk [vmem:[%s3 + $0x38] sm:$0xf] %vm1008, %v894
  %1024 = vst.msk [vmem:[%s3 + $0x3c] sm:$0xf] %vm1008, %v895
  %1025 = vst.msk [vmem:[%s3 + $0x40] sm:$0xf] %vm1008, %v896
  %1026 = vst.msk [vmem:[%s3 + $0x44] sm:$0xf] %vm1008, %v897
  %1027 = vst.msk [vmem:[%s3 + $0x48] sm:$0xf] %vm1008, %v898
  %1028 = vst.msk [vmem:[%s3 + $0x4c] sm:$0xf] %vm1008, %v899
  %1029 = vst.msk [vmem:[%s3 + $0x50] sm:$0xf] %vm1008, %v900
  %1030 = vst.msk [vmem:[%s3 + $0x54] sm:$0xf] %vm1008, %v901
  %1031 = vst.msk [vmem:[%s3 + $0x58] sm:$0xf] %vm1008, %v902
  %1032 = vst.msk [vmem:[%s3 + $0x5c] sm:$0xf] %vm1008, %v903
  %1033 = vst.msk [vmem:[%s3 + $0x60] sm:$0xf] %vm1008, %v904
  %1034 = vst.msk [vmem:[%s3 + $0x64] sm:$0xf] %vm1008, %v905
  %1035 = vst.msk [vmem:[%s3 + $0x68] sm:$0xf] %vm1008, %v906
  %1036 = vst.msk [vmem:[%s3 + $0x6c] sm:$0xf] %vm1008, %v907
  %1037 = vst.msk [vmem:[%s3 + $0x70] sm:$0xf] %vm1008, %v908
  %1038 = vst.msk [vmem:[%s3 + $0x74] sm:$0xf] %vm1008, %v909
  %1039 = vst.msk [vmem:[%s3 + $0x78] sm:$0xf] %vm1008, %v910
  %1040 = vst.msk [vmem:[%s3 + $0x7c] sm:$0xf] %vm1008, %v911
  %1041 = vst.msk [vmem:[%s3 + $0x80] sm:$0xf] %vm1008, %v912
  %1042 = vst.msk [vmem:[%s3 + $0x84] sm:$0xf] %vm1008, %v913
  %1043 = vst.msk [vmem:[%s3 + $0x88] sm:$0xf] %vm1008, %v914
  %1044 = vst.msk [vmem:[%s3 + $0x8c] sm:$0xf] %vm1008, %v915
  %1045 = vst.msk [vmem:[%s3 + $0x90] sm:$0xf] %vm1008, %v916
  %1046 = vst.msk [vmem:[%s3 + $0x94] sm:$0xf] %vm1008, %v917
  %1047 = vst.msk [vmem:[%s3 + $0x98] sm:$0xf] %vm1008, %v918
  %1048 = vst.msk [vmem:[%s3 + $0x9c] sm:$0xf] %vm1008, %v919
  %1049 = vst.msk [vmem:[%s3 + $0xa0] sm:$0xf] %vm1008, %v920
  %1050 = vst.msk [vmem:[%s3 + $0xa4] sm:$0xf] %vm1008, %v921
  %1051 = vst.msk [vmem:[%s3 + $0xa8] sm:$0xf] %vm1008, %v922
  %1052 = vst.msk [vmem:[%s3 + $0xac] sm:$0xf] %vm1008, %v923
  %1053 = vst.msk [vmem:[%s3 + $0xb0] sm:$0xf] %vm1008, %v924
  %1054 = vst.msk [vmem:[%s3 + $0xb4] sm:$0xf] %vm1008, %v925
  %1055 = vst.msk [vmem:[%s3 + $0xb8] sm:$0xf] %vm1008, %v926
  %1056 = vst.msk [vmem:[%s3 + $0xbc] sm:$0xf] %vm1008, %v927
  %1057 = vst.msk [vmem:[%s3 + $0xc0] sm:$0xf] %vm1008, %v928
  %1058 = vst.msk [vmem:[%s3 + $0xc4] sm:$0xf] %vm1008, %v929
  %1059 = vst.msk [vmem:[%s3 + $0xc8] sm:$0xf] %vm1008, %v930
  %1060 = vst.msk [vmem:[%s3 + $0xcc] sm:$0xf] %vm1008, %v931
  %1061 = vst.msk [vmem:[%s3 + $0xd0] sm:$0xf] %vm1008, %v932
  %1062 = vst.msk [vmem:[%s3 + $0xd4] sm:$0xf] %vm1008, %v933
  %1063 = vst.msk [vmem:[%s3 + $0xd8] sm:$0xf] %vm1008, %v934
  %1064 = vst.msk [vmem:[%s3 + $0xdc] sm:$0xf] %vm1008, %v935
  %1065 = vst.msk [vmem:[%s3 + $0xe0] sm:$0xf] %vm1008, %v936
  %1066 = vst.msk [vmem:[%s3 + $0xe4] sm:$0xf] %vm1008, %v937
  %1067 = vst.msk [vmem:[%s3 + $0xe8] sm:$0xf] %vm1008, %v938
  %1068 = vst.msk [vmem:[%s3 + $0xec] sm:$0xf] %vm1008, %v939
  %1069 = vst.msk [vmem:[%s3 + $0xf0] sm:$0xf] %vm1008, %v940
  %1070 = vst.msk [vmem:[%s3 + $0xf4] sm:$0xf] %vm1008, %v941
  %1071 = vst.msk [vmem:[%s3 + $0xf8] sm:$0xf] %vm1008, %v942
  %1072 = vst.msk [vmem:[%s3 + $0xfc] sm:$0xf] %vm1008, %v943
  // Predicated region
  $region14: #{inception_forward.7} parent=0 // pred_check
    _
  $region15: #{inception_forward.7} parent=0 // pred_check_branch
    %1074 = sbr.rel (0) target = $region17
  $region16: #{inception_forward.7} parent=0 // pred_region
    _
  $region17: #{inception_forward.7} parent=0 // pred_fallthru
    _
  // Predicated region
  $region18: #{inception_forward.7} parent=0 // pred_check
    _
  $region19: #{inception_forward.7} parent=0 // pred_check_branch
    %1076 = sbr.rel (0) target = $region21
  $region20: #{inception_forward.7} parent=0 // pred_region
    _
  $region21: #{inception_forward.7} parent=0 // pred_fallthru
    _

// kernel: inception_forward.6
$region0: #{inception_forward.6}
  #allocation0 [shape = 'u32[]', space=smem, size = 0x4, offset = 0x4, fixed_abs, tag = 'smem constant byte address 0x4 - core index']
  #allocation1 [shape = 'u32[144,128]{1,0:T(1,128)}', space=vmem, size = 0x12000, scoped, tag = 'internal scratch']
  %s0 = inlined_call_operand.vmem [shape: bf16[512,36], index: 0, kind: input, shape index: {}]
  %s1 = inlined_call_operand.vmem [shape: bf16[36,8], index: 1, kind: input, shape index: {}]
  %s2 = inlined_call_operand.vmem [shape: f32[1,8], index: 2, kind: input, shape index: {}]
  %s3 = inlined_call_operand.vmem [shape: bf16[512,8], index: 3, kind: output, shape index: {}]
  %s4 = sld [smem:[#allocation0]]
  $region22: #{inception_forward.6} parent=0
    _
  %s6 = ssub.s32 1, %s4
  %s7 = scalar_select 0, %s6, %s4
  // Predicated region
  $region2: #{inception_forward.6} parent=0 // pred_check
    _
  $region3: #{inception_forward.6} parent=0 // pred_check_branch
    %9 = sbr.rel (0) target = $region5
  $region4: #{inception_forward.6} parent=0 // pred_region
    _
  $region5: #{inception_forward.6} parent=0 // pred_fallthru
    _
  // Predicated region
  $region6: #{inception_forward.6} parent=0 // pred_check
    _
  $region7: #{inception_forward.6} parent=0 // pred_check_branch
    %11 = sbr.rel (0) target = $region9
  $region8: #{inception_forward.6} parent=0 // pred_region
    _
  $region9: #{inception_forward.6} parent=0 // pred_fallthru
    _
  // Predicated region
  $region10: #{inception_forward.6} parent=0 // pred_check
    _
  $region11: #{inception_forward.6} parent=0 // pred_check_branch
    %13 = sbr.rel (0) target = $region13
  $region12: #{inception_forward.6} parent=0 // pred_region
    _
  $region13: #{inception_forward.6} parent=0 // pred_fallthru
    _
  %v15 = vld [vmem:[%s0] sm:$0xf]
  %v16 = vld [vmem:[%s0 + $0x4] sm:$0xf]
  %v17 = vld [vmem:[%s0 + $0x8] sm:$0xf]
  %v18 = vld [vmem:[%s0 + $0xc] sm:$0xf]
  %v19 = vld [vmem:[%s0 + $0x10] sm:$0xf]
  %v20 = vld [vmem:[%s0 + $0x14] sm:$0xf]
  %v21 = vld [vmem:[%s0 + $0x18] sm:$0xf]
  %v22 = vld [vmem:[%s0 + $0x1c] sm:$0xf]
  %v23 = vld [vmem:[%s0 + $0x20] sm:$0xf]
  %v24 = vld [vmem:[%s0 + $0x24] sm:$0xf]
  %v25 = vld [vmem:[%s0 + $0x28] sm:$0xf]
  %v26 = vld [vmem:[%s0 + $0x2c] sm:$0xf]
  %v27 = vld [vmem:[%s0 + $0x30] sm:$0xf]
  %v28 = vld [vmem:[%s0 + $0x34] sm:$0xf]
  %v29 = vld [vmem:[%s0 + $0x38] sm:$0xf]
  %v30 = vld [vmem:[%s0 + $0x3c] sm:$0xf]
  %v31 = vld [vmem:[%s0 + $0x40] sm:$0xf]
  %v32 = vld [vmem:[%s0 + $0x44] sm:$0xf]
  %v33 = vld [vmem:[%s0 + $0x48] sm:$0xf]
  %v34 = vld [vmem:[%s0 + $0x4c] sm:$0xf]
  %v35 = vld [vmem:[%s0 + $0x50] sm:$0xf]
  %v36 = vld [vmem:[%s0 + $0x54] sm:$0xf]
  %v37 = vld [vmem:[%s0 + $0x58] sm:$0xf]
  %v38 = vld [vmem:[%s0 + $0x5c] sm:$0xf]
  %v39 = vld [vmem:[%s0 + $0x60] sm:$0xf]
  %v40 = vld [vmem:[%s0 + $0x64] sm:$0xf]
  %v41 = vld [vmem:[%s0 + $0x68] sm:$0xf]
  %v42 = vld [vmem:[%s0 + $0x6c] sm:$0xf]
  %v43 = vld [vmem:[%s0 + $0x70] sm:$0xf]
  %v44 = vld [vmem:[%s0 + $0x74] sm:$0xf]
  %v45 = vld [vmem:[%s0 + $0x78] sm:$0xf]
  %v46 = vld [vmem:[%s0 + $0x7c] sm:$0xf]
  %v47 = vld [vmem:[%s0 + $0x80] sm:$0xf]
  %v48 = vld [vmem:[%s0 + $0x84] sm:$0xf]
  %v49 = vld [vmem:[%s0 + $0x88] sm:$0xf]
  %v50 = vld [vmem:[%s0 + $0x8c] sm:$0xf]
  %v51 = vld [vmem:[%s0 + $0x90] sm:$0xf]
  %v52 = vld [vmem:[%s0 + $0x94] sm:$0xf]
  %v53 = vld [vmem:[%s0 + $0x98] sm:$0xf]
  %v54 = vld [vmem:[%s0 + $0x9c] sm:$0xf]
  %v55 = vld [vmem:[%s0 + $0xa0] sm:$0xf]
  %v56 = vld [vmem:[%s0 + $0xa4] sm:$0xf]
  %v57 = vld [vmem:[%s0 + $0xa8] sm:$0xf]
  %v58 = vld [vmem:[%s0 + $0xac] sm:$0xf]
  %v59 = vld [vmem:[%s0 + $0xb0] sm:$0xf]
  %v60 = vld [vmem:[%s0 + $0xb4] sm:$0xf]
  %v61 = vld [vmem:[%s0 + $0xb8] sm:$0xf]
  %v62 = vld [vmem:[%s0 + $0xbc] sm:$0xf]
  %v63 = vld [vmem:[%s0 + $0xc0] sm:$0xf]
  %v64 = vld [vmem:[%s0 + $0xc4] sm:$0xf]
  %v65 = vld [vmem:[%s0 + $0xc8] sm:$0xf]
  %v66 = vld [vmem:[%s0 + $0xcc] sm:$0xf]
  %v67 = vld [vmem:[%s0 + $0xd0] sm:$0xf]
  %v68 = vld [vmem:[%s0 + $0xd4] sm:$0xf]
  %v69 = vld [vmem:[%s0 + $0xd8] sm:$0xf]
  %v70 = vld [vmem:[%s0 + $0xdc] sm:$0xf]
  %v71 = vld [vmem:[%s0 + $0xe0] sm:$0xf]
  %v72 = vld [vmem:[%s0 + $0xe4] sm:$0xf]
  %v73 = vld [vmem:[%s0 + $0xe8] sm:$0xf]
  %v74 = vld [vmem:[%s0 + $0xec] sm:$0xf]
  %v75 = vld [vmem:[%s0 + $0xf0] sm:$0xf]
  %v76 = vld [vmem:[%s0 + $0xf4] sm:$0xf]
  %v77 = vld [vmem:[%s0 + $0xf8] sm:$0xf]
  %v78 = vld [vmem:[%s0 + $0xfc] sm:$0xf]
  %v79 = vld [vmem:[%s1] sm:$0xf]
  %v80 = vld [vmem:[%s1 + $0x4] sm:$0xf]
  %v81 = vld [vmem:[%s1 + $0x8] sm:$0xf]
  %v82 = vld [vmem:[%s1 + $0xc] sm:$0xf]
  %v83 = vld [vmem:[%s1 + $0x10] sm:$0x3]
  %v84 = vld [vmem:[%s2] sm:$0x1]
  %v86 = vlaneseq
  %v87 = vshrl.u32 %v86, 7
  %v88 = vsub.s32 0, %v87
  %v89 = vrot.slane %v84, %v88
  %v155 = vunpack.c.l.b16 %v15
  %v156 = vunpack.c.l.b16 %v16
  %v157 = vunpack.c.l.b16 %v17
  %v158 = vunpack.c.l.b16 %v18
  %v159 = vunpack.c.l.b16 %v19
  %v160 = vunpack.c.l.b16 %v20
  %v161 = vunpack.c.l.b16 %v21
  %v162 = vunpack.c.l.b16 %v22
  %v163 = vunpack.c.l.b16 %v23
  %v164 = vunpack.c.l.b16 %v24
  %v165 = vunpack.c.l.b16 %v25
  %v166 = vunpack.c.l.b16 %v26
  %v167 = vunpack.c.l.b16 %v27
  %v168 = vunpack.c.l.b16 %v28
  %v169 = vunpack.c.l.b16 %v29
  %v170 = vunpack.c.l.b16 %v30
  %v171 = vunpack.c.l.b16 %v31
  %v172 = vunpack.c.l.b16 %v32
  %v173 = vunpack.c.l.b16 %v33
  %v174 = vunpack.c.l.b16 %v34
  %v175 = vunpack.c.l.b16 %v35
  %v176 = vunpack.c.l.b16 %v36
  %v177 = vunpack.c.l.b16 %v37
  %v178 = vunpack.c.l.b16 %v38
  %v179 = vunpack.c.l.b16 %v39
  %v180 = vunpack.c.l.b16 %v40
  %v181 = vunpack.c.l.b16 %v41
  %v182 = vunpack.c.l.b16 %v42
  %v183 = vunpack.c.l.b16 %v43
  %v184 = vunpack.c.l.b16 %v44
  %v185 = vunpack.c.l.b16 %v45
  %v186 = vunpack.c.l.b16 %v46
  %v187 = vunpack.c.l.b16 %v47
  %v188 = vunpack.c.l.b16 %v48
  %v189 = vunpack.c.l.b16 %v49
  %v190 = vunpack.c.l.b16 %v50
  %v191 = vunpack.c.l.b16 %v51
  %v192 = vunpack.c.l.b16 %v52
  %v193 = vunpack.c.l.b16 %v53
  %v194 = vunpack.c.l.b16 %v54
  %v195 = vunpack.c.l.b16 %v55
  %v196 = vunpack.c.l.b16 %v56
  %v197 = vunpack.c.l.b16 %v57
  %v198 = vunpack.c.l.b16 %v58
  %v199 = vunpack.c.l.b16 %v59
  %v200 = vunpack.c.l.b16 %v60
  %v201 = vunpack.c.l.b16 %v61
  %v202 = vunpack.c.l.b16 %v62
  %v203 = vunpack.c.l.b16 %v63
  %v204 = vunpack.c.l.b16 %v64
  %v205 = vunpack.c.l.b16 %v65
  %v206 = vunpack.c.l.b16 %v66
  %v207 = vunpack.c.l.b16 %v67
  %v208 = vunpack.c.l.b16 %v68
  %v209 = vunpack.c.l.b16 %v69
  %v210 = vunpack.c.l.b16 %v70
  %v211 = vunpack.c.l.b16 %v71
  %v212 = vunpack.c.l.b16 %v72
  %v213 = vunpack.c.l.b16 %v73
  %v214 = vunpack.c.l.b16 %v74
  %v215 = vunpack.c.l.b16 %v75
  %v216 = vunpack.c.l.b16 %v76
  %v217 = vunpack.c.l.b16 %v77
  %v218 = vunpack.c.l.b16 %v78
  %v219 = vpack.c.b16 %v156, %v155
  %v220 = vpack.c.b16 %v158, %v157
  %v221 = vpack.c.b16 %v160, %v159
  %v222 = vpack.c.b16 %v162, %v161
  %v223 = vpack.c.b16 %v164, %v163
  %v224 = vpack.c.b16 %v166, %v165
  %v225 = vpack.c.b16 %v168, %v167
  %v226 = vpack.c.b16 %v170, %v169
  %v227 = vpack.c.b16 %v172, %v171
  %v228 = vpack.c.b16 %v174, %v173
  %v229 = vpack.c.b16 %v176, %v175
  %v230 = vpack.c.b16 %v178, %v177
  %v231 = vpack.c.b16 %v180, %v179
  %v232 = vpack.c.b16 %v182, %v181
  %v233 = vpack.c.b16 %v184, %v183
  %v234 = vpack.c.b16 %v186, %v185
  %v235 = vpack.c.b16 %v188, %v187
  %v236 = vpack.c.b16 %v190, %v189
  %v237 = vpack.c.b16 %v192, %v191
  %v238 = vpack.c.b16 %v194, %v193
  %v239 = vpack.c.b16 %v196, %v195
  %v240 = vpack.c.b16 %v198, %v197
  %v241 = vpack.c.b16 %v200, %v199
  %v242 = vpack.c.b16 %v202, %v201
  %v243 = vpack.c.b16 %v204, %v203
  %v244 = vpack.c.b16 %v206, %v205
  %v245 = vpack.c.b16 %v208, %v207
  %v246 = vpack.c.b16 %v210, %v209
  %v247 = vpack.c.b16 %v212, %v211
  %v248 = vpack.c.b16 %v214, %v213
  %v249 = vpack.c.b16 %v216, %v215
  %v250 = vpack.c.b16 %v218, %v217
  %v256 = vunpack.c.l.b16 %v79
  %v257 = vunpack.c.l.b16 %v80
  %v258 = vunpack.c.l.b16 %v81
  %v259 = vunpack.c.l.b16 %v82
  %v260 = vunpack.c.l.b16 %v83
  %v261 = vpack.c.b16 %v257, %v256
  %v262 = vpack.c.b16 %v259, %v258
  %v263 = vpack.c.b16 %v260, %v260
  %vm266 = vcmask 293888
  %v268 = vsel %vm266, %v219, 0
  %v271 = vsel %vm266, %v220, 0
  %v274 = vsel %vm266, %v221, 0
  %v277 = vsel %vm266, %v222, 0
  %v280 = vsel %vm266, %v223, 0
  %v283 = vsel %vm266, %v224, 0
  %v286 = vsel %vm266, %v225, 0
  %v289 = vsel %vm266, %v226, 0
  %v292 = vsel %vm266, %v227, 0
  %v295 = vsel %vm266, %v228, 0
  %v298 = vsel %vm266, %v229, 0
  %v301 = vsel %vm266, %v230, 0
  %v304 = vsel %vm266, %v231, 0
  %v307 = vsel %vm266, %v232, 0
  %v310 = vsel %vm266, %v233, 0
  %v313 = vsel %vm266, %v234, 0
  %v316 = vsel %vm266, %v235, 0
  %v319 = vsel %vm266, %v236, 0
  %v322 = vsel %vm266, %v237, 0
  %v325 = vsel %vm266, %v238, 0
  %v328 = vsel %vm266, %v239, 0
  %v331 = vsel %vm266, %v240, 0
  %v334 = vsel %vm266, %v241, 0
  %v337 = vsel %vm266, %v242, 0
  %v340 = vsel %vm266, %v243, 0
  %v343 = vsel %vm266, %v244, 0
  %v346 = vsel %vm266, %v245, 0
  %v349 = vsel %vm266, %v246, 0
  %v352 = vsel %vm266, %v247, 0
  %v355 = vsel %vm266, %v248, 0
  %v358 = vsel %vm266, %v249, 0
  %v361 = vsel %vm266, %v250, 0
  %vm363 = vcmask 1041408
  %v365 = vsel %vm363, %v263, 0
  %367 = vmatprep.subr.bf16.mxu0 0
  %368 = vmatpush1.bf16.msra.mxu0 %v261
  %369 = vmatprep.subr.bf16.mxu0 0
  %370 = vmatpush1.bf16.msra.mxu0 %v262
  %371 = vmatprep.subr.bf16.mxu0 0
  %372 = vmatpush1.bf16.msra.mxu0 %v365
  %373 = vmatprep.subr.bf16.mxu0 0
  %374 = vmatpush1.bf16.msra.mxu0 0
  %375 = vmatprep.subr.bf16.mxu0 0
  %376 = vmatpush1.bf16.msra.mxu0 0
  %377 = vmatprep.subr.bf16.mxu0 0
  %378 = vmatpush1.bf16.msra.mxu0 0
  %379 = vmatprep.subr.bf16.mxu0 0
  %380 = vmatpush1.bf16.msra.mxu0 0
  %381 = vmatprep.subr.bf16.mxu0 0
  %382 = vmatpush1.bf16.msra.mxu0 0
  %383 = vmatprep.subr.bf16.mxu0 0
  %384 = vmatpush1.bf16.msra.mxu0 0
  %385 = vmatprep.subr.bf16.mxu0 0
  %386 = vmatpush1.bf16.msra.mxu0 0
  %387 = vmatprep.subr.bf16.mxu0 0
  %388 = vmatpush1.bf16.msra.mxu0 0
  %389 = vmatprep.subr.bf16.mxu0 0
  %390 = vmatpush1.bf16.msra.mxu0 0
  %391 = vmatprep.subr.bf16.mxu0 0
  %392 = vmatpush1.bf16.msra.mxu0 0
  %393 = vmatprep.subr.bf16.mxu0 0
  %394 = vmatpush1.bf16.msra.mxu0 0
  %395 = vmatprep.subr.bf16.mxu0 0
  %396 = vmatpush1.bf16.msra.mxu0 0
  %397 = vmatprep.subr.bf16.mxu0 0
  %398 = vmatpush1.bf16.msra.mxu0 0
  %399 = vmatprep.mubr.bf16.mxu0 0
  %400 = vmatmul.mubr.bf16.gmra.mrb[0].mxu0 %v268
  %v401 = vpop.f32.mrb[0].mxu0
  %v402 = vadd.f32 %v89, %v401
  %v403 = vpop.f32.mrb[0].mxu0
  %v404 = vpop.f32.mrb[0].mxu0
  %v405 = vadd.f32 %v89, %v404
  %v406 = vpop.f32.mrb[0].mxu0
  %407 = vmatprep.mubr.bf16.mxu0 0
  %408 = vmatmul.mubr.bf16.gmra.mrb[0].mxu0 %v271
  %v409 = vpop.f32.mrb[0].mxu0
  %v410 = vadd.f32 %v89, %v409
  %v411 = vpop.f32.mrb[0].mxu0
  %v412 = vpop.f32.mrb[0].mxu0
  %v413 = vadd.f32 %v89, %v412
  %v414 = vpop.f32.mrb[0].mxu0
  %415 = vmatprep.mubr.bf16.mxu0 0
  %416 = vmatmul.mubr.bf16.gmra.mrb[0].mxu0 %v274
  %v417 = vpop.f32.mrb[0].mxu0
  %v418 = vadd.f32 %v89, %v417
  %v419 = vpop.f32.mrb[0].mxu0
  %v420 = vpop.f32.mrb[0].mxu0
  %v421 = vadd.f32 %v89, %v420
  %v422 = vpop.f32.mrb[0].mxu0
  %423 = vmatprep.mubr.bf16.mxu0 0
  %424 = vmatmul.mubr.bf16.gmra.mrb[0].mxu0 %v277
  %v425 = vpop.f32.mrb[0].mxu0
  %v426 = vadd.f32 %v89, %v425
  %v427 = vpop.f32.mrb[0].mxu0
  %v428 = vpop.f32.mrb[0].mxu0
  %v429 = vadd.f32 %v89, %v428
  %v430 = vpop.f32.mrb[0].mxu0
  %431 = vmatprep.mubr.bf16.mxu0 0
  %432 = vmatmul.mubr.bf16.gmra.mrb[0].mxu0 %v280
  %v433 = vpop.f32.mrb[0].mxu0
  %v434 = vadd.f32 %v89, %v433
  %v435 = vpop.f32.mrb[0].mxu0
  %v436 = vpop.f32.mrb[0].mxu0
  %v437 = vadd.f32 %v89, %v436
  %v438 = vpop.f32.mrb[0].mxu0
  %439 = vmatprep.mubr.bf16.mxu0 0
  %440 = vmatmul.mubr.bf16.gmra.mrb[0].mxu0 %v283
  %v441 = vpop.f32.mrb[0].mxu0
  %v442 = vadd.f32 %v89, %v441
  %v443 = vpop.f32.mrb[0].mxu0
  %v444 = vpop.f32.mrb[0].mxu0
  %v445 = vadd.f32 %v89, %v444
  %v446 = vpop.f32.mrb[0].mxu0
  %447 = vmatprep.mubr.bf16.mxu0 0
  %448 = vmatmul.mubr.bf16.gmra.mrb[0].mxu0 %v286
  %v449 = vpop.f32.mrb[0].mxu0
  %v450 = vadd.f32 %v89, %v449
  %v451 = vpop.f32.mrb[0].mxu0
  %v452 = vpop.f32.mrb[0].mxu0
  %v453 = vadd.f32 %v89, %v452
  %v454 = vpop.f32.mrb[0].mxu0
  %455 = vmatprep.mubr.bf16.mxu0 0
  %456 = vmatmul.mubr.bf16.gmra.mrb[0].mxu0 %v289
  %v457 = vpop.f32.mrb[0].mxu0
  %v458 = vadd.f32 %v89, %v457
  %v459 = vpop.f32.mrb[0].mxu0
  %v460 = vpop.f32.mrb[0].mxu0
  %v461 = vadd.f32 %v89, %v460
  %v462 = vpop.f32.mrb[0].mxu0
  %463 = vmatprep.mubr.bf16.mxu0 0
  %464 = vmatmul.mubr.bf16.gmra.mrb[0].mxu0 %v292
  %v465 = vpop.f32.mrb[0].mxu0
  %v466 = vadd.f32 %v89, %v465
  %v467 = vpop.f32.mrb[0].mxu0
  %v468 = vpop.f32.mrb[0].mxu0
  %v469 = vadd.f32 %v89, %v468
  %v470 = vpop.f32.mrb[0].mxu0
  %471 = vmatprep.mubr.bf16.mxu0 0
  %472 = vmatmul.mubr.bf16.gmra.mrb[0].mxu0 %v295
  %v473 = vpop.f32.mrb[0].mxu0
  %v474 = vadd.f32 %v89, %v473
  %v475 = vpop.f32.mrb[0].mxu0
  %v476 = vpop.f32.mrb[0].mxu0
  %v477 = vadd.f32 %v89, %v476
  %v478 = vpop.f32.mrb[0].mxu0
  %479 = vmatprep.mubr.bf16.mxu0 0
  %480 = vmatmul.mubr.bf16.gmra.mrb[0].mxu0 %v298
  %v481 = vpop.f32.mrb[0].mxu0
  %v482 = vadd.f32 %v89, %v481
  %v483 = vpop.f32.mrb[0].mxu0
  %v484 = vpop.f32.mrb[0].mxu0
  %v485 = vadd.f32 %v89, %v484
  %v486 = vpop.f32.mrb[0].mxu0
  %487 = vmatprep.mubr.bf16.mxu0 0
  %488 = vmatmul.mubr.bf16.gmra.mrb[0].mxu0 %v301
  %v489 = vpop.f32.mrb[0].mxu0
  %v490 = vadd.f32 %v89, %v489
  %v491 = vpop.f32.mrb[0].mxu0
  %v492 = vpop.f32.mrb[0].mxu0
  %v493 = vadd.f32 %v89, %v492
  %v494 = vpop.f32.mrb[0].mxu0
  %495 = vmatprep.mubr.bf16.mxu0 0
  %496 = vmatmul.mubr.bf16.gmra.mrb[0].mxu0 %v304
  %v497 = vpop.f32.mrb[0].mxu0
  %v498 = vadd.f32 %v89, %v497
  %v499 = vpop.f32.mrb[0].mxu0
  %v500 = vpop.f32.mrb[0].mxu0
  %v501 = vadd.f32 %v89, %v500
  %v502 = vpop.f32.mrb[0].mxu0
  %503 = vmatprep.mubr.bf16.mxu0 0
  %504 = vmatmul.mubr.bf16.gmra.mrb[0].mxu0 %v307
  %v505 = vpop.f32.mrb[0].mxu0
  %v506 = vadd.f32 %v89, %v505
  %v507 = vpop.f32.mrb[0].mxu0
  %v508 = vpop.f32.mrb[0].mxu0
  %v509 = vadd.f32 %v89, %v508
  %v510 = vpop.f32.mrb[0].mxu0
  %511 = vmatprep.mubr.bf16.mxu0 0
  %512 = vmatmul.mubr.bf16.gmra.mrb[0].mxu0 %v310
  %v513 = vpop.f32.mrb[0].mxu0
  %v514 = vadd.f32 %v89, %v513
  %v515 = vpop.f32.mrb[0].mxu0
  %v516 = vpop.f32.mrb[0].mxu0
  %v517 = vadd.f32 %v89, %v516
  %v518 = vpop.f32.mrb[0].mxu0
  %519 = vmatprep.mubr.bf16.mxu0 0
  %520 = vmatmul.mubr.bf16.gmra.mrb[0].mxu0 %v313
  %v521 = vpop.f32.mrb[0].mxu0
  %v522 = vadd.f32 %v89, %v521
  %v523 = vpop.f32.mrb[0].mxu0
  %v524 = vpop.f32.mrb[0].mxu0
  %v525 = vadd.f32 %v89, %v524
  %v526 = vpop.f32.mrb[0].mxu0
  %527 = vmatprep.mubr.bf16.mxu0 0
  %528 = vmatmul.mubr.bf16.gmra.mrb[0].mxu0 %v316
  %v529 = vpop.f32.mrb[0].mxu0
  %v530 = vadd.f32 %v89, %v529
  %v531 = vpop.f32.mrb[0].mxu0
  %v532 = vpop.f32.mrb[0].mxu0
  %v533 = vadd.f32 %v89, %v532
  %v534 = vpop.f32.mrb[0].mxu0
  %535 = vmatprep.mubr.bf16.mxu0 0
  %536 = vmatmul.mubr.bf16.gmra.mrb[0].mxu0 %v319
  %v537 = vpop.f32.mrb[0].mxu0
  %v538 = vadd.f32 %v89, %v537
  %v539 = vpop.f32.mrb[0].mxu0
  %v540 = vpop.f32.mrb[0].mxu0
  %v541 = vadd.f32 %v89, %v540
  %v542 = vpop.f32.mrb[0].mxu0
  %543 = vmatprep.mubr.bf16.mxu0 0
  %544 = vmatmul.mubr.bf16.gmra.mrb[0].mxu0 %v322
  %v545 = vpop.f32.mrb[0].mxu0
  %v546 = vadd.f32 %v89, %v545
  %v547 = vpop.f32.mrb[0].mxu0
  %v548 = vpop.f32.mrb[0].mxu0
  %v549 = vadd.f32 %v89, %v548
  %v550 = vpop.f32.mrb[0].mxu0
  %551 = vmatprep.mubr.bf16.mxu0 0
  %552 = vmatmul.mubr.bf16.gmra.mrb[0].mxu0 %v325
  %v553 = vpop.f32.mrb[0].mxu0
  %v554 = vadd.f32 %v89, %v553
  %v555 = vpop.f32.mrb[0].mxu0
  %v556 = vpop.f32.mrb[0].mxu0
  %v557 = vadd.f32 %v89, %v556
  %v558 = vpop.f32.mrb[0].mxu0
  %559 = vmatprep.mubr.bf16.mxu0 0
  %560 = vmatmul.mubr.bf16.gmra.mrb[0].mxu0 %v328
  %v561 = vpop.f32.mrb[0].mxu0
  %v562 = vadd.f32 %v89, %v561
  %v563 = vpop.f32.mrb[0].mxu0
  %v564 = vpop.f32.mrb[0].mxu0
  %v565 = vadd.f32 %v89, %v564
  %v566 = vpop.f32.mrb[0].mxu0
  %567 = vmatprep.mubr.bf16.mxu0 0
  %568 = vmatmul.mubr.bf16.gmra.mrb[0].mxu0 %v331
  %v569 = vpop.f32.mrb[0].mxu0
  %v570 = vadd.f32 %v89, %v569
  %v571 = vpop.f32.mrb[0].mxu0
  %v572 = vpop.f32.mrb[0].mxu0
  %v573 = vadd.f32 %v89, %v572
  %v574 = vpop.f32.mrb[0].mxu0
  %575 = vmatprep.mubr.bf16.mxu0 0
  %576 = vmatmul.mubr.bf16.gmra.mrb[0].mxu0 %v334
  %v577 = vpop.f32.mrb[0].mxu0
  %v578 = vadd.f32 %v89, %v577
  %v579 = vpop.f32.mrb[0].mxu0
  %v580 = vpop.f32.mrb[0].mxu0
  %v581 = vadd.f32 %v89, %v580
  %v582 = vpop.f32.mrb[0].mxu0
  %583 = vmatprep.mubr.bf16.mxu0 0
  %584 = vmatmul.mubr.bf16.gmra.mrb[0].mxu0 %v337
  %v585 = vpop.f32.mrb[0].mxu0
  %v586 = vadd.f32 %v89, %v585
  %v587 = vpop.f32.mrb[0].mxu0
  %v588 = vpop.f32.mrb[0].mxu0
  %v589 = vadd.f32 %v89, %v588
  %v590 = vpop.f32.mrb[0].mxu0
  %591 = vmatprep.mubr.bf16.mxu0 0
  %592 = vmatmul.mubr.bf16.gmra.mrb[0].mxu0 %v340
  %v593 = vpop.f32.mrb[0].mxu0
  %v594 = vadd.f32 %v89, %v593
  %v595 = vpop.f32.mrb[0].mxu0
  %v596 = vpop.f32.mrb[0].mxu0
  %v597 = vadd.f32 %v89, %v596
  %v598 = vpop.f32.mrb[0].mxu0
  %599 = vmatprep.mubr.bf16.mxu0 0
  %600 = vmatmul.mubr.bf16.gmra.mrb[0].mxu0 %v343
  %v601 = vpop.f32.mrb[0].mxu0
  %v602 = vadd.f32 %v89, %v601
  %v603 = vpop.f32.mrb[0].mxu0
  %v604 = vpop.f32.mrb[0].mxu0
  %v605 = vadd.f32 %v89, %v604
  %v606 = vpop.f32.mrb[0].mxu0
  %607 = vmatprep.mubr.bf16.mxu0 0
  %608 = vmatmul.mubr.bf16.gmra.mrb[0].mxu0 %v346
  %v609 = vpop.f32.mrb[0].mxu0
  %v610 = vadd.f32 %v89, %v609
  %v611 = vpop.f32.mrb[0].mxu0
  %v612 = vpop.f32.mrb[0].mxu0
  %v613 = vadd.f32 %v89, %v612
  %v614 = vpop.f32.mrb[0].mxu0
  %615 = vmatprep.mubr.bf16.mxu0 0
  %616 = vmatmul.mubr.bf16.gmra.mrb[0].mxu0 %v349
  %v617 = vpop.f32.mrb[0].mxu0
  %v618 = vadd.f32 %v89, %v617
  %v619 = vpop.f32.mrb[0].mxu0
  %v620 = vpop.f32.mrb[0].mxu0
  %v621 = vadd.f32 %v89, %v620
  %v622 = vpop.f32.mrb[0].mxu0
  %623 = vmatprep.mubr.bf16.mxu0 0
  %624 = vmatmul.mubr.bf16.gmra.mrb[0].mxu0 %v352
  %v625 = vpop.f32.mrb[0].mxu0
  %v626 = vadd.f32 %v89, %v625
  %v627 = vpop.f32.mrb[0].mxu0
  %v628 = vpop.f32.mrb[0].mxu0
  %v629 = vadd.f32 %v89, %v628
  %v630 = vpop.f32.mrb[0].mxu0
  %631 = vmatprep.mubr.bf16.mxu0 0
  %632 = vmatmul.mubr.bf16.gmra.mrb[0].mxu0 %v355
  %v633 = vpop.f32.mrb[0].mxu0
  %v634 = vadd.f32 %v89, %v633
  %v635 = vpop.f32.mrb[0].mxu0
  %v636 = vpop.f32.mrb[0].mxu0
  %v637 = vadd.f32 %v89, %v636
  %v638 = vpop.f32.mrb[0].mxu0
  %639 = vmatprep.mubr.bf16.mxu0 0
  %640 = vmatmul.mubr.bf16.gmra.mrb[0].mxu0 %v358
  %v641 = vpop.f32.mrb[0].mxu0
  %v642 = vadd.f32 %v89, %v641
  %v643 = vpop.f32.mrb[0].mxu0
  %v644 = vpop.f32.mrb[0].mxu0
  %v645 = vadd.f32 %v89, %v644
  %v646 = vpop.f32.mrb[0].mxu0
  %647 = vmatprep.mubr.bf16.mxu0 0
  %648 = vmatmul.mubr.bf16.gmra.mrb[0].mxu0 %v361
  %v649 = vpop.f32.mrb[0].mxu0
  %v650 = vadd.f32 %v89, %v649
  %v651 = vpop.f32.mrb[0].mxu0
  %v652 = vpop.f32.mrb[0].mxu0
  %v653 = vadd.f32 %v89, %v652
  %v654 = vpop.f32.mrb[0].mxu0
  %655 = vdwg.mxu0
  %v656 = vmax.f32 %v402, 0.0
  %v657 = vmax.f32 %v405, 0.0
  %v658 = vmax.f32 %v410, 0.0
  %v659 = vmax.f32 %v413, 0.0
  %v660 = vmax.f32 %v418, 0.0
  %v661 = vmax.f32 %v421, 0.0
  %v662 = vmax.f32 %v426, 0.0
  %v663 = vmax.f32 %v429, 0.0
  %v664 = vmax.f32 %v434, 0.0
  %v665 = vmax.f32 %v437, 0.0
  %v666 = vmax.f32 %v442, 0.0
  %v667 = vmax.f32 %v445, 0.0
  %v668 = vmax.f32 %v450, 0.0
  %v669 = vmax.f32 %v453, 0.0
  %v670 = vmax.f32 %v458, 0.0
  %v671 = vmax.f32 %v461, 0.0
  %v672 = vmax.f32 %v466, 0.0
  %v673 = vmax.f32 %v469, 0.0
  %v674 = vmax.f32 %v474, 0.0
  %v675 = vmax.f32 %v477, 0.0
  %v676 = vmax.f32 %v482, 0.0
  %v677 = vmax.f32 %v485, 0.0
  %v678 = vmax.f32 %v490, 0.0
  %v679 = vmax.f32 %v493, 0.0
  %v680 = vmax.f32 %v498, 0.0
  %v681 = vmax.f32 %v501, 0.0
  %v682 = vmax.f32 %v506, 0.0
  %v683 = vmax.f32 %v509, 0.0
  %v684 = vmax.f32 %v514, 0.0
  %v685 = vmax.f32 %v517, 0.0
  %v686 = vmax.f32 %v522, 0.0
  %v687 = vmax.f32 %v525, 0.0
  %v688 = vmax.f32 %v530, 0.0
  %v689 = vmax.f32 %v533, 0.0
  %v690 = vmax.f32 %v538, 0.0
  %v691 = vmax.f32 %v541, 0.0
  %v692 = vmax.f32 %v546, 0.0
  %v693 = vmax.f32 %v549, 0.0
  %v694 = vmax.f32 %v554, 0.0
  %v695 = vmax.f32 %v557, 0.0
  %v696 = vmax.f32 %v562, 0.0
  %v697 = vmax.f32 %v565, 0.0
  %v698 = vmax.f32 %v570, 0.0
  %v699 = vmax.f32 %v573, 0.0
  %v700 = vmax.f32 %v578, 0.0
  %v701 = vmax.f32 %v581, 0.0
  %v702 = vmax.f32 %v586, 0.0
  %v703 = vmax.f32 %v589, 0.0
  %v704 = vmax.f32 %v594, 0.0
  %v705 = vmax.f32 %v597, 0.0
  %v706 = vmax.f32 %v602, 0.0
  %v707 = vmax.f32 %v605, 0.0
  %v708 = vmax.f32 %v610, 0.0
  %v709 = vmax.f32 %v613, 0.0
  %v710 = vmax.f32 %v618, 0.0
  %v711 = vmax.f32 %v621, 0.0
  %v712 = vmax.f32 %v626, 0.0
  %v713 = vmax.f32 %v629, 0.0
  %v714 = vmax.f32 %v634, 0.0
  %v715 = vmax.f32 %v637, 0.0
  %v716 = vmax.f32 %v642, 0.0
  %v717 = vmax.f32 %v645, 0.0
  %v718 = vmax.f32 %v650, 0.0
  %v719 = vmax.f32 %v653, 0.0
  %v720 = vpack.c.bf16 %v657, %v656
  %v721 = vpack.c.bf16 %v659, %v658
  %v722 = vpack.c.bf16 %v661, %v660
  %v723 = vpack.c.bf16 %v663, %v662
  %v724 = vpack.c.bf16 %v665, %v664
  %v725 = vpack.c.bf16 %v667, %v666
  %v726 = vpack.c.bf16 %v669, %v668
  %v727 = vpack.c.bf16 %v671, %v670
  %v728 = vpack.c.bf16 %v673, %v672
  %v729 = vpack.c.bf16 %v675, %v674
  %v730 = vpack.c.bf16 %v677, %v676
  %v731 = vpack.c.bf16 %v679, %v678
  %v732 = vpack.c.bf16 %v681, %v680
  %v733 = vpack.c.bf16 %v683, %v682
  %v734 = vpack.c.bf16 %v685, %v684
  %v735 = vpack.c.bf16 %v687, %v686
  %v736 = vpack.c.bf16 %v689, %v688
  %v737 = vpack.c.bf16 %v691, %v690
  %v738 = vpack.c.bf16 %v693, %v692
  %v739 = vpack.c.bf16 %v695, %v694
  %v740 = vpack.c.bf16 %v697, %v696
  %v741 = vpack.c.bf16 %v699, %v698
  %v742 = vpack.c.bf16 %v701, %v700
  %v743 = vpack.c.bf16 %v703, %v702
  %v744 = vpack.c.bf16 %v705, %v704
  %v745 = vpack.c.bf16 %v707, %v706
  %v746 = vpack.c.bf16 %v709, %v708
  %v747 = vpack.c.bf16 %v711, %v710
  %v748 = vpack.c.bf16 %v713, %v712
  %v749 = vpack.c.bf16 %v715, %v714
  %v750 = vpack.c.bf16 %v717, %v716
  %v751 = vpack.c.bf16 %v719, %v718
  %v784 = vunpack.c.l.b16 %v720
  %v785 = vunpack.c.h.b16 %v720
  %v786 = vunpack.c.l.b16 %v721
  %v787 = vunpack.c.h.b16 %v721
  %v788 = vunpack.c.l.b16 %v722
  %v789 = vunpack.c.h.b16 %v722
  %v790 = vunpack.c.l.b16 %v723
  %v791 = vunpack.c.h.b16 %v723
  %v792 = vunpack.c.l.b16 %v724
  %v793 = vunpack.c.h.b16 %v724
  %v794 = vunpack.c.l.b16 %v725
  %v795 = vunpack.c.h.b16 %v725
  %v796 = vunpack.c.l.b16 %v726
  %v797 = vunpack.c.h.b16 %v726
  %v798 = vunpack.c.l.b16 %v727
  %v799 = vunpack.c.h.b16 %v727
  %v800 = vunpack.c.l.b16 %v728
  %v801 = vunpack.c.h.b16 %v728
  %v802 = vunpack.c.l.b16 %v729
  %v803 = vunpack.c.h.b16 %v729
  %v804 = vunpack.c.l.b16 %v730
  %v805 = vunpack.c.h.b16 %v730
  %v806 = vunpack.c.l.b16 %v731
  %v807 = vunpack.c.h.b16 %v731
  %v808 = vunpack.c.l.b16 %v732
  %v809 = vunpack.c.h.b16 %v732
  %v810 = vunpack.c.l.b16 %v733
  %v811 = vunpack.c.h.b16 %v733
  %v812 = vunpack.c.l.b16 %v734
  %v813 = vunpack.c.h.b16 %v734
  %v814 = vunpack.c.l.b16 %v735
  %v815 = vunpack.c.h.b16 %v735
  %v816 = vunpack.c.l.b16 %v736
  %v817 = vunpack.c.h.b16 %v736
  %v818 = vunpack.c.l.b16 %v737
  %v819 = vunpack.c.h.b16 %v737
  %v820 = vunpack.c.l.b16 %v738
  %v821 = vunpack.c.h.b16 %v738
  %v822 = vunpack.c.l.b16 %v739
  %v823 = vunpack.c.h.b16 %v739
  %v824 = vunpack.c.l.b16 %v740
  %v825 = vunpack.c.h.b16 %v740
  %v826 = vunpack.c.l.b16 %v741
  %v827 = vunpack.c.h.b16 %v741
  %v828 = vunpack.c.l.b16 %v742
  %v829 = vunpack.c.h.b16 %v742
  %v830 = vunpack.c.l.b16 %v743
  %v831 = vunpack.c.h.b16 %v743
  %v832 = vunpack.c.l.b16 %v744
  %v833 = vunpack.c.h.b16 %v744
  %v834 = vunpack.c.l.b16 %v745
  %v835 = vunpack.c.h.b16 %v745
  %v836 = vunpack.c.l.b16 %v746
  %v837 = vunpack.c.h.b16 %v746
  %v838 = vunpack.c.l.b16 %v747
  %v839 = vunpack.c.h.b16 %v747
  %v840 = vunpack.c.l.b16 %v748
  %v841 = vunpack.c.h.b16 %v748
  %v842 = vunpack.c.l.b16 %v749
  %v843 = vunpack.c.h.b16 %v749
  %v844 = vunpack.c.l.b16 %v750
  %v845 = vunpack.c.h.b16 %v750
  %v846 = vunpack.c.l.b16 %v751
  %v847 = vunpack.c.h.b16 %v751
  %v848 = vpack.c.b16 %v784, %v784
  %v849 = vpack.c.b16 %v785, %v785
  %v850 = vpack.c.b16 %v786, %v786
  %v851 = vpack.c.b16 %v787, %v787
  %v852 = vpack.c.b16 %v788, %v788
  %v853 = vpack.c.b16 %v789, %v789
  %v854 = vpack.c.b16 %v790, %v790
  %v855 = vpack.c.b16 %v791, %v791
  %v856 = vpack.c.b16 %v792, %v792
  %v857 = vpack.c.b16 %v793, %v793
  %v858 = vpack.c.b16 %v794, %v794
  %v859 = vpack.c.b16 %v795, %v795
  %v860 = vpack.c.b16 %v796, %v796
  %v861 = vpack.c.b16 %v797, %v797
  %v862 = vpack.c.b16 %v798, %v798
  %v863 = vpack.c.b16 %v799, %v799
  %v864 = vpack.c.b16 %v800, %v800
  %v865 = vpack.c.b16 %v801, %v801
  %v866 = vpack.c.b16 %v802, %v802
  %v867 = vpack.c.b16 %v803, %v803
  %v868 = vpack.c.b16 %v804, %v804
  %v869 = vpack.c.b16 %v805, %v805
  %v870 = vpack.c.b16 %v806, %v806
  %v871 = vpack.c.b16 %v807, %v807
  %v872 = vpack.c.b16 %v808, %v808
  %v873 = vpack.c.b16 %v809, %v809
  %v874 = vpack.c.b16 %v810, %v810
  %v875 = vpack.c.b16 %v811, %v811
  %v876 = vpack.c.b16 %v812, %v812
  %v877 = vpack.c.b16 %v813, %v813
  %v878 = vpack.c.b16 %v814, %v814
  %v879 = vpack.c.b16 %v815, %v815
  %v880 = vpack.c.b16 %v816, %v816
  %v881 = vpack.c.b16 %v817, %v817
  %v882 = vpack.c.b16 %v818, %v818
  %v883 = vpack.c.b16 %v819, %v819
  %v884 = vpack.c.b16 %v820, %v820
  %v885 = vpack.c.b16 %v821, %v821
  %v886 = vpack.c.b16 %v822, %v822
  %v887 = vpack.c.b16 %v823, %v823
  %v888 = vpack.c.b16 %v824, %v824
  %v889 = vpack.c.b16 %v825, %v825
  %v890 = vpack.c.b16 %v826, %v826
  %v891 = vpack.c.b16 %v827, %v827
  %v892 = vpack.c.b16 %v828, %v828
  %v893 = vpack.c.b16 %v829, %v829
  %v894 = vpack.c.b16 %v830, %v830
  %v895 = vpack.c.b16 %v831, %v831
  %v896 = vpack.c.b16 %v832, %v832
  %v897 = vpack.c.b16 %v833, %v833
  %v898 = vpack.c.b16 %v834, %v834
  %v899 = vpack.c.b16 %v835, %v835
  %v900 = vpack.c.b16 %v836, %v836
  %v901 = vpack.c.b16 %v837, %v837
  %v902 = vpack.c.b16 %v838, %v838
  %v903 = vpack.c.b16 %v839, %v839
  %v904 = vpack.c.b16 %v840, %v840
  %v905 = vpack.c.b16 %v841, %v841
  %v906 = vpack.c.b16 %v842, %v842
  %v907 = vpack.c.b16 %v843, %v843
  %v908 = vpack.c.b16 %v844, %v844
  %v909 = vpack.c.b16 %v845, %v845
  %v910 = vpack.c.b16 %v846, %v846
  %v911 = vpack.c.b16 %v847, %v847
  %vm976 = vcmask 60416
  %977 = vst.msk [vmem:[%s3] sm:$0xf] %vm976, %v848
  %978 = vst.msk [vmem:[%s3 + $0x4] sm:$0xf] %vm976, %v849
  %979 = vst.msk [vmem:[%s3 + $0x8] sm:$0xf] %vm976, %v850
  %980 = vst.msk [vmem:[%s3 + $0xc] sm:$0xf] %vm976, %v851
  %981 = vst.msk [vmem:[%s3 + $0x10] sm:$0xf] %vm976, %v852
  %982 = vst.msk [vmem:[%s3 + $0x14] sm:$0xf] %vm976, %v853
  %983 = vst.msk [vmem:[%s3 + $0x18] sm:$0xf] %vm976, %v854
  %984 = vst.msk [vmem:[%s3 + $0x1c] sm:$0xf] %vm976, %v855
  %985 = vst.msk [vmem:[%s3 + $0x20] sm:$0xf] %vm976, %v856
  %986 = vst.msk [vmem:[%s3 + $0x24] sm:$0xf] %vm976, %v857
  %987 = vst.msk [vmem:[%s3 + $0x28] sm:$0xf] %vm976, %v858
  %988 = vst.msk [vmem:[%s3 + $0x2c] sm:$0xf] %vm976, %v859
  %989 = vst.msk [vmem:[%s3 + $0x30] sm:$0xf] %vm976, %v860
  %990 = vst.msk [vmem:[%s3 + $0x34] sm:$0xf] %vm976, %v861
  %991 = vst.msk [vmem:[%s3 + $0x38] sm:$0xf] %vm976, %v862
  %992 = vst.msk [vmem:[%s3 + $0x3c] sm:$0xf] %vm976, %v863
  %993 = vst.msk [vmem:[%s3 + $0x40] sm:$0xf] %vm976, %v864
  %994 = vst.msk [vmem:[%s3 + $0x44] sm:$0xf] %vm976, %v865
  %995 = vst.msk [vmem:[%s3 + $0x48] sm:$0xf] %vm976, %v866
  %996 = vst.msk [vmem:[%s3 + $0x4c] sm:$0xf] %vm976, %v867
  %997 = vst.msk [vmem:[%s3 + $0x50] sm:$0xf] %vm976, %v868
  %998 = vst.msk [vmem:[%s3 + $0x54] sm:$0xf] %vm976, %v869
  %999 = vst.msk [vmem:[%s3 + $0x58] sm:$0xf] %vm976, %v870
  %1000 = vst.msk [vmem:[%s3 + $0x5c] sm:$0xf] %vm976, %v871
  %1001 = vst.msk [vmem:[%s3 + $0x60] sm:$0xf] %vm976, %v872
  %1002 = vst.msk [vmem:[%s3 + $0x64] sm:$0xf] %vm976, %v873
  %1003 = vst.msk [vmem:[%s3 + $0x68] sm:$0xf] %vm976, %v874
  %1004 = vst.msk [vmem:[%s3 + $0x6c] sm:$0xf] %vm976, %v875
  %1005 = vst.msk [vmem:[%s3 + $0x70] sm:$0xf] %vm976, %v876
  %1006 = vst.msk [vmem:[%s3 + $0x74] sm:$0xf] %vm976, %v877
  %1007 = vst.msk [vmem:[%s3 + $0x78] sm:$0xf] %vm976, %v878
  %1008 = vst.msk [vmem:[%s3 + $0x7c] sm:$0xf] %vm976, %v879
  %1009 = vst.msk [vmem:[%s3 + $0x80] sm:$0xf] %vm976, %v880
  %1010 = vst.msk [vmem:[%s3 + $0x84] sm:$0xf] %vm976, %v881
  %1011 = vst.msk [vmem:[%s3 + $0x88] sm:$0xf] %vm976, %v882
  %1012 = vst.msk [vmem:[%s3 + $0x8c] sm:$0xf] %vm976, %v883
  %1013 = vst.msk [vmem:[%s3 + $0x90] sm:$0xf] %vm976, %v884
  %1014 = vst.msk [vmem:[%s3 + $0x94] sm:$0xf] %vm976, %v885
  %1015 = vst.msk [vmem:[%s3 + $0x98] sm:$0xf] %vm976, %v886
  %1016 = vst.msk [vmem:[%s3 + $0x9c] sm:$0xf] %vm976, %v887
  %1017 = vst.msk [vmem:[%s3 + $0xa0] sm:$0xf] %vm976, %v888
  %1018 = vst.msk [vmem:[%s3 + $0xa4] sm:$0xf] %vm976, %v889
  %1019 = vst.msk [vmem:[%s3 + $0xa8] sm:$0xf] %vm976, %v890
  %1020 = vst.msk [vmem:[%s3 + $0xac] sm:$0xf] %vm976, %v891
  %1021 = vst.msk [vmem:[%s3 + $0xb0] sm:$0xf] %vm976, %v892
  %1022 = vst.msk [vmem:[%s3 + $0xb4] sm:$0xf] %vm976, %v893
  %1023 = vst.msk [vmem:[%s3 + $0xb8] sm:$0xf] %vm976, %v894
  %1024 = vst.msk [vmem:[%s3 + $0xbc] sm:$0xf] %vm976, %v895
  %1025 = vst.msk [vmem:[%s3 + $0xc0] sm:$0xf] %vm976, %v896
  %1026 = vst.msk [vmem:[%s3 + $0xc4] sm:$0xf] %vm976, %v897
  %1027 = vst.msk [vmem:[%s3 + $0xc8] sm:$0xf] %vm976, %v898
  %1028 = vst.msk [vmem:[%s3 + $0xcc] sm:$0xf] %vm976, %v899
  %1029 = vst.msk [vmem:[%s3 + $0xd0] sm:$0xf] %vm976, %v900
  %1030 = vst.msk [vmem:[%s3 + $0xd4] sm:$0xf] %vm976, %v901
  %1031 = vst.msk [vmem:[%s3 + $0xd8] sm:$0xf] %vm976, %v902
  %1032 = vst.msk [vmem:[%s3 + $0xdc] sm:$0xf] %vm976, %v903
  %1033 = vst.msk [vmem:[%s3 + $0xe0] sm:$0xf] %vm976, %v904
  %1034 = vst.msk [vmem:[%s3 + $0xe4] sm:$0xf] %vm976, %v905
  %1035 = vst.msk [vmem:[%s3 + $0xe8] sm:$0xf] %vm976, %v906
  %1036 = vst.msk [vmem:[%s3 + $0xec] sm:$0xf] %vm976, %v907
  %1037 = vst.msk [vmem:[%s3 + $0xf0] sm:$0xf] %vm976, %v908
  %1038 = vst.msk [vmem:[%s3 + $0xf4] sm:$0xf] %vm976, %v909
  %1039 = vst.msk [vmem:[%s3 + $0xf8] sm:$0xf] %vm976, %v910
  %1040 = vst.msk [vmem:[%s3 + $0xfc] sm:$0xf] %vm976, %v911
  // Predicated region
  $region14: #{inception_forward.6} parent=0 // pred_check
    _
  $region15: #{inception_forward.6} parent=0 // pred_check_branch
    %1042 = sbr.rel (0) target = $region17
  $region16: #{inception_forward.6} parent=0 // pred_region
    _
  $region17: #{inception_forward.6} parent=0 // pred_fallthru
    _
  // Predicated region
  $region18: #{inception_forward.6} parent=0 // pred_check
    _
  $region19: #{inception_forward.6} parent=0 // pred_check_branch
    %1044 = sbr.rel (0) target = $region21
  $region20: #{inception_forward.6} parent=0 // pred_region
    _
  $region21: #{inception_forward.6} parent=0 // pred_fallthru
    _

// kernel: inception_forward.8
$region0: #{inception_forward.8}
  #allocation0 [shape = 'u32[]', space=smem, size = 0x4, offset = 0x4, fixed_abs, tag = 'smem constant byte address 0x4 - core index']
  #allocation1 [shape = 'u32[144,128]{1,0:T(1,128)}', space=vmem, size = 0x12000, scoped, tag = 'internal scratch']
  %s0 = inlined_call_operand.vmem [shape: bf16[2,18,18,4], index: 0, kind: input, shape index: {}]
  %s1 = inlined_call_operand.vmem [shape: bf16[2,16,16,4], index: 1, kind: output, shape index: {}]
  %s2 = sld [smem:[#allocation0]]
  $region37: #{inception_forward.8} parent=0
    _
  %s4 = ssub.s32 1, %s2
  %s5 = scalar_select 0, %s4, %s2
  loop: start=0, step=1, limit=4
  $region2: #{inception_forward.8} parent=0 // loop_pre_header
    _
  $region3: #{inception_forward.8} parent=0 // loop_header
    %s7 = sphi 0, %s11
    %p8 = scmp.ge.s32.totalorder %s7, 4
    %s17 = sphi 0, %s19
    %s20 = sphi 0, %s17
    %s21 = sphi 0, %s20
    %s37 = sphi 0, %s21
    %s43 = sphi 0, %s45
    %s46 = sphi 0, %s43
    %s47 = sphi 0, %s46
    %s63 = sphi 0, %s47
  $region4: #{inception_forward.8} parent=0 // loop_header_branch
    %10 = sbr.rel (%p8) target = $region8
  $region5: #{inception_forward.8} parent=0 // loop_body
    %s12 = ssub.s32 %s7, 1
    %s13 = ssub.s32 %s7, 2
    %s14 = sadd.s32 %s7, 1
    %s15 = ssub.s32 %s7, %s14
    %p16 = scmp.eq.s32.totalorder %s15, 0
    %s18 = sadd.s32 %s17, 1
    %s19 = scalar_select %p16, %s17, %s18
    %p22 = pneg %p16
    %p23 = scmp.eq.s32.totalorder %s7, 1
    %p24 = por %p22, %p23
    %p25 = scmp.ne.s32.totalorder %s17, %s20
    %p26 = scmp.eq.s32.totalorder %s7, 0
    %p27 = por %p25, %p26
    %p28 = scmp.ne.s32.totalorder %s17, %s20
    %p29 = scmp.eq.s32.totalorder %s12, 1
    %p30 = por %p28, %p29
    %p31 = scmp.ne.s32.totalorder %s20, %s21
    %p32 = scmp.eq.s32.totalorder %s12, 0
    %p33 = por %p31, %p32
    %p34 = scmp.ne.s32.totalorder %s20, %s21
    %p35 = scmp.eq.s32.totalorder %s13, 1
    %p36 = por %p34, %p35
    %p38 = scmp.ne.s32.totalorder %s21, %s37
    %p39 = scmp.eq.s32.totalorder %s13, 0
    %p40 = por %p38, %p39
    %s41 = ssub.s32 %s7, %s14
    %p42 = scmp.eq.s32.totalorder %s41, 0
    %s44 = sadd.s32 %s43, 1
    %s45 = scalar_select %p42, %s43, %s44
    %p48 = pneg %p42
    %p49 = scmp.eq.s32.totalorder %s7, 1
    %p50 = por %p48, %p49
    %p51 = scmp.ne.s32.totalorder %s43, %s46
    %p52 = scmp.eq.s32.totalorder %s7, 0
    %p53 = por %p51, %p52
    %p54 = scmp.ne.s32.totalorder %s43, %s46
    %p55 = scmp.eq.s32.totalorder %s12, 1
    %p56 = por %p54, %p55
    %p57 = scmp.ne.s32.totalorder %s46, %s47
    %p58 = scmp.eq.s32.totalorder %s12, 0
    %p59 = por %p57, %p58
    %p60 = scmp.ne.s32.totalorder %s46, %s47
    %p61 = scmp.eq.s32.totalorder %s13, 1
    %p62 = por %p60, %p61
    %p64 = scmp.ne.s32.totalorder %s47, %s63
    %p65 = scmp.eq.s32.totalorder %s13, 0
    %p66 = por %p64, %p65
    %p67 = scmp.le.s32.totalorder 1, %s7
    %p68 = scmp.lt.s32.totalorder %s7, 3
    %p69 = pnand %p67, %p68
    %p70 = pneg %p69
    // Predicated region
    $region9: #{inception_forward.8} parent=5 // pred_check
      _
    $region10: #{inception_forward.8} parent=5 // pred_check_branch
      %72 = sbr.rel (%p69) target = $region12
    $region11: #{inception_forward.8} parent=5 // pred_region
      %s73 = ssub.s32 %s7, 1
    $region12: #{inception_forward.8} parent=5 // pred_fallthru
      _
    %p74 = scmp.lt.s32.totalorder %s7, 2
    // Predicated region
    $region13: #{inception_forward.8} parent=5 // pred_check
      %p75 = pneg %p74
    $region14: #{inception_forward.8} parent=5 // pred_check_branch
      %77 = sbr.rel (%p75) target = $region16
    $region15: #{inception_forward.8} parent=5 // pred_region
      // Predicated region
      $region17: #{inception_forward.8} parent=15 // pred_check
        %p78 = pneg %p27
      $region18: #{inception_forward.8} parent=15 // pred_check_branch
        %80 = sbr.rel (%p78) target = $region20
      $region19: #{inception_forward.8} parent=15 // pred_region
        %p81 = scmp.lt.s32.totalorder %s7, 1
        %s82 = scalar_select %p81, %s7, 1
        %s83 = smul.addr %s82, 54
        %s84 = smul.addr %s83, 4
        %s85 = scalar_lea.vmem %s0, %s84
      $region20: #{inception_forward.8} parent=15 // pred_fallthru
        _
    $region16: #{inception_forward.8} parent=5 // pred_fallthru
      _
    %p86 = scmp.le.s32.totalorder 1, %s7
    %p87 = scmp.lt.s32.totalorder %s7, 3
    %p88 = pnand %p86, %p87
    %p89 = pneg %p88
    // Predicated region
    $region21: #{inception_forward.8} parent=5 // pred_check
      _
    $region22: #{inception_forward.8} parent=5 // pred_check_branch
      %91 = sbr.rel (%p88) target = $region24
    $region23: #{inception_forward.8} parent=5 // pred_region
      %s92 = ssub.s32 %s7, 1
      %p93 = scmp.lt.s32.totalorder %s12, 1
      %s94 = scalar_select %p93, %s12, 1
      %s95 = smul.addr %s94, 54
      %s96 = smul.addr %s95, 4
      %s97 = scalar_lea.vmem %s0, %s96
      %p98 = pneg %p33
      %p99 = pneg %p30
      %p100 = pneg %p59
      %p101 = pneg %p56
      %p102 = scmp.lt.s32.totalorder %s12, 1
      %s103 = scalar_select %p102, %s12, 1
      %s104 = smul.addr %s103, 32
      %s105 = smul.addr %s104, 4
      %s106 = scalar_lea.vmem %s1, %s105
      %p107 = scmp.lt.s32.totalorder %s12, 1
      %s108 = scalar_select %p107, %s12, 1
      %s109 = smul.addr %s108, 54
      %s110 = smul.addr %s109, 4
      %s111 = scalar_lea.vmem %s0, %s110
      %p112 = scmp.lt.s32.totalorder %s12, 1
      %s113 = scalar_select %p112, %s12, 1
      %s114 = smul.addr %s113, 32
      %s115 = smul.addr %s114, 4
      %s116 = scalar_lea.vmem %s1, %s115
      %v117 = vld [vmem:[%s111] sm:$0xf]
      %v118 = vld [vmem:[%s111 + $0x4] sm:$0xf]
      %v119 = vld [vmem:[%s111 + $0x8] sm:$0x1]
      %v120 = vld [vmem:[%s111 + $0xc] sm:$0xf]
      %v121 = vld [vmem:[%s111 + $0x10] sm:$0xf]
      %v122 = vld [vmem:[%s111 + $0x14] sm:$0x1]
      %v123 = vld [vmem:[%s111 + $0x18] sm:$0xf]
      %v124 = vld [vmem:[%s111 + $0x1c] sm:$0xf]
      %v125 = vld [vmem:[%s111 + $0x20] sm:$0x1]
      %v126 = vld [vmem:[%s111 + $0x24] sm:$0xf]
      %v127 = vld [vmem:[%s111 + $0x28] sm:$0xf]
      %v128 = vld [vmem:[%s111 + $0x2c] sm:$0x1]
      %v129 = vld [vmem:[%s111 + $0x30] sm:$0xf]
      %v130 = vld [vmem:[%s111 + $0x34] sm:$0xf]
      %v131 = vld [vmem:[%s111 + $0x38] sm:$0x1]
      %v132 = vld [vmem:[%s111 + $0x3c] sm:$0xf]
      %v133 = vld [vmem:[%s111 + $0x40] sm:$0xf]
      %v134 = vld [vmem:[%s111 + $0x44] sm:$0x1]
      %v135 = vld [vmem:[%s111 + $0x48] sm:$0xf]
      %v136 = vld [vmem:[%s111 + $0x4c] sm:$0xf]
      %v137 = vld [vmem:[%s111 + $0x50] sm:$0x1]
      %v138 = vld [vmem:[%s111 + $0x54] sm:$0xf]
      %v139 = vld [vmem:[%s111 + $0x58] sm:$0xf]
      %v140 = vld [vmem:[%s111 + $0x5c] sm:$0x1]
      %v141 = vld [vmem:[%s111 + $0x60] sm:$0xf]
      %v142 = vld [vmem:[%s111 + $0x64] sm:$0xf]
      %v143 = vld [vmem:[%s111 + $0x68] sm:$0x1]
      %v144 = vld [vmem:[%s111 + $0x6c] sm:$0xf]
      %v145 = vld [vmem:[%s111 + $0x70] sm:$0xf]
      %v146 = vld [vmem:[%s111 + $0x74] sm:$0x1]
      %v147 = vld [vmem:[%s111 + $0x78] sm:$0xf]
      %v148 = vld [vmem:[%s111 + $0x7c] sm:$0xf]
      %v149 = vld [vmem:[%s111 + $0x80] sm:$0x1]
      %v150 = vld [vmem:[%s111 + $0x84] sm:$0xf]
      %v151 = vld [vmem:[%s111 + $0x88] sm:$0xf]
      %v152 = vld [vmem:[%s111 + $0x8c] sm:$0x1]
      %v153 = vld [vmem:[%s111 + $0x90] sm:$0xf]
      %v154 = vld [vmem:[%s111 + $0x94] sm:$0xf]
      %v155 = vld [vmem:[%s111 + $0x98] sm:$0x1]
      %v156 = vld [vmem:[%s111 + $0x9c] sm:$0xf]
      %v157 = vld [vmem:[%s111 + $0xa0] sm:$0xf]
      %v158 = vld [vmem:[%s111 + $0xa4] sm:$0x1]
      %v159 = vld [vmem:[%s111 + $0xa8] sm:$0xf]
      %v160 = vld [vmem:[%s111 + $0xac] sm:$0xf]
      %v161 = vld [vmem:[%s111 + $0xb0] sm:$0x1]
      %v162 = vld [vmem:[%s111 + $0xb4] sm:$0xf]
      %v163 = vld [vmem:[%s111 + $0xb8] sm:$0xf]
      %v164 = vld [vmem:[%s111 + $0xbc] sm:$0x1]
      %v165 = vld [vmem:[%s111 + $0xc0] sm:$0xf]
      %v166 = vld [vmem:[%s111 + $0xc4] sm:$0xf]
      %v167 = vld [vmem:[%s111 + $0xc8] sm:$0x1]
      %v168 = vld [vmem:[%s111 + $0xcc] sm:$0xf]
      %v169 = vld [vmem:[%s111 + $0xd0] sm:$0xf]
      %v170 = vld [vmem:[%s111 + $0xd4] sm:$0x1]
      %vm171 = vsmask.f32 3328
      %vm172 = vsmask.f32 7440
      %vm173 = vmor %vm171, %vm172
      %v175 = vshrl.u32 %v117, 16
      %v177 = vrot.slane %v175, 4
      %v178 = vshll.u32 %v117, 16
      %v180 = vrot.slane %v178, 5
      %v181 = vor.u32 %v177, %v180
      %v182 = vrot.slane %v181, 4
      %v184 = vshll.u32 %v118, 16
      %v186 = vrot.slane %v184, 5
      %v187 = vsel %vm173, %v182, %v186
      %v188 = vshrl.u32 %v118, 16
      %v190 = vrot.slane %v188, 4
      %v191 = vor.u32 %v190, %v186
      %v192 = vrot.slane %v191, 4
      %v194 = vshll.u32 %v119, 16
      %v196 = vrot.slane %v194, 5
      %v197 = vsel %vm173, %v192, %v196
      %v199 = vshrl.u32 %v120, 16
      %v201 = vrot.slane %v199, 4
      %v202 = vshll.u32 %v120, 16
      %v204 = vrot.slane %v202, 5
      %v205 = vor.u32 %v201, %v204
      %v206 = vrot.slane %v205, 4
      %v208 = vshll.u32 %v121, 16
      %v210 = vrot.slane %v208, 5
      %v211 = vsel %vm173, %v206, %v210
      %v212 = vshrl.u32 %v121, 16
      %v214 = vrot.slane %v212, 4
      %v215 = vor.u32 %v214, %v210
      %v216 = vrot.slane %v215, 4
      %v218 = vshll.u32 %v122, 16
      %v220 = vrot.slane %v218, 5
      %v221 = vsel %vm173, %v216, %v220
      %v223 = vshrl.u32 %v123, 16
      %v225 = vrot.slane %v223, 4
      %v226 = vshll.u32 %v123, 16
      %v228 = vrot.slane %v226, 5
      %v229 = vor.u32 %v225, %v228
      %v230 = vrot.slane %v229, 4
      %v232 = vshll.u32 %v124, 16
      %v234 = vrot.slane %v232, 5
      %v235 = vsel %vm173, %v230, %v234
      %v236 = vshrl.u32 %v124, 16
      %v238 = vrot.slane %v236, 4
      %v239 = vor.u32 %v238, %v234
      %v240 = vrot.slane %v239, 4
      %v242 = vshll.u32 %v125, 16
      %v244 = vrot.slane %v242, 5
      %v245 = vsel %vm173, %v240, %v244
      %v247 = vshrl.u32 %v126, 16
      %v249 = vrot.slane %v247, 4
      %v250 = vshll.u32 %v126, 16
      %v252 = vrot.slane %v250, 5
      %v253 = vor.u32 %v249, %v252
      %v254 = vrot.slane %v253, 4
      %v256 = vshll.u32 %v127, 16
      %v258 = vrot.slane %v256, 5
      %v259 = vsel %vm173, %v254, %v258
      %v260 = vshrl.u32 %v127, 16
      %v262 = vrot.slane %v260, 4
      %v263 = vor.u32 %v262, %v258
      %v264 = vrot.slane %v263, 4
      %v266 = vshll.u32 %v128, 16
      %v268 = vrot.slane %v266, 5
      %v269 = vsel %vm173, %v264, %v268
      %v271 = vshrl.u32 %v129, 16
      %v273 = vrot.slane %v271, 4
      %v274 = vshll.u32 %v129, 16
      %v276 = vrot.slane %v274, 5
      %v277 = vor.u32 %v273, %v276
      %v278 = vrot.slane %v277, 4
      %v280 = vshll.u32 %v130, 16
      %v282 = vrot.slane %v280, 5
      %v283 = vsel %vm173, %v278, %v282
      %v284 = vshrl.u32 %v130, 16
      %v286 = vrot.slane %v284, 4
      %v287 = vor.u32 %v286, %v282
      %v288 = vrot.slane %v287, 4
      %v290 = vshll.u32 %v131, 16
      %v292 = vrot.slane %v290, 5
      %v293 = vsel %vm173, %v288, %v292
      %v295 = vshrl.u32 %v132, 16
      %v297 = vrot.slane %v295, 4
      %v298 = vshll.u32 %v132, 16
      %v300 = vrot.slane %v298, 5
      %v301 = vor.u32 %v297, %v300
      %v302 = vrot.slane %v301, 4
      %v304 = vshll.u32 %v133, 16
      %v306 = vrot.slane %v304, 5
      %v307 = vsel %vm173, %v302, %v306
      %v308 = vshrl.u32 %v133, 16
      %v310 = vrot.slane %v308, 4
      %v311 = vor.u32 %v310, %v306
      %v312 = vrot.slane %v311, 4
      %v314 = vshll.u32 %v134, 16
      %v316 = vrot.slane %v314, 5
      %v317 = vsel %vm173, %v312, %v316
      %v319 = vshrl.u32 %v135, 16
      %v321 = vrot.slane %v319, 4
      %v322 = vshll.u32 %v135, 16
      %v324 = vrot.slane %v322, 5
      %v325 = vor.u32 %v321, %v324
      %v326 = vrot.slane %v325, 4
      %v328 = vshll.u32 %v136, 16
      %v330 = vrot.slane %v328, 5
      %v331 = vsel %vm173, %v326, %v330
      %v332 = vshrl.u32 %v136, 16
      %v334 = vrot.slane %v332, 4
      %v335 = vor.u32 %v334, %v330
      %v336 = vrot.slane %v335, 4
      %v338 = vshll.u32 %v137, 16
      %v340 = vrot.slane %v338, 5
      %v341 = vsel %vm173, %v336, %v340
      %v343 = vshrl.u32 %v138, 16
      %v345 = vrot.slane %v343, 4
      %v346 = vshll.u32 %v138, 16
      %v348 = vrot.slane %v346, 5
      %v349 = vor.u32 %v345, %v348
      %v350 = vrot.slane %v349, 4
      %v352 = vshll.u32 %v139, 16
      %v354 = vrot.slane %v352, 5
      %v355 = vsel %vm173, %v350, %v354
      %v356 = vshrl.u32 %v139, 16
      %v358 = vrot.slane %v356, 4
      %v359 = vor.u32 %v358, %v354
      %v360 = vrot.slane %v359, 4
      %v362 = vshll.u32 %v140, 16
      %v364 = vrot.slane %v362, 5
      %v365 = vsel %vm173, %v360, %v364
      %v367 = vshrl.u32 %v141, 16
      %v369 = vrot.slane %v367, 4
      %v370 = vshll.u32 %v141, 16
      %v372 = vrot.slane %v370, 5
      %v373 = vor.u32 %v369, %v372
      %v374 = vrot.slane %v373, 4
      %v376 = vshll.u32 %v142, 16
      %v378 = vrot.slane %v376, 5
      %v379 = vsel %vm173, %v374, %v378
      %v380 = vshrl.u32 %v142, 16
      %v382 = vrot.slane %v380, 4
      %v383 = vor.u32 %v382, %v378
      %v384 = vrot.slane %v383, 4
      %v386 = vshll.u32 %v143, 16
      %v388 = vrot.slane %v386, 5
      %v389 = vsel %vm173, %v384, %v388
      %v391 = vshrl.u32 %v144, 16
      %v393 = vrot.slane %v391, 4
      %v394 = vshll.u32 %v144, 16
      %v396 = vrot.slane %v394, 5
      %v397 = vor.u32 %v393, %v396
      %v398 = vrot.slane %v397, 4
      %v400 = vshll.u32 %v145, 16
      %v402 = vrot.slane %v400, 5
      %v403 = vsel %vm173, %v398, %v402
      %v404 = vshrl.u32 %v145, 16
      %v406 = vrot.slane %v404, 4
      %v407 = vor.u32 %v406, %v402
      %v408 = vrot.slane %v407, 4
      %v410 = vshll.u32 %v146, 16
      %v412 = vrot.slane %v410, 5
      %v413 = vsel %vm173, %v408, %v412
      %v415 = vshrl.u32 %v147, 16
      %v417 = vrot.slane %v415, 4
      %v418 = vshll.u32 %v147, 16
      %v420 = vrot.slane %v418, 5
      %v421 = vor.u32 %v417, %v420
      %v422 = vrot.slane %v421, 4
      %v424 = vshll.u32 %v148, 16
      %v426 = vrot.slane %v424, 5
      %v427 = vsel %vm173, %v422, %v426
      %v428 = vshrl.u32 %v148, 16
      %v430 = vrot.slane %v428, 4
      %v431 = vor.u32 %v430, %v426
      %v432 = vrot.slane %v431, 4
      %v434 = vshll.u32 %v149, 16
      %v436 = vrot.slane %v434, 5
      %v437 = vsel %vm173, %v432, %v436
      %v439 = vshrl.u32 %v150, 16
      %v441 = vrot.slane %v439, 4
      %v442 = vshll.u32 %v150, 16
      %v444 = vrot.slane %v442, 5
      %v445 = vor.u32 %v441, %v444
      %v446 = vrot.slane %v445, 4
      %v448 = vshll.u32 %v151, 16
      %v450 = vrot.slane %v448, 5
      %v451 = vsel %vm173, %v446, %v450
      %v452 = vshrl.u32 %v151, 16
      %v454 = vrot.slane %v452, 4
      %v455 = vor.u32 %v454, %v450
      %v456 = vrot.slane %v455, 4
      %v458 = vshll.u32 %v152, 16
      %v460 = vrot.slane %v458, 5
      %v461 = vsel %vm173, %v456, %v460
      %v463 = vshrl.u32 %v153, 16
      %v465 = vrot.slane %v463, 4
      %v466 = vshll.u32 %v153, 16
      %v468 = vrot.slane %v466, 5
      %v469 = vor.u32 %v465, %v468
      %v470 = vrot.slane %v469, 4
      %v472 = vshll.u32 %v154, 16
      %v474 = vrot.slane %v472, 5
      %v475 = vsel %vm173, %v470, %v474
      %v476 = vshrl.u32 %v154, 16
      %v478 = vrot.slane %v476, 4
      %v479 = vor.u32 %v478, %v474
      %v480 = vrot.slane %v479, 4
      %v482 = vshll.u32 %v155, 16
      %v484 = vrot.slane %v482, 5
      %v485 = vsel %vm173, %v480, %v484
      %v487 = vshrl.u32 %v156, 16
      %v489 = vrot.slane %v487, 4
      %v490 = vshll.u32 %v156, 16
      %v492 = vrot.slane %v490, 5
      %v493 = vor.u32 %v489, %v492
      %v494 = vrot.slane %v493, 4
      %v496 = vshll.u32 %v157, 16
      %v498 = vrot.slane %v496, 5
      %v499 = vsel %vm173, %v494, %v498
      %v500 = vshrl.u32 %v157, 16
      %v502 = vrot.slane %v500, 4
      %v503 = vor.u32 %v502, %v498
      %v504 = vrot.slane %v503, 4
      %v506 = vshll.u32 %v158, 16
      %v508 = vrot.slane %v506, 5
      %v509 = vsel %vm173, %v504, %v508
      %v511 = vshrl.u32 %v159, 16
      %v513 = vrot.slane %v511, 4
      %v514 = vshll.u32 %v159, 16
      %v516 = vrot.slane %v514, 5
      %v517 = vor.u32 %v513, %v516
      %v518 = vrot.slane %v517, 4
      %v520 = vshll.u32 %v160, 16
      %v522 = vrot.slane %v520, 5
      %v523 = vsel %vm173, %v518, %v522
      %v524 = vshrl.u32 %v160, 16
      %v526 = vrot.slane %v524, 4
      %v527 = vor.u32 %v526, %v522
      %v528 = vrot.slane %v527, 4
      %v530 = vshll.u32 %v161, 16
      %v532 = vrot.slane %v530, 5
      %v533 = vsel %vm173, %v528, %v532
      %v535 = vshrl.u32 %v162, 16
      %v537 = vrot.slane %v535, 4
      %v538 = vshll.u32 %v162, 16
      %v540 = vrot.slane %v538, 5
      %v541 = vor.u32 %v537, %v540
      %v542 = vrot.slane %v541, 4
      %v544 = vshll.u32 %v163, 16
      %v546 = vrot.slane %v544, 5
      %v547 = vsel %vm173, %v542, %v546
      %v548 = vshrl.u32 %v163, 16
      %v550 = vrot.slane %v548, 4
      %v551 = vor.u32 %v550, %v546
      %v552 = vrot.slane %v551, 4
      %v554 = vshll.u32 %v164, 16
      %v556 = vrot.slane %v554, 5
      %v557 = vsel %vm173, %v552, %v556
      %v559 = vshrl.u32 %v165, 16
      %v561 = vrot.slane %v559, 4
      %v562 = vshll.u32 %v165, 16
      %v564 = vrot.slane %v562, 5
      %v565 = vor.u32 %v561, %v564
      %v566 = vrot.slane %v565, 4
      %v568 = vshll.u32 %v166, 16
      %v570 = vrot.slane %v568, 5
      %v571 = vsel %vm173, %v566, %v570
      %v572 = vshrl.u32 %v166, 16
      %v574 = vrot.slane %v572, 4
      %v575 = vor.u32 %v574, %v570
      %v576 = vrot.slane %v575, 4
      %v578 = vshll.u32 %v167, 16
      %v580 = vrot.slane %v578, 5
      %v581 = vsel %vm173, %v576, %v580
      %v583 = vshrl.u32 %v168, 16
      %v585 = vrot.slane %v583, 4
      %v586 = vshll.u32 %v168, 16
      %v588 = vrot.slane %v586, 5
      %v589 = vor.u32 %v585, %v588
      %v590 = vrot.slane %v589, 4
      %v592 = vshll.u32 %v169, 16
      %v594 = vrot.slane %v592, 5
      %v595 = vsel %vm173, %v590, %v594
      %v596 = vshrl.u32 %v169, 16
      %v598 = vrot.slane %v596, 4
      %v599 = vor.u32 %v598, %v594
      %v600 = vrot.slane %v599, 4
      %v602 = vshll.u32 %v170, 16
      %v604 = vrot.slane %v602, 5
      %v605 = vsel %vm173, %v600, %v604
      %v642 = vmax.bf16 %v117, %v187
      %v643 = vmax.bf16 %v118, %v197
      %v644 = vmax.bf16 %v120, %v211
      %v645 = vmax.bf16 %v121, %v221
      %v646 = vmax.bf16 %v123, %v235
      %v647 = vmax.bf16 %v124, %v245
      %v648 = vmax.bf16 %v126, %v259
      %v649 = vmax.bf16 %v127, %v269
      %v650 = vmax.bf16 %v129, %v283
      %v651 = vmax.bf16 %v130, %v293
      %v652 = vmax.bf16 %v132, %v307
      %v653 = vmax.bf16 %v133, %v317
      %v654 = vmax.bf16 %v135, %v331
      %v655 = vmax.bf16 %v136, %v341
      %v656 = vmax.bf16 %v138, %v355
      %v657 = vmax.bf16 %v139, %v365
      %v658 = vmax.bf16 %v141, %v379
      %v659 = vmax.bf16 %v142, %v389
      %v660 = vmax.bf16 %v144, %v403
      %v661 = vmax.bf16 %v145, %v413
      %v662 = vmax.bf16 %v147, %v427
      %v663 = vmax.bf16 %v148, %v437
      %v664 = vmax.bf16 %v150, %v451
      %v665 = vmax.bf16 %v151, %v461
      %v666 = vmax.bf16 %v153, %v475
      %v667 = vmax.bf16 %v154, %v485
      %v668 = vmax.bf16 %v156, %v499
      %v669 = vmax.bf16 %v157, %v509
      %v670 = vmax.bf16 %v159, %v523
      %v671 = vmax.bf16 %v160, %v533
      %v672 = vmax.bf16 %v162, %v547
      %v673 = vmax.bf16 %v163, %v557
      %v674 = vmax.bf16 %v165, %v571
      %v675 = vmax.bf16 %v166, %v581
      %v676 = vmax.bf16 %v168, %v595
      %v677 = vmax.bf16 %v169, %v605
      %vm732 = vcmask 1042432
      %vm733 = vcmask 1046532
      %vm734 = vmor %vm732, %vm733
      %v735 = vrot.slane %v117, 5
      %v736 = vrot.slane %v735, 4
      %v737 = vrot.slane %v118, 5
      %v738 = vsel %vm734, %v736, %v737
      %v739 = vrot.slane %v737, 4
      %v740 = vrot.slane %v119, 5
      %v741 = vsel %vm734, %v739, %v740
      %v742 = vrot.slane %v120, 5
      %v743 = vrot.slane %v742, 4
      %v744 = vrot.slane %v121, 5
      %v745 = vsel %vm734, %v743, %v744
      %v746 = vrot.slane %v744, 4
      %v747 = vrot.slane %v122, 5
      %v748 = vsel %vm734, %v746, %v747
      %v749 = vrot.slane %v123, 5
      %v750 = vrot.slane %v749, 4
      %v751 = vrot.slane %v124, 5
      %v752 = vsel %vm734, %v750, %v751
      %v753 = vrot.slane %v751, 4
      %v754 = vrot.slane %v125, 5
      %v755 = vsel %vm734, %v753, %v754
      %v756 = vrot.slane %v126, 5
      %v757 = vrot.slane %v756, 4
      %v758 = vrot.slane %v127, 5
      %v759 = vsel %vm734, %v757, %v758
      %v760 = vrot.slane %v758, 4
      %v761 = vrot.slane %v128, 5
      %v762 = vsel %vm734, %v760, %v761
      %v763 = vrot.slane %v129, 5
      %v764 = vrot.slane %v763, 4
      %v765 = vrot.slane %v130, 5
      %v766 = vsel %vm734, %v764, %v765
      %v767 = vrot.slane %v765, 4
      %v768 = vrot.slane %v131, 5
      %v769 = vsel %vm734, %v767, %v768
      %v770 = vrot.slane %v132, 5
      %v771 = vrot.slane %v770, 4
      %v772 = vrot.slane %v133, 5
      %v773 = vsel %vm734, %v771, %v772
      %v774 = vrot.slane %v772, 4
      %v775 = vrot.slane %v134, 5
      %v776 = vsel %vm734, %v774, %v775
      %v777 = vrot.slane %v135, 5
      %v778 = vrot.slane %v777, 4
      %v779 = vrot.slane %v136, 5
      %v780 = vsel %vm734, %v778, %v779
      %v781 = vrot.slane %v779, 4
      %v782 = vrot.slane %v137, 5
      %v783 = vsel %vm734, %v781, %v782
      %v784 = vrot.slane %v138, 5
      %v785 = vrot.slane %v784, 4
      %v786 = vrot.slane %v139, 5
      %v787 = vsel %vm734, %v785, %v786
      %v788 = vrot.slane %v786, 4
      %v789 = vrot.slane %v140, 5
      %v790 = vsel %vm734, %v788, %v789
      %v791 = vrot.slane %v141, 5
      %v792 = vrot.slane %v791, 4
      %v793 = vrot.slane %v142, 5
      %v794 = vsel %vm734, %v792, %v793
      %v795 = vrot.slane %v793, 4
      %v796 = vrot.slane %v143, 5
      %v797 = vsel %vm734, %v795, %v796
      %v798 = vrot.slane %v144, 5
      %v799 = vrot.slane %v798, 4
      %v800 = vrot.slane %v145, 5
      %v801 = vsel %vm734, %v799, %v800
      %v802 = vrot.slane %v800, 4
      %v803 = vrot.slane %v146, 5
      %v804 = vsel %vm734, %v802, %v803
      %v805 = vrot.slane %v147, 5
      %v806 = vrot.slane %v805, 4
      %v807 = vrot.slane %v148, 5
      %v808 = vsel %vm734, %v806, %v807
      %v809 = vrot.slane %v807, 4
      %v810 = vrot.slane %v149, 5
      %v811 = vsel %vm734, %v809, %v810
      %v812 = vrot.slane %v150, 5
      %v813 = vrot.slane %v812, 4
      %v814 = vrot.slane %v151, 5
      %v815 = vsel %vm734, %v813, %v814
      %v816 = vrot.slane %v814, 4
      %v817 = vrot.slane %v152, 5
      %v818 = vsel %vm734, %v816, %v817
      %v819 = vrot.slane %v153, 5
      %v820 = vrot.slane %v819, 4
      %v821 = vrot.slane %v154, 5
      %v822 = vsel %vm734, %v820, %v821
      %v823 = vrot.slane %v821, 4
      %v824 = vrot.slane %v155, 5
      %v825 = vsel %vm734, %v823, %v824
      %v826 = vrot.slane %v156, 5
      %v827 = vrot.slane %v826, 4
      %v828 = vrot.slane %v157, 5
      %v829 = vsel %vm734, %v827, %v828
      %v830 = vrot.slane %v828, 4
      %v831 = vrot.slane %v158, 5
      %v832 = vsel %vm734, %v830, %v831
      %v833 = vrot.slane %v159, 5
      %v834 = vrot.slane %v833, 4
      %v835 = vrot.slane %v160, 5
      %v836 = vsel %vm734, %v834, %v835
      %v837 = vrot.slane %v835, 4
      %v838 = vrot.slane %v161, 5
      %v839 = vsel %vm734, %v837, %v838
      %v840 = vrot.slane %v162, 5
      %v841 = vrot.slane %v840, 4
      %v842 = vrot.slane %v163, 5
      %v843 = vsel %vm734, %v841, %v842
      %v844 = vrot.slane %v842, 4
      %v845 = vrot.slane %v164, 5
      %v846 = vsel %vm734, %v844, %v845
      %v847 = vrot.slane %v165, 5
      %v848 = vrot.slane %v847, 4
      %v849 = vrot.slane %v166, 5
      %v850 = vsel %vm734, %v848, %v849
      %v851 = vrot.slane %v849, 4
      %v852 = vrot.slane %v167, 5
      %v853 = vsel %vm734, %v851, %v852
      %v854 = vrot.slane %v168, 5
      %v855 = vrot.slane %v854, 4
      %v856 = vrot.slane %v169, 5
      %v857 = vsel %vm734, %v855, %v856
      %v858 = vrot.slane %v856, 4
      %v859 = vrot.slane %v170, 5
      %v860 = vsel %vm734, %v858, %v859
      %v897 = vmax.bf16 %v642, %v738
      %v898 = vmax.bf16 %v643, %v741
      %v899 = vmax.bf16 %v644, %v745
      %v900 = vmax.bf16 %v645, %v748
      %v901 = vmax.bf16 %v646, %v752
      %v902 = vmax.bf16 %v647, %v755
      %v903 = vmax.bf16 %v648, %v759
      %v904 = vmax.bf16 %v649, %v762
      %v905 = vmax.bf16 %v650, %v766
      %v906 = vmax.bf16 %v651, %v769
      %v907 = vmax.bf16 %v652, %v773
      %v908 = vmax.bf16 %v653, %v776
      %v909 = vmax.bf16 %v654, %v780
      %v910 = vmax.bf16 %v655, %v783
      %v911 = vmax.bf16 %v656, %v787
      %v912 = vmax.bf16 %v657, %v790
      %v913 = vmax.bf16 %v658, %v794
      %v914 = vmax.bf16 %v659, %v797
      %v915 = vmax.bf16 %v660, %v801
      %v916 = vmax.bf16 %v661, %v804
      %v917 = vmax.bf16 %v662, %v808
      %v918 = vmax.bf16 %v663, %v811
      %v919 = vmax.bf16 %v664, %v815
      %v920 = vmax.bf16 %v665, %v818
      %v921 = vmax.bf16 %v666, %v822
      %v922 = vmax.bf16 %v667, %v825
      %v923 = vmax.bf16 %v668, %v829
      %v924 = vmax.bf16 %v669, %v832
      %v925 = vmax.bf16 %v670, %v836
      %v926 = vmax.bf16 %v671, %v839
      %v927 = vmax.bf16 %v672, %v843
      %v928 = vmax.bf16 %v673, %v846
      %v929 = vmax.bf16 %v674, %v850
      %v930 = vmax.bf16 %v675, %v853
      %v931 = vmax.bf16 %v676, %v857
      %v932 = vmax.bf16 %v677, %v860
      %v933 = vmax.bf16 %v897, %v899
      %v934 = vmax.bf16 %v898, %v900
      %v935 = vmax.bf16 %v899, %v901
      %v936 = vmax.bf16 %v900, %v902
      %v937 = vmax.bf16 %v901, %v903
      %v938 = vmax.bf16 %v902, %v904
      %v939 = vmax.bf16 %v903, %v905
      %v940 = vmax.bf16 %v904, %v906
      %v941 = vmax.bf16 %v905, %v907
      %v942 = vmax.bf16 %v906, %v908
      %v943 = vmax.bf16 %v907, %v909
      %v944 = vmax.bf16 %v908, %v910
      %v945 = vmax.bf16 %v909, %v911
      %v946 = vmax.bf16 %v910, %v912
      %v947 = vmax.bf16 %v911, %v913
      %v948 = vmax.bf16 %v912, %v914
      %v949 = vmax.bf16 %v913, %v915
      %v950 = vmax.bf16 %v914, %v916
      %v951 = vmax.bf16 %v915, %v917
      %v952 = vmax.bf16 %v916, %v918
      %v953 = vmax.bf16 %v917, %v919
      %v954 = vmax.bf16 %v918, %v920
      %v955 = vmax.bf16 %v919, %v921
      %v956 = vmax.bf16 %v920, %v922
      %v957 = vmax.bf16 %v921, %v923
      %v958 = vmax.bf16 %v922, %v924
      %v959 = vmax.bf16 %v923, %v925
      %v960 = vmax.bf16 %v924, %v926
      %v961 = vmax.bf16 %v925, %v927
      %v962 = vmax.bf16 %v926, %v928
      %v963 = vmax.bf16 %v927, %v929
      %v964 = vmax.bf16 %v928, %v930
      %v965 = vmax.bf16 %v933, %v901
      %v966 = vmax.bf16 %v934, %v902
      %v967 = vmax.bf16 %v935, %v903
      %v968 = vmax.bf16 %v936, %v904
      %v969 = vmax.bf16 %v937, %v905
      %v970 = vmax.bf16 %v938, %v906
      %v971 = vmax.bf16 %v939, %v907
      %v972 = vmax.bf16 %v940, %v908
      %v973 = vmax.bf16 %v941, %v909
      %v974 = vmax.bf16 %v942, %v910
      %v975 = vmax.bf16 %v943, %v911
      %v976 = vmax.bf16 %v944, %v912
      %v977 = vmax.bf16 %v945, %v913
      %v978 = vmax.bf16 %v946, %v914
      %v979 = vmax.bf16 %v947, %v915
      %v980 = vmax.bf16 %v948, %v916
      %v981 = vmax.bf16 %v949, %v917
      %v982 = vmax.bf16 %v950, %v918
      %v983 = vmax.bf16 %v951, %v919
      %v984 = vmax.bf16 %v952, %v920
      %v985 = vmax.bf16 %v953, %v921
      %v986 = vmax.bf16 %v954, %v922
      %v987 = vmax.bf16 %v955, %v923
      %v988 = vmax.bf16 %v956, %v924
      %v989 = vmax.bf16 %v957, %v925
      %v990 = vmax.bf16 %v958, %v926
      %v991 = vmax.bf16 %v959, %v927
      %v992 = vmax.bf16 %v960, %v928
      %v993 = vmax.bf16 %v961, %v929
      %v994 = vmax.bf16 %v962, %v930
      %v995 = vmax.bf16 %v963, %v931
      %v996 = vmax.bf16 %v964, %v932
      %vm997 = vcmask 27648
      %998 = vst.msk [vmem:[%s116] sm:$0xf] %vm997, %v965
      %999 = vst.msk [vmem:[%s116 + $0x4] sm:$0xf] %vm997, %v966
      %1000 = vst.msk [vmem:[%s116 + $0x8] sm:$0xf] %vm997, %v967
      %1001 = vst.msk [vmem:[%s116 + $0xc] sm:$0xf] %vm997, %v968
      %1002 = vst.msk [vmem:[%s116 + $0x10] sm:$0xf] %vm997, %v969
      %1003 = vst.msk [vmem:[%s116 + $0x14] sm:$0xf] %vm997, %v970
      %1004 = vst.msk [vmem:[%s116 + $0x18] sm:$0xf] %vm997, %v971
      %1005 = vst.msk [vmem:[%s116 + $0x1c] sm:$0xf] %vm997, %v972
      %1006 = vst.msk [vmem:[%s116 + $0x20] sm:$0xf] %vm997, %v973
      %1007 = vst.msk [vmem:[%s116 + $0x24] sm:$0xf] %vm997, %v974
      %1008 = vst.msk [vmem:[%s116 + $0x28] sm:$0xf] %vm997, %v975
      %1009 = vst.msk [vmem:[%s116 + $0x2c] sm:$0xf] %vm997, %v976
      %1010 = vst.msk [vmem:[%s116 + $0x30] sm:$0xf] %vm997, %v977
      %1011 = vst.msk [vmem:[%s116 + $0x34] sm:$0xf] %vm997, %v978
      %1012 = vst.msk [vmem:[%s116 + $0x38] sm:$0xf] %vm997, %v979
      %1013 = vst.msk [vmem:[%s116 + $0x3c] sm:$0xf] %vm997, %v980
      %1014 = vst.msk [vmem:[%s116 + $0x40] sm:$0xf] %vm997, %v981
      %1015 = vst.msk [vmem:[%s116 + $0x44] sm:$0xf] %vm997, %v982
      %1016 = vst.msk [vmem:[%s116 + $0x48] sm:$0xf] %vm997, %v983
      %1017 = vst.msk [vmem:[%s116 + $0x4c] sm:$0xf] %vm997, %v984
      %1018 = vst.msk [vmem:[%s116 + $0x50] sm:$0xf] %vm997, %v985
      %1019 = vst.msk [vmem:[%s116 + $0x54] sm:$0xf] %vm997, %v986
      %1020 = vst.msk [vmem:[%s116 + $0x58] sm:$0xf] %vm997, %v987
      %1021 = vst.msk [vmem:[%s116 + $0x5c] sm:$0xf] %vm997, %v988
      %1022 = vst.msk [vmem:[%s116 + $0x60] sm:$0xf] %vm997, %v989
      %1023 = vst.msk [vmem:[%s116 + $0x64] sm:$0xf] %vm997, %v990
      %1024 = vst.msk [vmem:[%s116 + $0x68] sm:$0xf] %vm997, %v991
      %1025 = vst.msk [vmem:[%s116 + $0x6c] sm:$0xf] %vm997, %v992
      %1026 = vst.msk [vmem:[%s116 + $0x70] sm:$0xf] %vm997, %v993
      %1027 = vst.msk [vmem:[%s116 + $0x74] sm:$0xf] %vm997, %v994
      %1028 = vst.msk [vmem:[%s116 + $0x78] sm:$0xf] %vm997, %v995
      %1029 = vst.msk [vmem:[%s116 + $0x7c] sm:$0xf] %vm997, %v996
      %p1030 = scmp.lt.s32.totalorder %s12, 1
      %s1031 = scalar_select %p1030, %s12, 1
      %s1032 = smul.addr %s1031, 32
      %s1033 = smul.addr %s1032, 4
      %s1034 = scalar_lea.vmem %s1, %s1033
      // Predicated region
      $region25: #{inception_forward.8} parent=23 // pred_check
        %p1035 = pneg %p56
      $region26: #{inception_forward.8} parent=23 // pred_check_branch
        %1037 = sbr.rel (%p1035) target = $region28
      $region27: #{inception_forward.8} parent=23 // pred_region
        _
      $region28: #{inception_forward.8} parent=23 // pred_fallthru
        _
    $region24: #{inception_forward.8} parent=5 // pred_fallthru
      _
    %p1038 = scmp.le.s32.totalorder 2, %s7
    // Predicated region
    $region29: #{inception_forward.8} parent=5 // pred_check
      %p1039 = pneg %p1038
    $region30: #{inception_forward.8} parent=5 // pred_check_branch
      %1041 = sbr.rel (%p1039) target = $region32
    $region31: #{inception_forward.8} parent=5 // pred_region
      %s1042 = ssub.s32 %s7, 2
      // Predicated region
      $region33: #{inception_forward.8} parent=31 // pred_check
        %p1043 = pneg %p62
      $region34: #{inception_forward.8} parent=31 // pred_check_branch
        %1045 = sbr.rel (%p1043) target = $region36
      $region35: #{inception_forward.8} parent=31 // pred_region
        %p1046 = scmp.lt.s32.totalorder %s13, 1
        %s1047 = scalar_select %p1046, %s13, 1
        %s1048 = smul.addr %s1047, 32
        %s1049 = smul.addr %s1048, 4
        %s1050 = scalar_lea.vmem %s1, %s1049
      $region36: #{inception_forward.8} parent=31 // pred_fallthru
        _
    $region32: #{inception_forward.8} parent=5 // pred_fallthru
      _
  $region6: #{inception_forward.8} parent=0 // loop_footer
    %s11 = sadd.s32 1, %s7
  $region7: #{inception_forward.8} parent=0 // loop_footer_branch
    %6 = sbr.rel target = $region3
  $region8: #{inception_forward.8} parent=0 // loop_exit
    _

// kernel: inception_forward.9
$region0: #{inception_forward.9}
  #allocation0 [shape = 'u32[]', space=smem, size = 0x4, offset = 0x4, fixed_abs, tag = 'smem constant byte address 0x4 - core index']
  #allocation1 [shape = 'u32[144,128]{1,0:T(1,128)}', space=vmem, size = 0x12000, scoped, tag = 'internal scratch']
  %s0 = inlined_call_operand.vmem [shape: bf16[512,4], index: 0, kind: input, shape index: {}]
  %s1 = inlined_call_operand.vmem [shape: bf16[4,8], index: 1, kind: input, shape index: {}]
  %s2 = inlined_call_operand.vmem [shape: f32[1,8], index: 2, kind: input, shape index: {}]
  %s3 = inlined_call_operand.vmem [shape: bf16[512,8], index: 3, kind: output, shape index: {}]
  %s4 = sld [smem:[#allocation0]]
  $region22: #{inception_forward.9} parent=0
    _
  %s6 = ssub.s32 1, %s4
  %s7 = scalar_select 0, %s6, %s4
  // Predicated region
  $region2: #{inception_forward.9} parent=0 // pred_check
    _
  $region3: #{inception_forward.9} parent=0 // pred_check_branch
    %9 = sbr.rel (0) target = $region5
  $region4: #{inception_forward.9} parent=0 // pred_region
    _
  $region5: #{inception_forward.9} parent=0 // pred_fallthru
    _
  // Predicated region
  $region6: #{inception_forward.9} parent=0 // pred_check
    _
  $region7: #{inception_forward.9} parent=0 // pred_check_branch
    %11 = sbr.rel (0) target = $region9
  $region8: #{inception_forward.9} parent=0 // pred_region
    _
  $region9: #{inception_forward.9} parent=0 // pred_fallthru
    _
  // Predicated region
  $region10: #{inception_forward.9} parent=0 // pred_check
    _
  $region11: #{inception_forward.9} parent=0 // pred_check_branch
    %13 = sbr.rel (0) target = $region13
  $region12: #{inception_forward.9} parent=0 // pred_region
    _
  $region13: #{inception_forward.9} parent=0 // pred_fallthru
    _
  %v15 = vld [vmem:[%s0] sm:$0xf]
  %v16 = vld [vmem:[%s0 + $0x4] sm:$0xf]
  %v17 = vld [vmem:[%s0 + $0x8] sm:$0xf]
  %v18 = vld [vmem:[%s0 + $0xc] sm:$0xf]
  %v19 = vld [vmem:[%s0 + $0x10] sm:$0xf]
  %v20 = vld [vmem:[%s0 + $0x14] sm:$0xf]
  %v21 = vld [vmem:[%s0 + $0x18] sm:$0xf]
  %v22 = vld [vmem:[%s0 + $0x1c] sm:$0xf]
  %v23 = vld [vmem:[%s0 + $0x20] sm:$0xf]
  %v24 = vld [vmem:[%s0 + $0x24] sm:$0xf]
  %v25 = vld [vmem:[%s0 + $0x28] sm:$0xf]
  %v26 = vld [vmem:[%s0 + $0x2c] sm:$0xf]
  %v27 = vld [vmem:[%s0 + $0x30] sm:$0xf]
  %v28 = vld [vmem:[%s0 + $0x34] sm:$0xf]
  %v29 = vld [vmem:[%s0 + $0x38] sm:$0xf]
  %v30 = vld [vmem:[%s0 + $0x3c] sm:$0xf]
  %v31 = vld [vmem:[%s0 + $0x40] sm:$0xf]
  %v32 = vld [vmem:[%s0 + $0x44] sm:$0xf]
  %v33 = vld [vmem:[%s0 + $0x48] sm:$0xf]
  %v34 = vld [vmem:[%s0 + $0x4c] sm:$0xf]
  %v35 = vld [vmem:[%s0 + $0x50] sm:$0xf]
  %v36 = vld [vmem:[%s0 + $0x54] sm:$0xf]
  %v37 = vld [vmem:[%s0 + $0x58] sm:$0xf]
  %v38 = vld [vmem:[%s0 + $0x5c] sm:$0xf]
  %v39 = vld [vmem:[%s0 + $0x60] sm:$0xf]
  %v40 = vld [vmem:[%s0 + $0x64] sm:$0xf]
  %v41 = vld [vmem:[%s0 + $0x68] sm:$0xf]
  %v42 = vld [vmem:[%s0 + $0x6c] sm:$0xf]
  %v43 = vld [vmem:[%s0 + $0x70] sm:$0xf]
  %v44 = vld [vmem:[%s0 + $0x74] sm:$0xf]
  %v45 = vld [vmem:[%s0 + $0x78] sm:$0xf]
  %v46 = vld [vmem:[%s0 + $0x7c] sm:$0xf]
  %v47 = vld [vmem:[%s0 + $0x80] sm:$0xf]
  %v48 = vld [vmem:[%s0 + $0x84] sm:$0xf]
  %v49 = vld [vmem:[%s0 + $0x88] sm:$0xf]
  %v50 = vld [vmem:[%s0 + $0x8c] sm:$0xf]
  %v51 = vld [vmem:[%s0 + $0x90] sm:$0xf]
  %v52 = vld [vmem:[%s0 + $0x94] sm:$0xf]
  %v53 = vld [vmem:[%s0 + $0x98] sm:$0xf]
  %v54 = vld [vmem:[%s0 + $0x9c] sm:$0xf]
  %v55 = vld [vmem:[%s0 + $0xa0] sm:$0xf]
  %v56 = vld [vmem:[%s0 + $0xa4] sm:$0xf]
  %v57 = vld [vmem:[%s0 + $0xa8] sm:$0xf]
  %v58 = vld [vmem:[%s0 + $0xac] sm:$0xf]
  %v59 = vld [vmem:[%s0 + $0xb0] sm:$0xf]
  %v60 = vld [vmem:[%s0 + $0xb4] sm:$0xf]
  %v61 = vld [vmem:[%s0 + $0xb8] sm:$0xf]
  %v62 = vld [vmem:[%s0 + $0xbc] sm:$0xf]
  %v63 = vld [vmem:[%s0 + $0xc0] sm:$0xf]
  %v64 = vld [vmem:[%s0 + $0xc4] sm:$0xf]
  %v65 = vld [vmem:[%s0 + $0xc8] sm:$0xf]
  %v66 = vld [vmem:[%s0 + $0xcc] sm:$0xf]
  %v67 = vld [vmem:[%s0 + $0xd0] sm:$0xf]
  %v68 = vld [vmem:[%s0 + $0xd4] sm:$0xf]
  %v69 = vld [vmem:[%s0 + $0xd8] sm:$0xf]
  %v70 = vld [vmem:[%s0 + $0xdc] sm:$0xf]
  %v71 = vld [vmem:[%s0 + $0xe0] sm:$0xf]
  %v72 = vld [vmem:[%s0 + $0xe4] sm:$0xf]
  %v73 = vld [vmem:[%s0 + $0xe8] sm:$0xf]
  %v74 = vld [vmem:[%s0 + $0xec] sm:$0xf]
  %v75 = vld [vmem:[%s0 + $0xf0] sm:$0xf]
  %v76 = vld [vmem:[%s0 + $0xf4] sm:$0xf]
  %v77 = vld [vmem:[%s0 + $0xf8] sm:$0xf]
  %v78 = vld [vmem:[%s0 + $0xfc] sm:$0xf]
  %v79 = vld [vmem:[%s1] sm:$0x3]
  %v80 = vld [vmem:[%s2] sm:$0x1]
  %v82 = vlaneseq
  %v83 = vshrl.u32 %v82, 7
  %v84 = vsub.s32 0, %v83
  %v85 = vrot.slane %v80, %v84
  %v151 = vunpack.c.l.b16 %v15
  %v152 = vunpack.c.l.b16 %v16
  %v153 = vunpack.c.l.b16 %v17
  %v154 = vunpack.c.l.b16 %v18
  %v155 = vunpack.c.l.b16 %v19
  %v156 = vunpack.c.l.b16 %v20
  %v157 = vunpack.c.l.b16 %v21
  %v158 = vunpack.c.l.b16 %v22
  %v159 = vunpack.c.l.b16 %v23
  %v160 = vunpack.c.l.b16 %v24
  %v161 = vunpack.c.l.b16 %v25
  %v162 = vunpack.c.l.b16 %v26
  %v163 = vunpack.c.l.b16 %v27
  %v164 = vunpack.c.l.b16 %v28
  %v165 = vunpack.c.l.b16 %v29
  %v166 = vunpack.c.l.b16 %v30
  %v167 = vunpack.c.l.b16 %v31
  %v168 = vunpack.c.l.b16 %v32
  %v169 = vunpack.c.l.b16 %v33
  %v170 = vunpack.c.l.b16 %v34
  %v171 = vunpack.c.l.b16 %v35
  %v172 = vunpack.c.l.b16 %v36
  %v173 = vunpack.c.l.b16 %v37
  %v174 = vunpack.c.l.b16 %v38
  %v175 = vunpack.c.l.b16 %v39
  %v176 = vunpack.c.l.b16 %v40
  %v177 = vunpack.c.l.b16 %v41
  %v178 = vunpack.c.l.b16 %v42
  %v179 = vunpack.c.l.b16 %v43
  %v180 = vunpack.c.l.b16 %v44
  %v181 = vunpack.c.l.b16 %v45
  %v182 = vunpack.c.l.b16 %v46
  %v183 = vunpack.c.l.b16 %v47
  %v184 = vunpack.c.l.b16 %v48
  %v185 = vunpack.c.l.b16 %v49
  %v186 = vunpack.c.l.b16 %v50
  %v187 = vunpack.c.l.b16 %v51
  %v188 = vunpack.c.l.b16 %v52
  %v189 = vunpack.c.l.b16 %v53
  %v190 = vunpack.c.l.b16 %v54
  %v191 = vunpack.c.l.b16 %v55
  %v192 = vunpack.c.l.b16 %v56
  %v193 = vunpack.c.l.b16 %v57
  %v194 = vunpack.c.l.b16 %v58
  %v195 = vunpack.c.l.b16 %v59
  %v196 = vunpack.c.l.b16 %v60
  %v197 = vunpack.c.l.b16 %v61
  %v198 = vunpack.c.l.b16 %v62
  %v199 = vunpack.c.l.b16 %v63
  %v200 = vunpack.c.l.b16 %v64
  %v201 = vunpack.c.l.b16 %v65
  %v202 = vunpack.c.l.b16 %v66
  %v203 = vunpack.c.l.b16 %v67
  %v204 = vunpack.c.l.b16 %v68
  %v205 = vunpack.c.l.b16 %v69
  %v206 = vunpack.c.l.b16 %v70
  %v207 = vunpack.c.l.b16 %v71
  %v208 = vunpack.c.l.b16 %v72
  %v209 = vunpack.c.l.b16 %v73
  %v210 = vunpack.c.l.b16 %v74
  %v211 = vunpack.c.l.b16 %v75
  %v212 = vunpack.c.l.b16 %v76
  %v213 = vunpack.c.l.b16 %v77
  %v214 = vunpack.c.l.b16 %v78
  %v215 = vpack.c.b16 %v152, %v151
  %v216 = vpack.c.b16 %v154, %v153
  %v217 = vpack.c.b16 %v156, %v155
  %v218 = vpack.c.b16 %v158, %v157
  %v219 = vpack.c.b16 %v160, %v159
  %v220 = vpack.c.b16 %v162, %v161
  %v221 = vpack.c.b16 %v164, %v163
  %v222 = vpack.c.b16 %v166, %v165
  %v223 = vpack.c.b16 %v168, %v167
  %v224 = vpack.c.b16 %v170, %v169
  %v225 = vpack.c.b16 %v172, %v171
  %v226 = vpack.c.b16 %v174, %v173
  %v227 = vpack.c.b16 %v176, %v175
  %v228 = vpack.c.b16 %v178, %v177
  %v229 = vpack.c.b16 %v180, %v179
  %v230 = vpack.c.b16 %v182, %v181
  %v231 = vpack.c.b16 %v184, %v183
  %v232 = vpack.c.b16 %v186, %v185
  %v233 = vpack.c.b16 %v188, %v187
  %v234 = vpack.c.b16 %v190, %v189
  %v235 = vpack.c.b16 %v192, %v191
  %v236 = vpack.c.b16 %v194, %v193
  %v237 = vpack.c.b16 %v196, %v195
  %v238 = vpack.c.b16 %v198, %v197
  %v239 = vpack.c.b16 %v200, %v199
  %v240 = vpack.c.b16 %v202, %v201
  %v241 = vpack.c.b16 %v204, %v203
  %v242 = vpack.c.b16 %v206, %v205
  %v243 = vpack.c.b16 %v208, %v207
  %v244 = vpack.c.b16 %v210, %v209
  %v245 = vpack.c.b16 %v212, %v211
  %v246 = vpack.c.b16 %v214, %v213
  %vm247 = vcmask 31744
  %v249 = vsel %vm247, %v215, 0
  %v252 = vsel %vm247, %v216, 0
  %v255 = vsel %vm247, %v217, 0
  %v258 = vsel %vm247, %v218, 0
  %v261 = vsel %vm247, %v219, 0
  %v264 = vsel %vm247, %v220, 0
  %v267 = vsel %vm247, %v221, 0
  %v270 = vsel %vm247, %v222, 0
  %v273 = vsel %vm247, %v223, 0
  %v276 = vsel %vm247, %v224, 0
  %v279 = vsel %vm247, %v225, 0
  %v282 = vsel %vm247, %v226, 0
  %v285 = vsel %vm247, %v227, 0
  %v288 = vsel %vm247, %v228, 0
  %v291 = vsel %vm247, %v229, 0
  %v294 = vsel %vm247, %v230, 0
  %v297 = vsel %vm247, %v231, 0
  %v300 = vsel %vm247, %v232, 0
  %v303 = vsel %vm247, %v233, 0
  %v306 = vsel %vm247, %v234, 0
  %v309 = vsel %vm247, %v235, 0
  %v312 = vsel %vm247, %v236, 0
  %v315 = vsel %vm247, %v237, 0
  %v318 = vsel %vm247, %v238, 0
  %v321 = vsel %vm247, %v239, 0
  %v324 = vsel %vm247, %v240, 0
  %v327 = vsel %vm247, %v241, 0
  %v330 = vsel %vm247, %v242, 0
  %v333 = vsel %vm247, %v243, 0
  %v336 = vsel %vm247, %v244, 0
  %v339 = vsel %vm247, %v245, 0
  %v342 = vsel %vm247, %v246, 0
  %vm344 = vcmask 1041408
  %v346 = vsel %vm344, %v79, 0
  %348 = vmatprep.subr.bf16.mxu0 0
  %349 = vmatpush1.bf16.msra.mxu0 %v346
  %350 = vmatprep.subr.bf16.mxu0 0
  %351 = vmatpush1.bf16.msra.mxu0 0
  %352 = vmatprep.subr.bf16.mxu0 0
  %353 = vmatpush1.bf16.msra.mxu0 0
  %354 = vmatprep.subr.bf16.mxu0 0
  %355 = vmatpush1.bf16.msra.mxu0 0
  %356 = vmatprep.subr.bf16.mxu0 0
  %357 = vmatpush1.bf16.msra.mxu0 0
  %358 = vmatprep.subr.bf16.mxu0 0
  %359 = vmatpush1.bf16.msra.mxu0 0
  %360 = vmatprep.subr.bf16.mxu0 0
  %361 = vmatpush1.bf16.msra.mxu0 0
  %362 = vmatprep.subr.bf16.mxu0 0
  %363 = vmatpush1.bf16.msra.mxu0 0
  %364 = vmatprep.subr.bf16.mxu0 0
  %365 = vmatpush1.bf16.msra.mxu0 0
  %366 = vmatprep.subr.bf16.mxu0 0
  %367 = vmatpush1.bf16.msra.mxu0 0
  %368 = vmatprep.subr.bf16.mxu0 0
  %369 = vmatpush1.bf16.msra.mxu0 0
  %370 = vmatprep.subr.bf16.mxu0 0
  %371 = vmatpush1.bf16.msra.mxu0 0
  %372 = vmatprep.subr.bf16.mxu0 0
  %373 = vmatpush1.bf16.msra.mxu0 0
  %374 = vmatprep.subr.bf16.mxu0 0
  %375 = vmatpush1.bf16.msra.mxu0 0
  %376 = vmatprep.subr.bf16.mxu0 0
  %377 = vmatpush1.bf16.msra.mxu0 0
  %378 = vmatprep.subr.bf16.mxu0 0
  %379 = vmatpush1.bf16.msra.mxu0 0
  %380 = vmatprep.mubr.bf16.mxu0 0
  %381 = vmatmul.mubr.bf16.gmra.mrb[0].mxu0 %v249
  %v382 = vpop.f32.mrb[0].mxu0
  %v383 = vadd.f32 %v85, %v382
  %v384 = vpop.f32.mrb[0].mxu0
  %v385 = vpop.f32.mrb[0].mxu0
  %v386 = vadd.f32 %v85, %v385
  %v387 = vpop.f32.mrb[0].mxu0
  %388 = vmatprep.mubr.bf16.mxu0 0
  %389 = vmatmul.mubr.bf16.gmra.mrb[0].mxu0 %v252
  %v390 = vpop.f32.mrb[0].mxu0
  %v391 = vadd.f32 %v85, %v390
  %v392 = vpop.f32.mrb[0].mxu0
  %v393 = vpop.f32.mrb[0].mxu0
  %v394 = vadd.f32 %v85, %v393
  %v395 = vpop.f32.mrb[0].mxu0
  %396 = vmatprep.mubr.bf16.mxu0 0
  %397 = vmatmul.mubr.bf16.gmra.mrb[0].mxu0 %v255
  %v398 = vpop.f32.mrb[0].mxu0
  %v399 = vadd.f32 %v85, %v398
  %v400 = vpop.f32.mrb[0].mxu0
  %v401 = vpop.f32.mrb[0].mxu0
  %v402 = vadd.f32 %v85, %v401
  %v403 = vpop.f32.mrb[0].mxu0
  %404 = vmatprep.mubr.bf16.mxu0 0
  %405 = vmatmul.mubr.bf16.gmra.mrb[0].mxu0 %v258
  %v406 = vpop.f32.mrb[0].mxu0
  %v407 = vadd.f32 %v85, %v406
  %v408 = vpop.f32.mrb[0].mxu0
  %v409 = vpop.f32.mrb[0].mxu0
  %v410 = vadd.f32 %v85, %v409
  %v411 = vpop.f32.mrb[0].mxu0
  %412 = vmatprep.mubr.bf16.mxu0 0
  %413 = vmatmul.mubr.bf16.gmra.mrb[0].mxu0 %v261
  %v414 = vpop.f32.mrb[0].mxu0
  %v415 = vadd.f32 %v85, %v414
  %v416 = vpop.f32.mrb[0].mxu0
  %v417 = vpop.f32.mrb[0].mxu0
  %v418 = vadd.f32 %v85, %v417
  %v419 = vpop.f32.mrb[0].mxu0
  %420 = vmatprep.mubr.bf16.mxu0 0
  %421 = vmatmul.mubr.bf16.gmra.mrb[0].mxu0 %v264
  %v422 = vpop.f32.mrb[0].mxu0
  %v423 = vadd.f32 %v85, %v422
  %v424 = vpop.f32.mrb[0].mxu0
  %v425 = vpop.f32.mrb[0].mxu0
  %v426 = vadd.f32 %v85, %v425
  %v427 = vpop.f32.mrb[0].mxu0
  %428 = vmatprep.mubr.bf16.mxu0 0
  %429 = vmatmul.mubr.bf16.gmra.mrb[0].mxu0 %v267
  %v430 = vpop.f32.mrb[0].mxu0
  %v431 = vadd.f32 %v85, %v430
  %v432 = vpop.f32.mrb[0].mxu0
  %v433 = vpop.f32.mrb[0].mxu0
  %v434 = vadd.f32 %v85, %v433
  %v435 = vpop.f32.mrb[0].mxu0
  %436 = vmatprep.mubr.bf16.mxu0 0
  %437 = vmatmul.mubr.bf16.gmra.mrb[0].mxu0 %v270
  %v438 = vpop.f32.mrb[0].mxu0
  %v439 = vadd.f32 %v85, %v438
  %v440 = vpop.f32.mrb[0].mxu0
  %v441 = vpop.f32.mrb[0].mxu0
  %v442 = vadd.f32 %v85, %v441
  %v443 = vpop.f32.mrb[0].mxu0
  %444 = vmatprep.mubr.bf16.mxu0 0
  %445 = vmatmul.mubr.bf16.gmra.mrb[0].mxu0 %v273
  %v446 = vpop.f32.mrb[0].mxu0
  %v447 = vadd.f32 %v85, %v446
  %v448 = vpop.f32.mrb[0].mxu0
  %v449 = vpop.f32.mrb[0].mxu0
  %v450 = vadd.f32 %v85, %v449
  %v451 = vpop.f32.mrb[0].mxu0
  %452 = vmatprep.mubr.bf16.mxu0 0
  %453 = vmatmul.mubr.bf16.gmra.mrb[0].mxu0 %v276
  %v454 = vpop.f32.mrb[0].mxu0
  %v455 = vadd.f32 %v85, %v454
  %v456 = vpop.f32.mrb[0].mxu0
  %v457 = vpop.f32.mrb[0].mxu0
  %v458 = vadd.f32 %v85, %v457
  %v459 = vpop.f32.mrb[0].mxu0
  %460 = vmatprep.mubr.bf16.mxu0 0
  %461 = vmatmul.mubr.bf16.gmra.mrb[0].mxu0 %v279
  %v462 = vpop.f32.mrb[0].mxu0
  %v463 = vadd.f32 %v85, %v462
  %v464 = vpop.f32.mrb[0].mxu0
  %v465 = vpop.f32.mrb[0].mxu0
  %v466 = vadd.f32 %v85, %v465
  %v467 = vpop.f32.mrb[0].mxu0
  %468 = vmatprep.mubr.bf16.mxu0 0
  %469 = vmatmul.mubr.bf16.gmra.mrb[0].mxu0 %v282
  %v470 = vpop.f32.mrb[0].mxu0
  %v471 = vadd.f32 %v85, %v470
  %v472 = vpop.f32.mrb[0].mxu0
  %v473 = vpop.f32.mrb[0].mxu0
  %v474 = vadd.f32 %v85, %v473
  %v475 = vpop.f32.mrb[0].mxu0
  %476 = vmatprep.mubr.bf16.mxu0 0
  %477 = vmatmul.mubr.bf16.gmra.mrb[0].mxu0 %v285
  %v478 = vpop.f32.mrb[0].mxu0
  %v479 = vadd.f32 %v85, %v478
  %v480 = vpop.f32.mrb[0].mxu0
  %v481 = vpop.f32.mrb[0].mxu0
  %v482 = vadd.f32 %v85, %v481
  %v483 = vpop.f32.mrb[0].mxu0
  %484 = vmatprep.mubr.bf16.mxu0 0
  %485 = vmatmul.mubr.bf16.gmra.mrb[0].mxu0 %v288
  %v486 = vpop.f32.mrb[0].mxu0
  %v487 = vadd.f32 %v85, %v486
  %v488 = vpop.f32.mrb[0].mxu0
  %v489 = vpop.f32.mrb[0].mxu0
  %v490 = vadd.f32 %v85, %v489
  %v491 = vpop.f32.mrb[0].mxu0
  %492 = vmatprep.mubr.bf16.mxu0 0
  %493 = vmatmul.mubr.bf16.gmra.mrb[0].mxu0 %v291
  %v494 = vpop.f32.mrb[0].mxu0
  %v495 = vadd.f32 %v85, %v494
  %v496 = vpop.f32.mrb[0].mxu0
  %v497 = vpop.f32.mrb[0].mxu0
  %v498 = vadd.f32 %v85, %v497
  %v499 = vpop.f32.mrb[0].mxu0
  %500 = vmatprep.mubr.bf16.mxu0 0
  %501 = vmatmul.mubr.bf16.gmra.mrb[0].mxu0 %v294
  %v502 = vpop.f32.mrb[0].mxu0
  %v503 = vadd.f32 %v85, %v502
  %v504 = vpop.f32.mrb[0].mxu0
  %v505 = vpop.f32.mrb[0].mxu0
  %v506 = vadd.f32 %v85, %v505
  %v507 = vpop.f32.mrb[0].mxu0
  %508 = vmatprep.mubr.bf16.mxu0 0
  %509 = vmatmul.mubr.bf16.gmra.mrb[0].mxu0 %v297
  %v510 = vpop.f32.mrb[0].mxu0
  %v511 = vadd.f32 %v85, %v510
  %v512 = vpop.f32.mrb[0].mxu0
  %v513 = vpop.f32.mrb[0].mxu0
  %v514 = vadd.f32 %v85, %v513
  %v515 = vpop.f32.mrb[0].mxu0
  %516 = vmatprep.mubr.bf16.mxu0 0
  %517 = vmatmul.mubr.bf16.gmra.mrb[0].mxu0 %v300
  %v518 = vpop.f32.mrb[0].mxu0
  %v519 = vadd.f32 %v85, %v518
  %v520 = vpop.f32.mrb[0].mxu0
  %v521 = vpop.f32.mrb[0].mxu0
  %v522 = vadd.f32 %v85, %v521
  %v523 = vpop.f32.mrb[0].mxu0
  %524 = vmatprep.mubr.bf16.mxu0 0
  %525 = vmatmul.mubr.bf16.gmra.mrb[0].mxu0 %v303
  %v526 = vpop.f32.mrb[0].mxu0
  %v527 = vadd.f32 %v85, %v526
  %v528 = vpop.f32.mrb[0].mxu0
  %v529 = vpop.f32.mrb[0].mxu0
  %v530 = vadd.f32 %v85, %v529
  %v531 = vpop.f32.mrb[0].mxu0
  %532 = vmatprep.mubr.bf16.mxu0 0
  %533 = vmatmul.mubr.bf16.gmra.mrb[0].mxu0 %v306
  %v534 = vpop.f32.mrb[0].mxu0
  %v535 = vadd.f32 %v85, %v534
  %v536 = vpop.f32.mrb[0].mxu0
  %v537 = vpop.f32.mrb[0].mxu0
  %v538 = vadd.f32 %v85, %v537
  %v539 = vpop.f32.mrb[0].mxu0
  %540 = vmatprep.mubr.bf16.mxu0 0
  %541 = vmatmul.mubr.bf16.gmra.mrb[0].mxu0 %v309
  %v542 = vpop.f32.mrb[0].mxu0
  %v543 = vadd.f32 %v85, %v542
  %v544 = vpop.f32.mrb[0].mxu0
  %v545 = vpop.f32.mrb[0].mxu0
  %v546 = vadd.f32 %v85, %v545
  %v547 = vpop.f32.mrb[0].mxu0
  %548 = vmatprep.mubr.bf16.mxu0 0
  %549 = vmatmul.mubr.bf16.gmra.mrb[0].mxu0 %v312
  %v550 = vpop.f32.mrb[0].mxu0
  %v551 = vadd.f32 %v85, %v550
  %v552 = vpop.f32.mrb[0].mxu0
  %v553 = vpop.f32.mrb[0].mxu0
  %v554 = vadd.f32 %v85, %v553
  %v555 = vpop.f32.mrb[0].mxu0
  %556 = vmatprep.mubr.bf16.mxu0 0
  %557 = vmatmul.mubr.bf16.gmra.mrb[0].mxu0 %v315
  %v558 = vpop.f32.mrb[0].mxu0
  %v559 = vadd.f32 %v85, %v558
  %v560 = vpop.f32.mrb[0].mxu0
  %v561 = vpop.f32.mrb[0].mxu0
  %v562 = vadd.f32 %v85, %v561
  %v563 = vpop.f32.mrb[0].mxu0
  %564 = vmatprep.mubr.bf16.mxu0 0
  %565 = vmatmul.mubr.bf16.gmra.mrb[0].mxu0 %v318
  %v566 = vpop.f32.mrb[0].mxu0
  %v567 = vadd.f32 %v85, %v566
  %v568 = vpop.f32.mrb[0].mxu0
  %v569 = vpop.f32.mrb[0].mxu0
  %v570 = vadd.f32 %v85, %v569
  %v571 = vpop.f32.mrb[0].mxu0
  %572 = vmatprep.mubr.bf16.mxu0 0
  %573 = vmatmul.mubr.bf16.gmra.mrb[0].mxu0 %v321
  %v574 = vpop.f32.mrb[0].mxu0
  %v575 = vadd.f32 %v85, %v574
  %v576 = vpop.f32.mrb[0].mxu0
  %v577 = vpop.f32.mrb[0].mxu0
  %v578 = vadd.f32 %v85, %v577
  %v579 = vpop.f32.mrb[0].mxu0
  %580 = vmatprep.mubr.bf16.mxu0 0
  %581 = vmatmul.mubr.bf16.gmra.mrb[0].mxu0 %v324
  %v582 = vpop.f32.mrb[0].mxu0
  %v583 = vadd.f32 %v85, %v582
  %v584 = vpop.f32.mrb[0].mxu0
  %v585 = vpop.f32.mrb[0].mxu0
  %v586 = vadd.f32 %v85, %v585
  %v587 = vpop.f32.mrb[0].mxu0
  %588 = vmatprep.mubr.bf16.mxu0 0
  %589 = vmatmul.mubr.bf16.gmra.mrb[0].mxu0 %v327
  %v590 = vpop.f32.mrb[0].mxu0
  %v591 = vadd.f32 %v85, %v590
  %v592 = vpop.f32.mrb[0].mxu0
  %v593 = vpop.f32.mrb[0].mxu0
  %v594 = vadd.f32 %v85, %v593
  %v595 = vpop.f32.mrb[0].mxu0
  %596 = vmatprep.mubr.bf16.mxu0 0
  %597 = vmatmul.mubr.bf16.gmra.mrb[0].mxu0 %v330
  %v598 = vpop.f32.mrb[0].mxu0
  %v599 = vadd.f32 %v85, %v598
  %v600 = vpop.f32.mrb[0].mxu0
  %v601 = vpop.f32.mrb[0].mxu0
  %v602 = vadd.f32 %v85, %v601
  %v603 = vpop.f32.mrb[0].mxu0
  %604 = vmatprep.mubr.bf16.mxu0 0
  %605 = vmatmul.mubr.bf16.gmra.mrb[0].mxu0 %v333
  %v606 = vpop.f32.mrb[0].mxu0
  %v607 = vadd.f32 %v85, %v606
  %v608 = vpop.f32.mrb[0].mxu0
  %v609 = vpop.f32.mrb[0].mxu0
  %v610 = vadd.f32 %v85, %v609
  %v611 = vpop.f32.mrb[0].mxu0
  %612 = vmatprep.mubr.bf16.mxu0 0
  %613 = vmatmul.mubr.bf16.gmra.mrb[0].mxu0 %v336
  %v614 = vpop.f32.mrb[0].mxu0
  %v615 = vadd.f32 %v85, %v614
  %v616 = vpop.f32.mrb[0].mxu0
  %v617 = vpop.f32.mrb[0].mxu0
  %v618 = vadd.f32 %v85, %v617
  %v619 = vpop.f32.mrb[0].mxu0
  %620 = vmatprep.mubr.bf16.mxu0 0
  %621 = vmatmul.mubr.bf16.gmra.mrb[0].mxu0 %v339
  %v622 = vpop.f32.mrb[0].mxu0
  %v623 = vadd.f32 %v85, %v622
  %v624 = vpop.f32.mrb[0].mxu0
  %v625 = vpop.f32.mrb[0].mxu0
  %v626 = vadd.f32 %v85, %v625
  %v627 = vpop.f32.mrb[0].mxu0
  %628 = vmatprep.mubr.bf16.mxu0 0
  %629 = vmatmul.mubr.bf16.gmra.mrb[0].mxu0 %v342
  %v630 = vpop.f32.mrb[0].mxu0
  %v631 = vadd.f32 %v85, %v630
  %v632 = vpop.f32.mrb[0].mxu0
  %v633 = vpop.f32.mrb[0].mxu0
  %v634 = vadd.f32 %v85, %v633
  %v635 = vpop.f32.mrb[0].mxu0
  %636 = vdwg.mxu0
  %v637 = vmax.f32 %v383, 0.0
  %v638 = vmax.f32 %v386, 0.0
  %v639 = vmax.f32 %v391, 0.0
  %v640 = vmax.f32 %v394, 0.0
  %v641 = vmax.f32 %v399, 0.0
  %v642 = vmax.f32 %v402, 0.0
  %v643 = vmax.f32 %v407, 0.0
  %v644 = vmax.f32 %v410, 0.0
  %v645 = vmax.f32 %v415, 0.0
  %v646 = vmax.f32 %v418, 0.0
  %v647 = vmax.f32 %v423, 0.0
  %v648 = vmax.f32 %v426, 0.0
  %v649 = vmax.f32 %v431, 0.0
  %v650 = vmax.f32 %v434, 0.0
  %v651 = vmax.f32 %v439, 0.0
  %v652 = vmax.f32 %v442, 0.0
  %v653 = vmax.f32 %v447, 0.0
  %v654 = vmax.f32 %v450, 0.0
  %v655 = vmax.f32 %v455, 0.0
  %v656 = vmax.f32 %v458, 0.0
  %v657 = vmax.f32 %v463, 0.0
  %v658 = vmax.f32 %v466, 0.0
  %v659 = vmax.f32 %v471, 0.0
  %v660 = vmax.f32 %v474, 0.0
  %v661 = vmax.f32 %v479, 0.0
  %v662 = vmax.f32 %v482, 0.0
  %v663 = vmax.f32 %v487, 0.0
  %v664 = vmax.f32 %v490, 0.0
  %v665 = vmax.f32 %v495, 0.0
  %v666 = vmax.f32 %v498, 0.0
  %v667 = vmax.f32 %v503, 0.0
  %v668 = vmax.f32 %v506, 0.0
  %v669 = vmax.f32 %v511, 0.0
  %v670 = vmax.f32 %v514, 0.0
  %v671 = vmax.f32 %v519, 0.0
  %v672 = vmax.f32 %v522, 0.0
  %v673 = vmax.f32 %v527, 0.0
  %v674 = vmax.f32 %v530, 0.0
  %v675 = vmax.f32 %v535, 0.0
  %v676 = vmax.f32 %v538, 0.0
  %v677 = vmax.f32 %v543, 0.0
  %v678 = vmax.f32 %v546, 0.0
  %v679 = vmax.f32 %v551, 0.0
  %v680 = vmax.f32 %v554, 0.0
  %v681 = vmax.f32 %v559, 0.0
  %v682 = vmax.f32 %v562, 0.0
  %v683 = vmax.f32 %v567, 0.0
  %v684 = vmax.f32 %v570, 0.0
  %v685 = vmax.f32 %v575, 0.0
  %v686 = vmax.f32 %v578, 0.0
  %v687 = vmax.f32 %v583, 0.0
  %v688 = vmax.f32 %v586, 0.0
  %v689 = vmax.f32 %v591, 0.0
  %v690 = vmax.f32 %v594, 0.0
  %v691 = vmax.f32 %v599, 0.0
  %v692 = vmax.f32 %v602, 0.0
  %v693 = vmax.f32 %v607, 0.0
  %v694 = vmax.f32 %v610, 0.0
  %v695 = vmax.f32 %v615, 0.0
  %v696 = vmax.f32 %v618, 0.0
  %v697 = vmax.f32 %v623, 0.0
  %v698 = vmax.f32 %v626, 0.0
  %v699 = vmax.f32 %v631, 0.0
  %v700 = vmax.f32 %v634, 0.0
  %v701 = vpack.c.bf16 %v638, %v637
  %v702 = vpack.c.bf16 %v640, %v639
  %v703 = vpack.c.bf16 %v642, %v641
  %v704 = vpack.c.bf16 %v644, %v643
  %v705 = vpack.c.bf16 %v646, %v645
  %v706 = vpack.c.bf16 %v648, %v647
  %v707 = vpack.c.bf16 %v650, %v649
  %v708 = vpack.c.bf16 %v652, %v651
  %v709 = vpack.c.bf16 %v654, %v653
  %v710 = vpack.c.bf16 %v656, %v655
  %v711 = vpack.c.bf16 %v658, %v657
  %v712 = vpack.c.bf16 %v660, %v659
  %v713 = vpack.c.bf16 %v662, %v661
  %v714 = vpack.c.bf16 %v664, %v663
  %v715 = vpack.c.bf16 %v666, %v665
  %v716 = vpack.c.bf16 %v668, %v667
  %v717 = vpack.c.bf16 %v670, %v669
  %v718 = vpack.c.bf16 %v672, %v671
  %v719 = vpack.c.bf16 %v674, %v673
  %v720 = vpack.c.bf16 %v676, %v675
  %v721 = vpack.c.bf16 %v678, %v677
  %v722 = vpack.c.bf16 %v680, %v679
  %v723 = vpack.c.bf16 %v682, %v681
  %v724 = vpack.c.bf16 %v684, %v683
  %v725 = vpack.c.bf16 %v686, %v685
  %v726 = vpack.c.bf16 %v688, %v687
  %v727 = vpack.c.bf16 %v690, %v689
  %v728 = vpack.c.bf16 %v692, %v691
  %v729 = vpack.c.bf16 %v694, %v693
  %v730 = vpack.c.bf16 %v696, %v695
  %v731 = vpack.c.bf16 %v698, %v697
  %v732 = vpack.c.bf16 %v700, %v699
  %v765 = vunpack.c.l.b16 %v701
  %v766 = vunpack.c.h.b16 %v701
  %v767 = vunpack.c.l.b16 %v702
  %v768 = vunpack.c.h.b16 %v702
  %v769 = vunpack.c.l.b16 %v703
  %v770 = vunpack.c.h.b16 %v703
  %v771 = vunpack.c.l.b16 %v704
  %v772 = vunpack.c.h.b16 %v704
  %v773 = vunpack.c.l.b16 %v705
  %v774 = vunpack.c.h.b16 %v705
  %v775 = vunpack.c.l.b16 %v706
  %v776 = vunpack.c.h.b16 %v706
  %v777 = vunpack.c.l.b16 %v707
  %v778 = vunpack.c.h.b16 %v707
  %v779 = vunpack.c.l.b16 %v708
  %v780 = vunpack.c.h.b16 %v708
  %v781 = vunpack.c.l.b16 %v709
  %v782 = vunpack.c.h.b16 %v709
  %v783 = vunpack.c.l.b16 %v710
  %v784 = vunpack.c.h.b16 %v710
  %v785 = vunpack.c.l.b16 %v711
  %v786 = vunpack.c.h.b16 %v711
  %v787 = vunpack.c.l.b16 %v712
  %v788 = vunpack.c.h.b16 %v712
  %v789 = vunpack.c.l.b16 %v713
  %v790 = vunpack.c.h.b16 %v713
  %v791 = vunpack.c.l.b16 %v714
  %v792 = vunpack.c.h.b16 %v714
  %v793 = vunpack.c.l.b16 %v715
  %v794 = vunpack.c.h.b16 %v715
  %v795 = vunpack.c.l.b16 %v716
  %v796 = vunpack.c.h.b16 %v716
  %v797 = vunpack.c.l.b16 %v717
  %v798 = vunpack.c.h.b16 %v717
  %v799 = vunpack.c.l.b16 %v718
  %v800 = vunpack.c.h.b16 %v718
  %v801 = vunpack.c.l.b16 %v719
  %v802 = vunpack.c.h.b16 %v719
  %v803 = vunpack.c.l.b16 %v720
  %v804 = vunpack.c.h.b16 %v720
  %v805 = vunpack.c.l.b16 %v721
  %v806 = vunpack.c.h.b16 %v721
  %v807 = vunpack.c.l.b16 %v722
  %v808 = vunpack.c.h.b16 %v722
  %v809 = vunpack.c.l.b16 %v723
  %v810 = vunpack.c.h.b16 %v723
  %v811 = vunpack.c.l.b16 %v724
  %v812 = vunpack.c.h.b16 %v724
  %v813 = vunpack.c.l.b16 %v725
  %v814 = vunpack.c.h.b16 %v725
  %v815 = vunpack.c.l.b16 %v726
  %v816 = vunpack.c.h.b16 %v726
  %v817 = vunpack.c.l.b16 %v727
  %v818 = vunpack.c.h.b16 %v727
  %v819 = vunpack.c.l.b16 %v728
  %v820 = vunpack.c.h.b16 %v728
  %v821 = vunpack.c.l.b16 %v729
  %v822 = vunpack.c.h.b16 %v729
  %v823 = vunpack.c.l.b16 %v730
  %v824 = vunpack.c.h.b16 %v730
  %v825 = vunpack.c.l.b16 %v731
  %v826 = vunpack.c.h.b16 %v731
  %v827 = vunpack.c.l.b16 %v732
  %v828 = vunpack.c.h.b16 %v732
  %v829 = vpack.c.b16 %v765, %v765
  %v830 = vpack.c.b16 %v766, %v766
  %v831 = vpack.c.b16 %v767, %v767
  %v832 = vpack.c.b16 %v768, %v768
  %v833 = vpack.c.b16 %v769, %v769
  %v834 = vpack.c.b16 %v770, %v770
  %v835 = vpack.c.b16 %v771, %v771
  %v836 = vpack.c.b16 %v772, %v772
  %v837 = vpack.c.b16 %v773, %v773
  %v838 = vpack.c.b16 %v774, %v774
  %v839 = vpack.c.b16 %v775, %v775
  %v840 = vpack.c.b16 %v776, %v776
  %v841 = vpack.c.b16 %v777, %v777
  %v842 = vpack.c.b16 %v778, %v778
  %v843 = vpack.c.b16 %v779, %v779
  %v844 = vpack.c.b16 %v780, %v780
  %v845 = vpack.c.b16 %v781, %v781
  %v846 = vpack.c.b16 %v782, %v782
  %v847 = vpack.c.b16 %v783, %v783
  %v848 = vpack.c.b16 %v784, %v784
  %v849 = vpack.c.b16 %v785, %v785
  %v850 = vpack.c.b16 %v786, %v786
  %v851 = vpack.c.b16 %v787, %v787
  %v852 = vpack.c.b16 %v788, %v788
  %v853 = vpack.c.b16 %v789, %v789
  %v854 = vpack.c.b16 %v790, %v790
  %v855 = vpack.c.b16 %v791, %v791
  %v856 = vpack.c.b16 %v792, %v792
  %v857 = vpack.c.b16 %v793, %v793
  %v858 = vpack.c.b16 %v794, %v794
  %v859 = vpack.c.b16 %v795, %v795
  %v860 = vpack.c.b16 %v796, %v796
  %v861 = vpack.c.b16 %v797, %v797
  %v862 = vpack.c.b16 %v798, %v798
  %v863 = vpack.c.b16 %v799, %v799
  %v864 = vpack.c.b16 %v800, %v800
  %v865 = vpack.c.b16 %v801, %v801
  %v866 = vpack.c.b16 %v802, %v802
  %v867 = vpack.c.b16 %v803, %v803
  %v868 = vpack.c.b16 %v804, %v804
  %v869 = vpack.c.b16 %v805, %v805
  %v870 = vpack.c.b16 %v806, %v806
  %v871 = vpack.c.b16 %v807, %v807
  %v872 = vpack.c.b16 %v808, %v808
  %v873 = vpack.c.b16 %v809, %v809
  %v874 = vpack.c.b16 %v810, %v810
  %v875 = vpack.c.b16 %v811, %v811
  %v876 = vpack.c.b16 %v812, %v812
  %v877 = vpack.c.b16 %v813, %v813
  %v878 = vpack.c.b16 %v814, %v814
  %v879 = vpack.c.b16 %v815, %v815
  %v880 = vpack.c.b16 %v816, %v816
  %v881 = vpack.c.b16 %v817, %v817
  %v882 = vpack.c.b16 %v818, %v818
  %v883 = vpack.c.b16 %v819, %v819
  %v884 = vpack.c.b16 %v820, %v820
  %v885 = vpack.c.b16 %v821, %v821
  %v886 = vpack.c.b16 %v822, %v822
  %v887 = vpack.c.b16 %v823, %v823
  %v888 = vpack.c.b16 %v824, %v824
  %v889 = vpack.c.b16 %v825, %v825
  %v890 = vpack.c.b16 %v826, %v826
  %v891 = vpack.c.b16 %v827, %v827
  %v892 = vpack.c.b16 %v828, %v828
  %vm957 = vcmask 60416
  %958 = vst.msk [vmem:[%s3] sm:$0xf] %vm957, %v829
  %959 = vst.msk [vmem:[%s3 + $0x4] sm:$0xf] %vm957, %v830
  %960 = vst.msk [vmem:[%s3 + $0x8] sm:$0xf] %vm957, %v831
  %961 = vst.msk [vmem:[%s3 + $0xc] sm:$0xf] %vm957, %v832
  %962 = vst.msk [vmem:[%s3 + $0x10] sm:$0xf] %vm957, %v833
  %963 = vst.msk [vmem:[%s3 + $0x14] sm:$0xf] %vm957, %v834
  %964 = vst.msk [vmem:[%s3 + $0x18] sm:$0xf] %vm957, %v835
  %965 = vst.msk [vmem:[%s3 + $0x1c] sm:$0xf] %vm957, %v836
  %966 = vst.msk [vmem:[%s3 + $0x20] sm:$0xf] %vm957, %v837
  %967 = vst.msk [vmem:[%s3 + $0x24] sm:$0xf] %vm957, %v838
  %968 = vst.msk [vmem:[%s3 + $0x28] sm:$0xf] %vm957, %v839
  %969 = vst.msk [vmem:[%s3 + $0x2c] sm:$0xf] %vm957, %v840
  %970 = vst.msk [vmem:[%s3 + $0x30] sm:$0xf] %vm957, %v841
  %971 = vst.msk [vmem:[%s3 + $0x34] sm:$0xf] %vm957, %v842
  %972 = vst.msk [vmem:[%s3 + $0x38] sm:$0xf] %vm957, %v843
  %973 = vst.msk [vmem:[%s3 + $0x3c] sm:$0xf] %vm957, %v844
  %974 = vst.msk [vmem:[%s3 + $0x40] sm:$0xf] %vm957, %v845
  %975 = vst.msk [vmem:[%s3 + $0x44] sm:$0xf] %vm957, %v846
  %976 = vst.msk [vmem:[%s3 + $0x48] sm:$0xf] %vm957, %v847
  %977 = vst.msk [vmem:[%s3 + $0x4c] sm:$0xf] %vm957, %v848
  %978 = vst.msk [vmem:[%s3 + $0x50] sm:$0xf] %vm957, %v849
  %979 = vst.msk [vmem:[%s3 + $0x54] sm:$0xf] %vm957, %v850
  %980 = vst.msk [vmem:[%s3 + $0x58] sm:$0xf] %vm957, %v851
  %981 = vst.msk [vmem:[%s3 + $0x5c] sm:$0xf] %vm957, %v852
  %982 = vst.msk [vmem:[%s3 + $0x60] sm:$0xf] %vm957, %v853
  %983 = vst.msk [vmem:[%s3 + $0x64] sm:$0xf] %vm957, %v854
  %984 = vst.msk [vmem:[%s3 + $0x68] sm:$0xf] %vm957, %v855
  %985 = vst.msk [vmem:[%s3 + $0x6c] sm:$0xf] %vm957, %v856
  %986 = vst.msk [vmem:[%s3 + $0x70] sm:$0xf] %vm957, %v857
  %987 = vst.msk [vmem:[%s3 + $0x74] sm:$0xf] %vm957, %v858
  %988 = vst.msk [vmem:[%s3 + $0x78] sm:$0xf] %vm957, %v859
  %989 = vst.msk [vmem:[%s3 + $0x7c] sm:$0xf] %vm957, %v860
  %990 = vst.msk [vmem:[%s3 + $0x80] sm:$0xf] %vm957, %v861
  %991 = vst.msk [vmem:[%s3 + $0x84] sm:$0xf] %vm957, %v862
  %992 = vst.msk [vmem:[%s3 + $0x88] sm:$0xf] %vm957, %v863
  %993 = vst.msk [vmem:[%s3 + $0x8c] sm:$0xf] %vm957, %v864
  %994 = vst.msk [vmem:[%s3 + $0x90] sm:$0xf] %vm957, %v865
  %995 = vst.msk [vmem:[%s3 + $0x94] sm:$0xf] %vm957, %v866
  %996 = vst.msk [vmem:[%s3 + $0x98] sm:$0xf] %vm957, %v867
  %997 = vst.msk [vmem:[%s3 + $0x9c] sm:$0xf] %vm957, %v868
  %998 = vst.msk [vmem:[%s3 + $0xa0] sm:$0xf] %vm957, %v869
  %999 = vst.msk [vmem:[%s3 + $0xa4] sm:$0xf] %vm957, %v870
  %1000 = vst.msk [vmem:[%s3 + $0xa8] sm:$0xf] %vm957, %v871
  %1001 = vst.msk [vmem:[%s3 + $0xac] sm:$0xf] %vm957, %v872
  %1002 = vst.msk [vmem:[%s3 + $0xb0] sm:$0xf] %vm957, %v873
  %1003 = vst.msk [vmem:[%s3 + $0xb4] sm:$0xf] %vm957, %v874
  %1004 = vst.msk [vmem:[%s3 + $0xb8] sm:$0xf] %vm957, %v875
  %1005 = vst.msk [vmem:[%s3 + $0xbc] sm:$0xf] %vm957, %v876
  %1006 = vst.msk [vmem:[%s3 + $0xc0] sm:$0xf] %vm957, %v877
  %1007 = vst.msk [vmem:[%s3 + $0xc4] sm:$0xf] %vm957, %v878
  %1008 = vst.msk [vmem:[%s3 + $0xc8] sm:$0xf] %vm957, %v879
  %1009 = vst.msk [vmem:[%s3 + $0xcc] sm:$0xf] %vm957, %v880
  %1010 = vst.msk [vmem:[%s3 + $0xd0] sm:$0xf] %vm957, %v881
  %1011 = vst.msk [vmem:[%s3 + $0xd4] sm:$0xf] %vm957, %v882
  %1012 = vst.msk [vmem:[%s3 + $0xd8] sm:$0xf] %vm957, %v883
  %1013 = vst.msk [vmem:[%s3 + $0xdc] sm:$0xf] %vm957, %v884
  %1014 = vst.msk [vmem:[%s3 + $0xe0] sm:$0xf] %vm957, %v885
  %1015 = vst.msk [vmem:[%s3 + $0xe4] sm:$0xf] %vm957, %v886
  %1016 = vst.msk [vmem:[%s3 + $0xe8] sm:$0xf] %vm957, %v887
  %1017 = vst.msk [vmem:[%s3 + $0xec] sm:$0xf] %vm957, %v888
  %1018 = vst.msk [vmem:[%s3 + $0xf0] sm:$0xf] %vm957, %v889
  %1019 = vst.msk [vmem:[%s3 + $0xf4] sm:$0xf] %vm957, %v890
  %1020 = vst.msk [vmem:[%s3 + $0xf8] sm:$0xf] %vm957, %v891
  %1021 = vst.msk [vmem:[%s3 + $0xfc] sm:$0xf] %vm957, %v892
  // Predicated region
  $region14: #{inception_forward.9} parent=0 // pred_check
    _
  $region15: #{inception_forward.9} parent=0 // pred_check_branch
    %1023 = sbr.rel (0) target = $region17
  $region16: #{inception_forward.9} parent=0 // pred_region
    _
  $region17: #{inception_forward.9} parent=0 // pred_fallthru
    _
  // Predicated region
  $region18: #{inception_forward.9} parent=0 // pred_check
    _
  $region19: #{inception_forward.9} parent=0 // pred_check_branch
    %1025 = sbr.rel (0) target = $region21
  $region20: #{inception_forward.9} parent=0 // pred_region
    _
  $region21: #{inception_forward.9} parent=0 // pred_fallthru
    _

</llo_original>
